<compile_context>
chip_gen: v5e
topology: v5e:2x2
jax: 0.10.0
libtpu: 0.0.40
codegen_flags: <defaults>
</compile_context>

<pallas_src>
import numpy as np
import jax
import jax.numpy as jnp
from jax.experimental import pallas as pl
from jax.experimental.pallas import tpu as pltpu

LANE = 128
HSLOT = 32                       # per-gate lane slot (requires hidden_size <= 32)
BIAS_LANE = 32                   # constant-1 lane inside xh / bias row inside the weight
GATE_ORDER = ("i", "f", "g", "o")        # torch nn.LSTM row order
SLAB = {"f": 0, "i": 1, "o": 2, "g": 3}  # our lane-slab per gate


# ----------------------------- Pallas kernel -----------------------------
def make_kernel(num_layers, input_len, output_len, batch_pad):
    L = num_layers
    Bp = batch_pad

    def kernel(x_ref,      # (T, Bp, 128) f32: x at lanes [64:64+in], 1.0 at lane 32
               w_all_ref,  # (2L, 128, 128) bf16: fused [hh | bias | ih] weights, enc then dec
               w_lin_ref,  # (128, 128) bf16: rows [0:H] = W_lin.T
               b_lin_ref,  # (1, 128) f32
               out_ref):   # (T_out*Bp, 128) f32, lane-dense
        lane = jax.lax.broadcasted_iota(jnp.int32, (Bp, LANE), 1)
        slab0 = lane < 32
        slab2 = (lane >= 64) & (lane < 96)
        gmask = lane >= 96                                  # tanh slab (gate g)
        bias_lane = jnp.where(lane == BIAS_LANE, 1.0, 0.0)  # 1.0 at lane 32, else 0

        def cell(xh, c, w_bf16):
            # gates, packed: [f | i | o | g] pre-activations (bias already folded in)
            g = jnp.dot(xh.astype(jnp.bfloat16), w_bf16,
                        preferred_element_type=jnp.float32)
            s = jax.nn.sigmoid(g)
            t = jnp.tanh(g)
            m = jnp.where(gmask, t, s)            # [sig f | sig i | sig o | tanh g]
            mr = pltpu.roll(m, 64, axis=1)        # [sig o | tanh g | sig f | sig i]
            # m*mr has sig(i)*tanh(g) at slabs 1 AND 3 -> +-32 roll lands it at slab 0
            ig = pltpu.roll(m * mr, 32, axis=1)
            c_new = m * c + ig                    # slab0: sig(f)*c + sig(i)*tanh(g)
            h_new = mr * jnp.tanh(c_new)          # slab0: sig(o)*tanh(c_new)
            return h_new, c_new

        def make_xh(prev, h_own):
            # prev (valid at slab 0) -> slab 2 via direction-agnostic 64-lane roll
            prev2 = pltpu.roll(prev, 64, axis=1)
            return jnp.where(slab0, h_own, jnp.where(slab2, prev2, bias_lane))

        zero = jnp.zeros((Bp, LANE), jnp.float32)
        h = [zero] * L
        c = [zero] * L

        # ---------------- encoder: fully unrolled over the input sequence ----------------
        for t in range(input_len):
            xt = x_ref[t]                                   # x already at slab2 + bias lane
            xh = jnp.where(slab0, h[0], xt)
            h[0], c[0] = cell(xh, c[0], w_all_ref[0])
            for l in range(1, L):
                h[l], c[l] = cell(make_xh(h[l - 1], h[l]), c[l], w_all_ref[l])

        # ---------------- decoder: fully unrolled autoregressive steps ----------------
        dec_in = h[L - 1]                                   # encoder_hidden[-1]
        for t in range(output_len):
            prev = dec_in
            for l in range(L):
                h[l], c[l] = cell(make_xh(prev, h[l]), c[l], w_all_ref[L + l])
                prev = h[l]
            out_ref[pl.ds(t * Bp, Bp), :] = prev            # stage top-layer h, full tiles
            dec_in = prev

        # ---------------- batched output projection, off the recurrent chain ----------------
        proj = jnp.dot(out_ref[...].astype(jnp.bfloat16), w_lin_ref[...],
                       preferred_element_type=jnp.float32)
        out_ref[...] = proj + b_lin_ref[...]

    return kernel


# ----------------------------- wrapper -----------------------------
def lstm_encoder_decoder(x, packed, *, hidden_size, num_layers, output_length, output_size):
    B, T, Fin = x.shape
    assert hidden_size <= HSLOT and Fin <= HSLOT and output_size <= LANE
    Bp = ((B + 7) // 8) * 8                                 # pad batch to full sublane tiles
    w_all, w_lin_p, b_lin_p = packed

    xp = jnp.zeros((T, Bp, LANE), jnp.float32)
    xp = xp.at[:, :, BIAS_LANE].set(1.0)                    # constant-1 bias lane
    xp = xp.at[:, :B, 64:64 + Fin].set(jnp.transpose(x, (1, 0, 2)))

    kernel = make_kernel(num_layers, T, output_length, Bp)
    vmem = lambda: pl.BlockSpec(memory_space=pltpu.MemorySpace.VMEM)
    out_flat = pl.pallas_call(
        kernel,
        out_shape=jax.ShapeDtypeStruct((output_length * Bp, LANE), jnp.float32),
        in_specs=[vmem(), vmem(), vmem(), vmem()],
        out_specs=vmem(),
    )(xp, w_all, w_lin_p, b_lin_p)

    out = out_flat.reshape(output_length, Bp, LANE)[:, :B, :output_size]
    return jnp.transpose(out, (1, 0, 2))                    # (B, T_out, output_size)


# ----------------------------- parameter setup -----------------------------
def init_params(key, input_size, hidden_size, num_layers, output_size):
    H = hidden_size
    bound = 1.0 / np.sqrt(H)

    def uni(k, shape):
        return jax.random.uniform(k, shape, jnp.float32, -bound, bound)

    keys = iter(jax.random.split(key, 8 * num_layers + 4))
    enc, dec = [], []
    for l in range(num_layers):
        in_l = input_size if l == 0 else H
        enc.append(dict(w_ih=uni(next(keys), (4 * H, in_l)),
                        w_hh=uni(next(keys), (4 * H, H)),
                        b_ih=uni(next(keys), (4 * H,)),
                        b_hh=uni(next(keys), (4 * H,))))
    for l in range(num_layers):
        dec.append(dict(w_ih=uni(next(keys), (4 * H, H)),
                        w_hh=uni(next(keys), (4 * H, H)),
                        b_ih=uni(next(keys), (4 * H,)),
                        b_hh=uni(next(keys), (4 * H,))))
    w_lin = uni(next(keys), (output_size, H))
    b_lin = uni(next(keys), (output_size,))
    return enc, dec, w_lin, b_lin


def _pack_cell(w_ih, w_hh, b_ih, b_hh, H):
    """Fused (128,128) weight: rows[0:H]=W_hh.T, row32=bias, rows[64:64+in]=W_ih.T,
    columns packed per gate slab [f|i|o|g] of 32 lanes each."""
    w_ih = np.asarray(w_ih, np.float32)
    w_hh = np.asarray(w_hh, np.float32)
    b = np.asarray(b_ih, np.float32) + np.asarray(b_hh, np.float32)
    in_f = w_ih.shape[1]
    W = np.zeros((LANE, LANE), np.float32)
    for gi, gname in enumerate(GATE_ORDER):
        s = SLAB[gname] * HSLOT
        W[0:H, s:s + H] = w_hh[gi * H:(gi + 1) * H, :].T
        W[64:64 + in_f, s:s + H] = w_ih[gi * H:(gi + 1) * H, :].T
        W[BIAS_LANE, s:s + H] = b[gi * H:(gi + 1) * H]
    return W


def pack_params(enc, dec, w_lin, b_lin, hidden_size, num_layers, output_size):
    H = hidden_size
    cells = list(enc) + list(dec)
    w_all = np.stack([_pack_cell(p["w_ih"], p["w_hh"], p["b_ih"], p["b_hh"], H)
                      for p in cells])
    w_lin_p = np.zeros((LANE, LANE), np.float32)
    w_lin_p[:H, :output_size] = np.asarray(w_lin, np.float32).T
    b_lin_p = np.zeros((1, LANE), np.float32)
    b_lin_p[0, :output_size] = np.asarray(b_lin, np.float32)
    return (jnp.asarray(w_all, jnp.bfloat16),       # bf16 MXU weights
            jnp.asarray(w_lin_p, jnp.bfloat16),
            jnp.asarray(b_lin_p, jnp.float32))


# ----------------------------- pure-JAX reference (f32) -----------------------------
def reference_forward(x, enc, dec, w_lin, b_lin, hidden_size, num_layers, output_length):
    B, T, _ = x.shape
    H = hidden_size

    def cell(x_t, h, c, p):
        gates = x_t @ p["w_ih"].T + p["b_ih"] + h @ p["w_hh"].T + p["b_hh"]
        i, f, g, o = jnp.split(gates, 4, axis=-1)
        i, f, o = jax.nn.sigmoid(i), jax.nn.sigmoid(f), jax.nn.sigmoid(o)
        g = jnp.tanh(g)
        c_new = f * c + i * g
        h_new = o * jnp.tanh(c_new)
        return h_new, c_new

    h = [jnp.zeros((B, H), jnp.float32) for _ in range(num_layers)]
    c = [jnp.zeros((B, H), jnp.float32) for _ in range(num_layers)]
    for t in range(T):
        inp = x[:, t, :]
        for l in range(num_layers):
            h[l], c[l] = cell(inp, h[l], c[l], enc[l])
            inp = h[l]
    dec_in = h[-1]
    outs = []
    for _ in range(output_length):
        inp = dec_in
        for l in range(num_layers):
            h[l], c[l] = cell(inp, h[l], c[l], dec[l])
            inp = h[l]
        outs.append(inp @ w_lin.T + b_lin)
        dec_in = inp
    return jnp.stack(outs, axis=1)                          # (B, T_out, output_size)


# ----------------------------- main -----------------------------
if __name__ == "__main__":
    batch = 2
    input_length = 8
    input_size = 4
    hidden_size = 32
    num_layers = 2
    output_length = 6
    output_size = 5

    key = jax.random.PRNGKey(0)
    kx, kp = jax.random.split(key)
    x = jax.random.normal(kx, (batch, input_length, input_size), jnp.float32)

    enc, dec, w_lin, b_lin = init_params(kp, input_size, hidden_size, num_layers, output_size)
    packed = pack_params(enc, dec, w_lin, b_lin, hidden_size, num_layers, output_size)

    out = lstm_encoder_decoder(x, packed,
                               hidden_size=hidden_size, num_layers=num_layers,
                               output_length=output_length, output_size=output_size)
    out = jax.block_until_ready(out)

    ref = reference_forward(x, enc, dec, w_lin, b_lin,
                            hidden_size, num_layers, output_length)
    assert out.shape == (batch, output_length, output_size), out.shape
    # bf16 MXU inputs (f32 accumulate / f32 state) -> loosened tolerance vs the f32 reference.
    err = np.abs(np.asarray(out) - np.asarray(ref)).max()
    assert np.allclose(np.asarray(out), np.asarray(ref), atol=5e-2, rtol=5e-2), err
    print("KERNEL_OK")
</pallas_src>

<mosaic_0001>
module attributes {stable_mosaic.version = 11 : i64} {
  func.func @kernel(%arg0: memref<8x8x128xf32, #tpu.memory_space<vmem>>, %arg1: memref<4x128x128xbf16, #tpu.memory_space<vmem>>, %arg2: memref<128x128xbf16, #tpu.memory_space<vmem>>, %arg3: memref<1x128xf32, #tpu.memory_space<vmem>>, %arg4: memref<48x128xf32, #tpu.memory_space<vmem>>) attributes {dimension_semantics = [], scalar_prefetch = 0 : i64, scratch_operands = 0 : i64, tpu.core_type = #tpu.core_type<tc>} {
    %0 = tpu.iota {dimensions = array<i32: 1>} : vector<8x128xi32>
    %c32_i32 = arith.constant 32 : i32
    %1 = vector.broadcast %c32_i32 : i32 to vector<8x128xi32>
    %2 = arith.cmpi slt, %0, %1 : vector<8x128xi32>
    %c64_i32 = arith.constant 64 : i32
    %3 = vector.broadcast %c64_i32 : i32 to vector<8x128xi32>
    %4 = arith.cmpi sge, %0, %3 : vector<8x128xi32>
    %c96_i32 = arith.constant 96 : i32
    %5 = vector.broadcast %c96_i32 : i32 to vector<8x128xi32>
    %6 = arith.cmpi slt, %0, %5 : vector<8x128xi32>
    %7 = arith.andi %4, %6 : vector<8x128xi1>
    %c96_i32_0 = arith.constant 96 : i32
    %8 = vector.broadcast %c96_i32_0 : i32 to vector<8x128xi32>
    %9 = arith.cmpi sge, %0, %8 : vector<8x128xi32>
    %c32_i32_1 = arith.constant 32 : i32
    %10 = vector.broadcast %c32_i32_1 : i32 to vector<8x128xi32>
    %11 = arith.cmpi eq, %0, %10 : vector<8x128xi32>
    %cst = arith.constant 1.000000e+00 : f32
    %cst_2 = arith.constant 0.000000e+00 : f32
    %12 = vector.broadcast %cst : f32 to vector<8x128xf32>
    %13 = vector.broadcast %cst_2 : f32 to vector<8x128xf32>
    %14 = arith.select %11, %12, %13 : vector<8x128xi1>, vector<8x128xf32>
    %cst_3 = arith.constant 0.000000e+00 : f32
    %15 = vector.broadcast %cst_3 : f32 to vector<8x128xf32>
    %c0 = arith.constant 0 : index
    %c0_4 = arith.constant 0 : index
    %c0_5 = arith.constant 0 : index
    %16 = vector.load %arg0[%c0, %c0_4, %c0_5] : memref<8x8x128xf32, #tpu.memory_space<vmem>>, vector<1x8x128xf32>
    %17 = vector.shape_cast %16 : vector<1x8x128xf32> to vector<8x128xf32>
    %18 = arith.select %2, %15, %17 : vector<8x128xi1>, vector<8x128xf32>
    %c0_6 = arith.constant 0 : index
    %c0_7 = arith.constant 0 : index
    %c0_8 = arith.constant 0 : index
    %19 = vector.load %arg1[%c0_6, %c0_7, %c0_8] : memref<4x128x128xbf16, #tpu.memory_space<vmem>>, vector<1x128x128xbf16>
    %20 = vector.shape_cast %19 : vector<1x128x128xbf16> to vector<128x128xbf16>
    %21 = arith.truncf %18 : vector<8x128xf32> to vector<8x128xbf16>
    %cst_9 = arith.constant dense<0.000000e+00> : vector<8x128xf32>
    %22 = tpu.matmul %21, %20, %cst_9 {dimension_numbers = #tpu.dot_dimension_numbers<[1], [0], [0], [1], [0, 0, 1, 1], [], []>} : vector<8x128xbf16>, vector<128x128xbf16>, vector<8x128xf32> -> vector<8x128xf32>
    %23 = arith.negf %22 : vector<8x128xf32>
    %24 = math.exp %23 : vector<8x128xf32>
    %cst_10 = arith.constant 1.000000e+00 : f32
    %25 = vector.broadcast %cst_10 : f32 to vector<8x128xf32>
    %26 = arith.addf %25, %24 : vector<8x128xf32>
    %27 = arith.divf %25, %26 : vector<8x128xf32>
    %28 = math.tanh %22 : vector<8x128xf32>
    %29 = arith.select %9, %28, %27 : vector<8x128xi1>, vector<8x128xf32>
    %c64_i32_11 = arith.constant 64 : i32
    %30 = tpu.dynamic_rotate %29 by %c64_i32_11 dim 1 : vector<8x128xf32>, i32 -> vector<8x128xf32>
    %31 = arith.mulf %29, %30 : vector<8x128xf32>
    %c32_i32_12 = arith.constant 32 : i32
    %32 = tpu.dynamic_rotate %31 by %c32_i32_12 dim 1 : vector<8x128xf32>, i32 -> vector<8x128xf32>
    %33 = arith.mulf %29, %15 : vector<8x128xf32>
    %34 = arith.addf %33, %32 : vector<8x128xf32>
    %35 = math.tanh %34 : vector<8x128xf32>
    %36 = arith.mulf %30, %35 : vector<8x128xf32>
    %c64_i32_13 = arith.constant 64 : i32
    %37 = tpu.dynamic_rotate %36 by %c64_i32_13 dim 1 : vector<8x128xf32>, i32 -> vector<8x128xf32>
    %38 = arith.select %7, %37, %14 : vector<8x128xi1>, vector<8x128xf32>
    %39 = arith.select %2, %15, %38 : vector<8x128xi1>, vector<8x128xf32>
    %c1 = arith.constant 1 : index
    %c0_14 = arith.constant 0 : index
    %c0_15 = arith.constant 0 : index
    %40 = vector.load %arg1[%c1, %c0_14, %c0_15] : memref<4x128x128xbf16, #tpu.memory_space<vmem>>, vector<1x128x128xbf16>
    %41 = vector.shape_cast %40 : vector<1x128x128xbf16> to vector<128x128xbf16>
    %42 = arith.truncf %39 : vector<8x128xf32> to vector<8x128xbf16>
    %cst_16 = arith.constant dense<0.000000e+00> : vector<8x128xf32>
    %43 = tpu.matmul %42, %41, %cst_16 {dimension_numbers = #tpu.dot_dimension_numbers<[1], [0], [0], [1], [0, 0, 1, 1], [], []>} : vector<8x128xbf16>, vector<128x128xbf16>, vector<8x128xf32> -> vector<8x128xf32>
    %44 = arith.negf %43 : vector<8x128xf32>
    %45 = math.exp %44 : vector<8x128xf32>
    %cst_17 = arith.constant 1.000000e+00 : f32
    %46 = vector.broadcast %cst_17 : f32 to vector<8x128xf32>
    %47 = arith.addf %46, %45 : vector<8x128xf32>
    %48 = arith.divf %46, %47 : vector<8x128xf32>
    %49 = math.tanh %43 : vector<8x128xf32>
    %50 = arith.select %9, %49, %48 : vector<8x128xi1>, vector<8x128xf32>
    %c64_i32_18 = arith.constant 64 : i32
    %51 = tpu.dynamic_rotate %50 by %c64_i32_18 dim 1 : vector<8x128xf32>, i32 -> vector<8x128xf32>
    %52 = arith.mulf %50, %51 : vector<8x128xf32>
    %c32_i32_19 = arith.constant 32 : i32
    %53 = tpu.dynamic_rotate %52 by %c32_i32_19 dim 1 : vector<8x128xf32>, i32 -> vector<8x128xf32>
    %54 = arith.mulf %50, %15 : vector<8x128xf32>
    %55 = arith.addf %54, %53 : vector<8x128xf32>
    %56 = math.tanh %55 : vector<8x128xf32>
    %57 = arith.mulf %51, %56 : vector<8x128xf32>
    %c1_20 = arith.constant 1 : index
    %c0_21 = arith.constant 0 : index
    %c0_22 = arith.constant 0 : index
    %58 = vector.load %arg0[%c1_20, %c0_21, %c0_22] : memref<8x8x128xf32, #tpu.memory_space<vmem>>, vector<1x8x128xf32>
    %59 = vector.shape_cast %58 : vector<1x8x128xf32> to vector<8x128xf32>
    %60 = arith.select %2, %36, %59 : vector<8x128xi1>, vector<8x128xf32>
    %c0_23 = arith.constant 0 : index
    %c0_24 = arith.constant 0 : index
    %c0_25 = arith.constant 0 : index
    %61 = vector.load %arg1[%c0_23, %c0_24, %c0_25] : memref<4x128x128xbf16, #tpu.memory_space<vmem>>, vector<1x128x128xbf16>
    %62 = vector.shape_cast %61 : vector<1x128x128xbf16> to vector<128x128xbf16>
    %63 = arith.truncf %60 : vector<8x128xf32> to vector<8x128xbf16>
    %cst_26 = arith.constant dense<0.000000e+00> : vector<8x128xf32>
    %64 = tpu.matmul %63, %62, %cst_26 {dimension_numbers = #tpu.dot_dimension_numbers<[1], [0], [0], [1], [0, 0, 1, 1], [], []>} : vector<8x128xbf16>, vector<128x128xbf16>, vector<8x128xf32> -> vector<8x128xf32>
    %65 = arith.negf %64 : vector<8x128xf32>
    %66 = math.exp %65 : vector<8x128xf32>
    %cst_27 = arith.constant 1.000000e+00 : f32
    %67 = vector.broadcast %cst_27 : f32 to vector<8x128xf32>
    %68 = arith.addf %67, %66 : vector<8x128xf32>
    %69 = arith.divf %67, %68 : vector<8x128xf32>
    %70 = math.tanh %64 : vector<8x128xf32>
    %71 = arith.select %9, %70, %69 : vector<8x128xi1>, vector<8x128xf32>
    %c64_i32_28 = arith.constant 64 : i32
    %72 = tpu.dynamic_rotate %71 by %c64_i32_28 dim 1 : vector<8x128xf32>, i32 -> vector<8x128xf32>
    %73 = arith.mulf %71, %72 : vector<8x128xf32>
    %c32_i32_29 = arith.constant 32 : i32
    %74 = tpu.dynamic_rotate %73 by %c32_i32_29 dim 1 : vector<8x128xf32>, i32 -> vector<8x128xf32>
    %75 = arith.mulf %71, %34 : vector<8x128xf32>
    %76 = arith.addf %75, %74 : vector<8x128xf32>
    %77 = math.tanh %76 : vector<8x128xf32>
    %78 = arith.mulf %72, %77 : vector<8x128xf32>
    %c64_i32_30 = arith.constant 64 : i32
    %79 = tpu.dynamic_rotate %78 by %c64_i32_30 dim 1 : vector<8x128xf32>, i32 -> vector<8x128xf32>
    %80 = arith.select %7, %79, %14 : vector<8x128xi1>, vector<8x128xf32>
    %81 = arith.select %2, %57, %80 : vector<8x128xi1>, vector<8x128xf32>
    %c1_31 = arith.constant 1 : index
    %c0_32 = arith.constant 0 : index
    %c0_33 = arith.constant 0 : index
    %82 = vector.load %arg1[%c1_31, %c0_32, %c0_33] : memref<4x128x128xbf16, #tpu.memory_space<vmem>>, vector<1x128x128xbf16>
    %83 = vector.shape_cast %82 : vector<1x128x128xbf16> to vector<128x128xbf16>
    %84 = arith.truncf %81 : vector<8x128xf32> to vector<8x128xbf16>
    %cst_34 = arith.constant dense<0.000000e+00> : vector<8x128xf32>
    %85 = tpu.matmul %84, %83, %cst_34 {dimension_numbers = #tpu.dot_dimension_numbers<[1], [0], [0], [1], [0, 0, 1, 1], [], []>} : vector<8x128xbf16>, vector<128x128xbf16>, vector<8x128xf32> -> vector<8x128xf32>
    %86 = arith.negf %85 : vector<8x128xf32>
    %87 = math.exp %86 : vector<8x128xf32>
    %cst_35 = arith.constant 1.000000e+00 : f32
    %88 = vector.broadcast %cst_35 : f32 to vector<8x128xf32>
    %89 = arith.addf %88, %87 : vector<8x128xf32>
    %90 = arith.divf %88, %89 : vector<8x128xf32>
    %91 = math.tanh %85 : vector<8x128xf32>
    %92 = arith.select %9, %91, %90 : vector<8x128xi1>, vector<8x128xf32>
    %c64_i32_36 = arith.constant 64 : i32
    %93 = tpu.dynamic_rotate %92 by %c64_i32_36 dim 1 : vector<8x128xf32>, i32 -> vector<8x128xf32>
    %94 = arith.mulf %92, %93 : vector<8x128xf32>
    %c32_i32_37 = arith.constant 32 : i32
    %95 = tpu.dynamic_rotate %94 by %c32_i32_37 dim 1 : vector<8x128xf32>, i32 -> vector<8x128xf32>
    %96 = arith.mulf %92, %55 : vector<8x128xf32>
    %97 = arith.addf %96, %95 : vector<8x128xf32>
    %98 = math.tanh %97 : vector<8x128xf32>
    %99 = arith.mulf %93, %98 : vector<8x128xf32>
    %c2 = arith.constant 2 : index
    %c0_38 = arith.constant 0 : index
    %c0_39 = arith.constant 0 : index
    %100 = vector.load %arg0[%c2, %c0_38, %c0_39] : memref<8x8x128xf32, #tpu.memory_space<vmem>>, vector<1x8x128xf32>
    %101 = vector.shape_cast %100 : vector<1x8x128xf32> to vector<8x128xf32>
    %102 = arith.select %2, %78, %101 : vector<8x128xi1>, vector<8x128xf32>
    %c0_40 = arith.constant 0 : index
    %c0_41 = arith.constant 0 : index
    %c0_42 = arith.constant 0 : index
    %103 = vector.load %arg1[%c0_40, %c0_41, %c0_42] : memref<4x128x128xbf16, #tpu.memory_space<vmem>>, vector<1x128x128xbf16>
    %104 = vector.shape_cast %103 : vector<1x128x128xbf16> to vector<128x128xbf16>
    %105 = arith.truncf %102 : vector<8x128xf32> to vector<8x128xbf16>
    %cst_43 = arith.constant dense<0.000000e+00> : vector<8x128xf32>
    %106 = tpu.matmul %105, %104, %cst_43 {dimension_numbers = #tpu.dot_dimension_numbers<[1], [0], [0], [1], [0, 0, 1, 1], [], []>} : vector<8x128xbf16>, vector<128x128xbf16>, vector<8x128xf32> -> vector<8x128xf32>
    %107 = arith.negf %106 : vector<8x128xf32>
    %108 = math.exp %107 : vector<8x128xf32>
    %cst_44 = arith.constant 1.000000e+00 : f32
    %109 = vector.broadcast %cst_44 : f32 to vector<8x128xf32>
    %110 = arith.addf %109, %108 : vector<8x128xf32>
    %111 = arith.divf %109, %110 : vector<8x128xf32>
    %112 = math.tanh %106 : vector<8x128xf32>
    %113 = arith.select %9, %112, %111 : vector<8x128xi1>, vector<8x128xf32>
    %c64_i32_45 = arith.constant 64 : i32
    %114 = tpu.dynamic_rotate %113 by %c64_i32_45 dim 1 : vector<8x128xf32>, i32 -> vector<8x128xf32>
    %115 = arith.mulf %113, %114 : vector<8x128xf32>
    %c32_i32_46 = arith.constant 32 : i32
    %116 = tpu.dynamic_rotate %115 by %c32_i32_46 dim 1 : vector<8x128xf32>, i32 -> vector<8x128xf32>
    %117 = arith.mulf %113, %76 : vector<8x128xf32>
    %118 = arith.addf %117, %116 : vector<8x128xf32>
    %119 = math.tanh %118 : vector<8x128xf32>
    %120 = arith.mulf %114, %119 : vector<8x128xf32>
    %c64_i32_47 = arith.constant 64 : i32
    %121 = tpu.dynamic_rotate %120 by %c64_i32_47 dim 1 : vector<8x128xf32>, i32 -> vector<8x128xf32>
    %122 = arith.select %7, %121, %14 : vector<8x128xi1>, vector<8x128xf32>
    %123 = arith.select %2, %99, %122 : vector<8x128xi1>, vector<8x128xf32>
    %c1_48 = arith.constant 1 : index
    %c0_49 = arith.constant 0 : index
    %c0_50 = arith.constant 0 : index
    %124 = vector.load %arg1[%c1_48, %c0_49, %c0_50] : memref<4x128x128xbf16, #tpu.memory_space<vmem>>, vector<1x128x128xbf16>
    %125 = vector.shape_cast %124 : vector<1x128x128xbf16> to vector<128x128xbf16>
    %126 = arith.truncf %123 : vector<8x128xf32> to vector<8x128xbf16>
    %cst_51 = arith.constant dense<0.000000e+00> : vector<8x128xf32>
    %127 = tpu.matmul %126, %125, %cst_51 {dimension_numbers = #tpu.dot_dimension_numbers<[1], [0], [0], [1], [0, 0, 1, 1], [], []>} : vector<8x128xbf16>, vector<128x128xbf16>, vector<8x128xf32> -> vector<8x128xf32>
    %128 = arith.negf %127 : vector<8x128xf32>
    %129 = math.exp %128 : vector<8x128xf32>
    %cst_52 = arith.constant 1.000000e+00 : f32
    %130 = vector.broadcast %cst_52 : f32 to vector<8x128xf32>
    %131 = arith.addf %130, %129 : vector<8x128xf32>
    %132 = arith.divf %130, %131 : vector<8x128xf32>
    %133 = math.tanh %127 : vector<8x128xf32>
    %134 = arith.select %9, %133, %132 : vector<8x128xi1>, vector<8x128xf32>
    %c64_i32_53 = arith.constant 64 : i32
    %135 = tpu.dynamic_rotate %134 by %c64_i32_53 dim 1 : vector<8x128xf32>, i32 -> vector<8x128xf32>
    %136 = arith.mulf %134, %135 : vector<8x128xf32>
    %c32_i32_54 = arith.constant 32 : i32
    %137 = tpu.dynamic_rotate %136 by %c32_i32_54 dim 1 : vector<8x128xf32>, i32 -> vector<8x128xf32>
    %138 = arith.mulf %134, %97 : vector<8x128xf32>
    %139 = arith.addf %138, %137 : vector<8x128xf32>
    %140 = math.tanh %139 : vector<8x128xf32>
    %141 = arith.mulf %135, %140 : vector<8x128xf32>
    %c3 = arith.constant 3 : index
    %c0_55 = arith.constant 0 : index
    %c0_56 = arith.constant 0 : index
    %142 = vector.load %arg0[%c3, %c0_55, %c0_56] : memref<8x8x128xf32, #tpu.memory_space<vmem>>, vector<1x8x128xf32>
    %143 = vector.shape_cast %142 : vector<1x8x128xf32> to vector<8x128xf32>
    %144 = arith.select %2, %120, %143 : vector<8x128xi1>, vector<8x128xf32>
    %c0_57 = arith.constant 0 : index
    %c0_58 = arith.constant 0 : index
    %c0_59 = arith.constant 0 : index
    %145 = vector.load %arg1[%c0_57, %c0_58, %c0_59] : memref<4x128x128xbf16, #tpu.memory_space<vmem>>, vector<1x128x128xbf16>
    %146 = vector.shape_cast %145 : vector<1x128x128xbf16> to vector<128x128xbf16>
    %147 = arith.truncf %144 : vector<8x128xf32> to vector<8x128xbf16>
    %cst_60 = arith.constant dense<0.000000e+00> : vector<8x128xf32>
    %148 = tpu.matmul %147, %146, %cst_60 {dimension_numbers = #tpu.dot_dimension_numbers<[1], [0], [0], [1], [0, 0, 1, 1], [], []>} : vector<8x128xbf16>, vector<128x128xbf16>, vector<8x128xf32> -> vector<8x128xf32>
    %149 = arith.negf %148 : vector<8x128xf32>
    %150 = math.exp %149 : vector<8x128xf32>
    %cst_61 = arith.constant 1.000000e+00 : f32
    %151 = vector.broadcast %cst_61 : f32 to vector<8x128xf32>
    %152 = arith.addf %151, %150 : vector<8x128xf32>
    %153 = arith.divf %151, %152 : vector<8x128xf32>
    %154 = math.tanh %148 : vector<8x128xf32>
    %155 = arith.select %9, %154, %153 : vector<8x128xi1>, vector<8x128xf32>
    %c64_i32_62 = arith.constant 64 : i32
    %156 = tpu.dynamic_rotate %155 by %c64_i32_62 dim 1 : vector<8x128xf32>, i32 -> vector<8x128xf32>
    %157 = arith.mulf %155, %156 : vector<8x128xf32>
    %c32_i32_63 = arith.constant 32 : i32
    %158 = tpu.dynamic_rotate %157 by %c32_i32_63 dim 1 : vector<8x128xf32>, i32 -> vector<8x128xf32>
    %159 = arith.mulf %155, %118 : vector<8x128xf32>
    %160 = arith.addf %159, %158 : vector<8x128xf32>
    %161 = math.tanh %160 : vector<8x128xf32>
    %162 = arith.mulf %156, %161 : vector<8x128xf32>
    %c64_i32_64 = arith.constant 64 : i32
    %163 = tpu.dynamic_rotate %162 by %c64_i32_64 dim 1 : vector<8x128xf32>, i32 -> vector<8x128xf32>
    %164 = arith.select %7, %163, %14 : vector<8x128xi1>, vector<8x128xf32>
    %165 = arith.select %2, %141, %164 : vector<8x128xi1>, vector<8x128xf32>
    %c1_65 = arith.constant 1 : index
    %c0_66 = arith.constant 0 : index
    %c0_67 = arith.constant 0 : index
    %166 = vector.load %arg1[%c1_65, %c0_66, %c0_67] : memref<4x128x128xbf16, #tpu.memory_space<vmem>>, vector<1x128x128xbf16>
    %167 = vector.shape_cast %166 : vector<1x128x128xbf16> to vector<128x128xbf16>
    %168 = arith.truncf %165 : vector<8x128xf32> to vector<8x128xbf16>
    %cst_68 = arith.constant dense<0.000000e+00> : vector<8x128xf32>
    %169 = tpu.matmul %168, %167, %cst_68 {dimension_numbers = #tpu.dot_dimension_numbers<[1], [0], [0], [1], [0, 0, 1, 1], [], []>} : vector<8x128xbf16>, vector<128x128xbf16>, vector<8x128xf32> -> vector<8x128xf32>
    %170 = arith.negf %169 : vector<8x128xf32>
    %171 = math.exp %170 : vector<8x128xf32>
    %cst_69 = arith.constant 1.000000e+00 : f32
    %172 = vector.broadcast %cst_69 : f32 to vector<8x128xf32>
    %173 = arith.addf %172, %171 : vector<8x128xf32>
    %174 = arith.divf %172, %173 : vector<8x128xf32>
    %175 = math.tanh %169 : vector<8x128xf32>
    %176 = arith.select %9, %175, %174 : vector<8x128xi1>, vector<8x128xf32>
    %c64_i32_70 = arith.constant 64 : i32
    %177 = tpu.dynamic_rotate %176 by %c64_i32_70 dim 1 : vector<8x128xf32>, i32 -> vector<8x128xf32>
    %178 = arith.mulf %176, %177 : vector<8x128xf32>
    %c32_i32_71 = arith.constant 32 : i32
    %179 = tpu.dynamic_rotate %178 by %c32_i32_71 dim 1 : vector<8x128xf32>, i32 -> vector<8x128xf32>
    %180 = arith.mulf %176, %139 : vector<8x128xf32>
    %181 = arith.addf %180, %179 : vector<8x128xf32>
    %182 = math.tanh %181 : vector<8x128xf32>
    %183 = arith.mulf %177, %182 : vector<8x128xf32>
    %c4 = arith.constant 4 : index
    %c0_72 = arith.constant 0 : index
    %c0_73 = arith.constant 0 : index
    %184 = vector.load %arg0[%c4, %c0_72, %c0_73] : memref<8x8x128xf32, #tpu.memory_space<vmem>>, vector<1x8x128xf32>
    %185 = vector.shape_cast %184 : vector<1x8x128xf32> to vector<8x128xf32>
    %186 = arith.select %2, %162, %185 : vector<8x128xi1>, vector<8x128xf32>
    %c0_74 = arith.constant 0 : index
    %c0_75 = arith.constant 0 : index
    %c0_76 = arith.constant 0 : index
    %187 = vector.load %arg1[%c0_74, %c0_75, %c0_76] : memref<4x128x128xbf16, #tpu.memory_space<vmem>>, vector<1x128x128xbf16>
    %188 = vector.shape_cast %187 : vector<1x128x128xbf16> to vector<128x128xbf16>
    %189 = arith.truncf %186 : vector<8x128xf32> to vector<8x128xbf16>
    %cst_77 = arith.constant dense<0.000000e+00> : vector<8x128xf32>
    %190 = tpu.matmul %189, %188, %cst_77 {dimension_numbers = #tpu.dot_dimension_numbers<[1], [0], [0], [1], [0, 0, 1, 1], [], []>} : vector<8x128xbf16>, vector<128x128xbf16>, vector<8x128xf32> -> vector<8x128xf32>
    %191 = arith.negf %190 : vector<8x128xf32>
    %192 = math.exp %191 : vector<8x128xf32>
    %cst_78 = arith.constant 1.000000e+00 : f32
    %193 = vector.broadcast %cst_78 : f32 to vector<8x128xf32>
    %194 = arith.addf %193, %192 : vector<8x128xf32>
    %195 = arith.divf %193, %194 : vector<8x128xf32>
    %196 = math.tanh %190 : vector<8x128xf32>
    %197 = arith.select %9, %196, %195 : vector<8x128xi1>, vector<8x128xf32>
    %c64_i32_79 = arith.constant 64 : i32
    %198 = tpu.dynamic_rotate %197 by %c64_i32_79 dim 1 : vector<8x128xf32>, i32 -> vector<8x128xf32>
    %199 = arith.mulf %197, %198 : vector<8x128xf32>
    %c32_i32_80 = arith.constant 32 : i32
    %200 = tpu.dynamic_rotate %199 by %c32_i32_80 dim 1 : vector<8x128xf32>, i32 -> vector<8x128xf32>
    %201 = arith.mulf %197, %160 : vector<8x128xf32>
    %202 = arith.addf %201, %200 : vector<8x128xf32>
    %203 = math.tanh %202 : vector<8x128xf32>
    %204 = arith.mulf %198, %203 : vector<8x128xf32>
    %c64_i32_81 = arith.constant 64 : i32
    %205 = tpu.dynamic_rotate %204 by %c64_i32_81 dim 1 : vector<8x128xf32>, i32 -> vector<8x128xf32>
    %206 = arith.select %7, %205, %14 : vector<8x128xi1>, vector<8x128xf32>
    %207 = arith.select %2, %183, %206 : vector<8x128xi1>, vector<8x128xf32>
    %c1_82 = arith.constant 1 : index
    %c0_83 = arith.constant 0 : index
    %c0_84 = arith.constant 0 : index
    %208 = vector.load %arg1[%c1_82, %c0_83, %c0_84] : memref<4x128x128xbf16, #tpu.memory_space<vmem>>, vector<1x128x128xbf16>
    %209 = vector.shape_cast %208 : vector<1x128x128xbf16> to vector<128x128xbf16>
    %210 = arith.truncf %207 : vector<8x128xf32> to vector<8x128xbf16>
    %cst_85 = arith.constant dense<0.000000e+00> : vector<8x128xf32>
    %211 = tpu.matmul %210, %209, %cst_85 {dimension_numbers = #tpu.dot_dimension_numbers<[1], [0], [0], [1], [0, 0, 1, 1], [], []>} : vector<8x128xbf16>, vector<128x128xbf16>, vector<8x128xf32> -> vector<8x128xf32>
    %212 = arith.negf %211 : vector<8x128xf32>
    %213 = math.exp %212 : vector<8x128xf32>
    %cst_86 = arith.constant 1.000000e+00 : f32
    %214 = vector.broadcast %cst_86 : f32 to vector<8x128xf32>
    %215 = arith.addf %214, %213 : vector<8x128xf32>
    %216 = arith.divf %214, %215 : vector<8x128xf32>
    %217 = math.tanh %211 : vector<8x128xf32>
    %218 = arith.select %9, %217, %216 : vector<8x128xi1>, vector<8x128xf32>
    %c64_i32_87 = arith.constant 64 : i32
    %219 = tpu.dynamic_rotate %218 by %c64_i32_87 dim 1 : vector<8x128xf32>, i32 -> vector<8x128xf32>
    %220 = arith.mulf %218, %219 : vector<8x128xf32>
    %c32_i32_88 = arith.constant 32 : i32
    %221 = tpu.dynamic_rotate %220 by %c32_i32_88 dim 1 : vector<8x128xf32>, i32 -> vector<8x128xf32>
    %222 = arith.mulf %218, %181 : vector<8x128xf32>
    %223 = arith.addf %222, %221 : vector<8x128xf32>
    %224 = math.tanh %223 : vector<8x128xf32>
    %225 = arith.mulf %219, %224 : vector<8x128xf32>
    %c5 = arith.constant 5 : index
    %c0_89 = arith.constant 0 : index
    %c0_90 = arith.constant 0 : index
    %226 = vector.load %arg0[%c5, %c0_89, %c0_90] : memref<8x8x128xf32, #tpu.memory_space<vmem>>, vector<1x8x128xf32>
    %227 = vector.shape_cast %226 : vector<1x8x128xf32> to vector<8x128xf32>
    %228 = arith.select %2, %204, %227 : vector<8x128xi1>, vector<8x128xf32>
    %c0_91 = arith.constant 0 : index
    %c0_92 = arith.constant 0 : index
    %c0_93 = arith.constant 0 : index
    %229 = vector.load %arg1[%c0_91, %c0_92, %c0_93] : memref<4x128x128xbf16, #tpu.memory_space<vmem>>, vector<1x128x128xbf16>
    %230 = vector.shape_cast %229 : vector<1x128x128xbf16> to vector<128x128xbf16>
    %231 = arith.truncf %228 : vector<8x128xf32> to vector<8x128xbf16>
    %cst_94 = arith.constant dense<0.000000e+00> : vector<8x128xf32>
    %232 = tpu.matmul %231, %230, %cst_94 {dimension_numbers = #tpu.dot_dimension_numbers<[1], [0], [0], [1], [0, 0, 1, 1], [], []>} : vector<8x128xbf16>, vector<128x128xbf16>, vector<8x128xf32> -> vector<8x128xf32>
    %233 = arith.negf %232 : vector<8x128xf32>
    %234 = math.exp %233 : vector<8x128xf32>
    %cst_95 = arith.constant 1.000000e+00 : f32
    %235 = vector.broadcast %cst_95 : f32 to vector<8x128xf32>
    %236 = arith.addf %235, %234 : vector<8x128xf32>
    %237 = arith.divf %235, %236 : vector<8x128xf32>
    %238 = math.tanh %232 : vector<8x128xf32>
    %239 = arith.select %9, %238, %237 : vector<8x128xi1>, vector<8x128xf32>
    %c64_i32_96 = arith.constant 64 : i32
    %240 = tpu.dynamic_rotate %239 by %c64_i32_96 dim 1 : vector<8x128xf32>, i32 -> vector<8x128xf32>
    %241 = arith.mulf %239, %240 : vector<8x128xf32>
    %c32_i32_97 = arith.constant 32 : i32
    %242 = tpu.dynamic_rotate %241 by %c32_i32_97 dim 1 : vector<8x128xf32>, i32 -> vector<8x128xf32>
    %243 = arith.mulf %239, %202 : vector<8x128xf32>
    %244 = arith.addf %243, %242 : vector<8x128xf32>
    %245 = math.tanh %244 : vector<8x128xf32>
    %246 = arith.mulf %240, %245 : vector<8x128xf32>
    %c64_i32_98 = arith.constant 64 : i32
    %247 = tpu.dynamic_rotate %246 by %c64_i32_98 dim 1 : vector<8x128xf32>, i32 -> vector<8x128xf32>
    %248 = arith.select %7, %247, %14 : vector<8x128xi1>, vector<8x128xf32>
    %249 = arith.select %2, %225, %248 : vector<8x128xi1>, vector<8x128xf32>
    %c1_99 = arith.constant 1 : index
    %c0_100 = arith.constant 0 : index
    %c0_101 = arith.constant 0 : index
    %250 = vector.load %arg1[%c1_99, %c0_100, %c0_101] : memref<4x128x128xbf16, #tpu.memory_space<vmem>>, vector<1x128x128xbf16>
    %251 = vector.shape_cast %250 : vector<1x128x128xbf16> to vector<128x128xbf16>
    %252 = arith.truncf %249 : vector<8x128xf32> to vector<8x128xbf16>
    %cst_102 = arith.constant dense<0.000000e+00> : vector<8x128xf32>
    %253 = tpu.matmul %252, %251, %cst_102 {dimension_numbers = #tpu.dot_dimension_numbers<[1], [0], [0], [1], [0, 0, 1, 1], [], []>} : vector<8x128xbf16>, vector<128x128xbf16>, vector<8x128xf32> -> vector<8x128xf32>
    %254 = arith.negf %253 : vector<8x128xf32>
    %255 = math.exp %254 : vector<8x128xf32>
    %cst_103 = arith.constant 1.000000e+00 : f32
    %256 = vector.broadcast %cst_103 : f32 to vector<8x128xf32>
    %257 = arith.addf %256, %255 : vector<8x128xf32>
    %258 = arith.divf %256, %257 : vector<8x128xf32>
    %259 = math.tanh %253 : vector<8x128xf32>
    %260 = arith.select %9, %259, %258 : vector<8x128xi1>, vector<8x128xf32>
    %c64_i32_104 = arith.constant 64 : i32
    %261 = tpu.dynamic_rotate %260 by %c64_i32_104 dim 1 : vector<8x128xf32>, i32 -> vector<8x128xf32>
    %262 = arith.mulf %260, %261 : vector<8x128xf32>
    %c32_i32_105 = arith.constant 32 : i32
    %263 = tpu.dynamic_rotate %262 by %c32_i32_105 dim 1 : vector<8x128xf32>, i32 -> vector<8x128xf32>
    %264 = arith.mulf %260, %223 : vector<8x128xf32>
    %265 = arith.addf %264, %263 : vector<8x128xf32>
    %266 = math.tanh %265 : vector<8x128xf32>
    %267 = arith.mulf %261, %266 : vector<8x128xf32>
    %c6 = arith.constant 6 : index
    %c0_106 = arith.constant 0 : index
    %c0_107 = arith.constant 0 : index
    %268 = vector.load %arg0[%c6, %c0_106, %c0_107] : memref<8x8x128xf32, #tpu.memory_space<vmem>>, vector<1x8x128xf32>
    %269 = vector.shape_cast %268 : vector<1x8x128xf32> to vector<8x128xf32>
    %270 = arith.select %2, %246, %269 : vector<8x128xi1>, vector<8x128xf32>
    %c0_108 = arith.constant 0 : index
    %c0_109 = arith.constant 0 : index
    %c0_110 = arith.constant 0 : index
    %271 = vector.load %arg1[%c0_108, %c0_109, %c0_110] : memref<4x128x128xbf16, #tpu.memory_space<vmem>>, vector<1x128x128xbf16>
    %272 = vector.shape_cast %271 : vector<1x128x128xbf16> to vector<128x128xbf16>
    %273 = arith.truncf %270 : vector<8x128xf32> to vector<8x128xbf16>
    %cst_111 = arith.constant dense<0.000000e+00> : vector<8x128xf32>
    %274 = tpu.matmul %273, %272, %cst_111 {dimension_numbers = #tpu.dot_dimension_numbers<[1], [0], [0], [1], [0, 0, 1, 1], [], []>} : vector<8x128xbf16>, vector<128x128xbf16>, vector<8x128xf32> -> vector<8x128xf32>
    %275 = arith.negf %274 : vector<8x128xf32>
    %276 = math.exp %275 : vector<8x128xf32>
    %cst_112 = arith.constant 1.000000e+00 : f32
    %277 = vector.broadcast %cst_112 : f32 to vector<8x128xf32>
    %278 = arith.addf %277, %276 : vector<8x128xf32>
    %279 = arith.divf %277, %278 : vector<8x128xf32>
    %280 = math.tanh %274 : vector<8x128xf32>
    %281 = arith.select %9, %280, %279 : vector<8x128xi1>, vector<8x128xf32>
    %c64_i32_113 = arith.constant 64 : i32
    %282 = tpu.dynamic_rotate %281 by %c64_i32_113 dim 1 : vector<8x128xf32>, i32 -> vector<8x128xf32>
    %283 = arith.mulf %281, %282 : vector<8x128xf32>
    %c32_i32_114 = arith.constant 32 : i32
    %284 = tpu.dynamic_rotate %283 by %c32_i32_114 dim 1 : vector<8x128xf32>, i32 -> vector<8x128xf32>
    %285 = arith.mulf %281, %244 : vector<8x128xf32>
    %286 = arith.addf %285, %284 : vector<8x128xf32>
    %287 = math.tanh %286 : vector<8x128xf32>
    %288 = arith.mulf %282, %287 : vector<8x128xf32>
    %c64_i32_115 = arith.constant 64 : i32
    %289 = tpu.dynamic_rotate %288 by %c64_i32_115 dim 1 : vector<8x128xf32>, i32 -> vector<8x128xf32>
    %290 = arith.select %7, %289, %14 : vector<8x128xi1>, vector<8x128xf32>
    %291 = arith.select %2, %267, %290 : vector<8x128xi1>, vector<8x128xf32>
    %c1_116 = arith.constant 1 : index
    %c0_117 = arith.constant 0 : index
    %c0_118 = arith.constant 0 : index
    %292 = vector.load %arg1[%c1_116, %c0_117, %c0_118] : memref<4x128x128xbf16, #tpu.memory_space<vmem>>, vector<1x128x128xbf16>
    %293 = vector.shape_cast %292 : vector<1x128x128xbf16> to vector<128x128xbf16>
    %294 = arith.truncf %291 : vector<8x128xf32> to vector<8x128xbf16>
    %cst_119 = arith.constant dense<0.000000e+00> : vector<8x128xf32>
    %295 = tpu.matmul %294, %293, %cst_119 {dimension_numbers = #tpu.dot_dimension_numbers<[1], [0], [0], [1], [0, 0, 1, 1], [], []>} : vector<8x128xbf16>, vector<128x128xbf16>, vector<8x128xf32> -> vector<8x128xf32>
    %296 = arith.negf %295 : vector<8x128xf32>
    %297 = math.exp %296 : vector<8x128xf32>
    %cst_120 = arith.constant 1.000000e+00 : f32
    %298 = vector.broadcast %cst_120 : f32 to vector<8x128xf32>
    %299 = arith.addf %298, %297 : vector<8x128xf32>
    %300 = arith.divf %298, %299 : vector<8x128xf32>
    %301 = math.tanh %295 : vector<8x128xf32>
    %302 = arith.select %9, %301, %300 : vector<8x128xi1>, vector<8x128xf32>
    %c64_i32_121 = arith.constant 64 : i32
    %303 = tpu.dynamic_rotate %302 by %c64_i32_121 dim 1 : vector<8x128xf32>, i32 -> vector<8x128xf32>
    %304 = arith.mulf %302, %303 : vector<8x128xf32>
    %c32_i32_122 = arith.constant 32 : i32
    %305 = tpu.dynamic_rotate %304 by %c32_i32_122 dim 1 : vector<8x128xf32>, i32 -> vector<8x128xf32>
    %306 = arith.mulf %302, %265 : vector<8x128xf32>
    %307 = arith.addf %306, %305 : vector<8x128xf32>
    %308 = math.tanh %307 : vector<8x128xf32>
    %309 = arith.mulf %303, %308 : vector<8x128xf32>
    %c7 = arith.constant 7 : index
    %c0_123 = arith.constant 0 : index
    %c0_124 = arith.constant 0 : index
    %310 = vector.load %arg0[%c7, %c0_123, %c0_124] : memref<8x8x128xf32, #tpu.memory_space<vmem>>, vector<1x8x128xf32>
    %311 = vector.shape_cast %310 : vector<1x8x128xf32> to vector<8x128xf32>
    %312 = arith.select %2, %288, %311 : vector<8x128xi1>, vector<8x128xf32>
    %c0_125 = arith.constant 0 : index
    %c0_126 = arith.constant 0 : index
    %c0_127 = arith.constant 0 : index
    %313 = vector.load %arg1[%c0_125, %c0_126, %c0_127] : memref<4x128x128xbf16, #tpu.memory_space<vmem>>, vector<1x128x128xbf16>
    %314 = vector.shape_cast %313 : vector<1x128x128xbf16> to vector<128x128xbf16>
    %315 = arith.truncf %312 : vector<8x128xf32> to vector<8x128xbf16>
    %cst_128 = arith.constant dense<0.000000e+00> : vector<8x128xf32>
    %316 = tpu.matmul %315, %314, %cst_128 {dimension_numbers = #tpu.dot_dimension_numbers<[1], [0], [0], [1], [0, 0, 1, 1], [], []>} : vector<8x128xbf16>, vector<128x128xbf16>, vector<8x128xf32> -> vector<8x128xf32>
    %317 = arith.negf %316 : vector<8x128xf32>
    %318 = math.exp %317 : vector<8x128xf32>
    %cst_129 = arith.constant 1.000000e+00 : f32
    %319 = vector.broadcast %cst_129 : f32 to vector<8x128xf32>
    %320 = arith.addf %319, %318 : vector<8x128xf32>
    %321 = arith.divf %319, %320 : vector<8x128xf32>
    %322 = math.tanh %316 : vector<8x128xf32>
    %323 = arith.select %9, %322, %321 : vector<8x128xi1>, vector<8x128xf32>
    %c64_i32_130 = arith.constant 64 : i32
    %324 = tpu.dynamic_rotate %323 by %c64_i32_130 dim 1 : vector<8x128xf32>, i32 -> vector<8x128xf32>
    %325 = arith.mulf %323, %324 : vector<8x128xf32>
    %c32_i32_131 = arith.constant 32 : i32
    %326 = tpu.dynamic_rotate %325 by %c32_i32_131 dim 1 : vector<8x128xf32>, i32 -> vector<8x128xf32>
    %327 = arith.mulf %323, %286 : vector<8x128xf32>
    %328 = arith.addf %327, %326 : vector<8x128xf32>
    %329 = math.tanh %328 : vector<8x128xf32>
    %330 = arith.mulf %324, %329 : vector<8x128xf32>
    %c64_i32_132 = arith.constant 64 : i32
    %331 = tpu.dynamic_rotate %330 by %c64_i32_132 dim 1 : vector<8x128xf32>, i32 -> vector<8x128xf32>
    %332 = arith.select %7, %331, %14 : vector<8x128xi1>, vector<8x128xf32>
    %333 = arith.select %2, %309, %332 : vector<8x128xi1>, vector<8x128xf32>
    %c1_133 = arith.constant 1 : index
    %c0_134 = arith.constant 0 : index
    %c0_135 = arith.constant 0 : index
    %334 = vector.load %arg1[%c1_133, %c0_134, %c0_135] : memref<4x128x128xbf16, #tpu.memory_space<vmem>>, vector<1x128x128xbf16>
    %335 = vector.shape_cast %334 : vector<1x128x128xbf16> to vector<128x128xbf16>
    %336 = arith.truncf %333 : vector<8x128xf32> to vector<8x128xbf16>
    %cst_136 = arith.constant dense<0.000000e+00> : vector<8x128xf32>
    %337 = tpu.matmul %336, %335, %cst_136 {dimension_numbers = #tpu.dot_dimension_numbers<[1], [0], [0], [1], [0, 0, 1, 1], [], []>} : vector<8x128xbf16>, vector<128x128xbf16>, vector<8x128xf32> -> vector<8x128xf32>
    %338 = arith.negf %337 : vector<8x128xf32>
    %339 = math.exp %338 : vector<8x128xf32>
    %cst_137 = arith.constant 1.000000e+00 : f32
    %340 = vector.broadcast %cst_137 : f32 to vector<8x128xf32>
    %341 = arith.addf %340, %339 : vector<8x128xf32>
    %342 = arith.divf %340, %341 : vector<8x128xf32>
    %343 = math.tanh %337 : vector<8x128xf32>
    %344 = arith.select %9, %343, %342 : vector<8x128xi1>, vector<8x128xf32>
    %c64_i32_138 = arith.constant 64 : i32
    %345 = tpu.dynamic_rotate %344 by %c64_i32_138 dim 1 : vector<8x128xf32>, i32 -> vector<8x128xf32>
    %346 = arith.mulf %344, %345 : vector<8x128xf32>
    %c32_i32_139 = arith.constant 32 : i32
    %347 = tpu.dynamic_rotate %346 by %c32_i32_139 dim 1 : vector<8x128xf32>, i32 -> vector<8x128xf32>
    %348 = arith.mulf %344, %307 : vector<8x128xf32>
    %349 = arith.addf %348, %347 : vector<8x128xf32>
    %350 = math.tanh %349 : vector<8x128xf32>
    %351 = arith.mulf %345, %350 : vector<8x128xf32>
    %c64_i32_140 = arith.constant 64 : i32
    %352 = tpu.dynamic_rotate %351 by %c64_i32_140 dim 1 : vector<8x128xf32>, i32 -> vector<8x128xf32>
    %353 = arith.select %7, %352, %14 : vector<8x128xi1>, vector<8x128xf32>
    %354 = arith.select %2, %330, %353 : vector<8x128xi1>, vector<8x128xf32>
    %c2_141 = arith.constant 2 : index
    %c0_142 = arith.constant 0 : index
    %c0_143 = arith.constant 0 : index
    %355 = vector.load %arg1[%c2_141, %c0_142, %c0_143] : memref<4x128x128xbf16, #tpu.memory_space<vmem>>, vector<1x128x128xbf16>
    %356 = vector.shape_cast %355 : vector<1x128x128xbf16> to vector<128x128xbf16>
    %357 = arith.truncf %354 : vector<8x128xf32> to vector<8x128xbf16>
    %cst_144 = arith.constant dense<0.000000e+00> : vector<8x128xf32>
    %358 = tpu.matmul %357, %356, %cst_144 {dimension_numbers = #tpu.dot_dimension_numbers<[1], [0], [0], [1], [0, 0, 1, 1], [], []>} : vector<8x128xbf16>, vector<128x128xbf16>, vector<8x128xf32> -> vector<8x128xf32>
    %359 = arith.negf %358 : vector<8x128xf32>
    %360 = math.exp %359 : vector<8x128xf32>
    %cst_145 = arith.constant 1.000000e+00 : f32
    %361 = vector.broadcast %cst_145 : f32 to vector<8x128xf32>
    %362 = arith.addf %361, %360 : vector<8x128xf32>
    %363 = arith.divf %361, %362 : vector<8x128xf32>
    %364 = math.tanh %358 : vector<8x128xf32>
    %365 = arith.select %9, %364, %363 : vector<8x128xi1>, vector<8x128xf32>
    %c64_i32_146 = arith.constant 64 : i32
    %366 = tpu.dynamic_rotate %365 by %c64_i32_146 dim 1 : vector<8x128xf32>, i32 -> vector<8x128xf32>
    %367 = arith.mulf %365, %366 : vector<8x128xf32>
    %c32_i32_147 = arith.constant 32 : i32
    %368 = tpu.dynamic_rotate %367 by %c32_i32_147 dim 1 : vector<8x128xf32>, i32 -> vector<8x128xf32>
    %369 = arith.mulf %365, %328 : vector<8x128xf32>
    %370 = arith.addf %369, %368 : vector<8x128xf32>
    %371 = math.tanh %370 : vector<8x128xf32>
    %372 = arith.mulf %366, %371 : vector<8x128xf32>
    %c64_i32_148 = arith.constant 64 : i32
    %373 = tpu.dynamic_rotate %372 by %c64_i32_148 dim 1 : vector<8x128xf32>, i32 -> vector<8x128xf32>
    %374 = arith.select %7, %373, %14 : vector<8x128xi1>, vector<8x128xf32>
    %375 = arith.select %2, %351, %374 : vector<8x128xi1>, vector<8x128xf32>
    %c3_149 = arith.constant 3 : index
    %c0_150 = arith.constant 0 : index
    %c0_151 = arith.constant 0 : index
    %376 = vector.load %arg1[%c3_149, %c0_150, %c0_151] : memref<4x128x128xbf16, #tpu.memory_space<vmem>>, vector<1x128x128xbf16>
    %377 = vector.shape_cast %376 : vector<1x128x128xbf16> to vector<128x128xbf16>
    %378 = arith.truncf %375 : vector<8x128xf32> to vector<8x128xbf16>
    %cst_152 = arith.constant dense<0.000000e+00> : vector<8x128xf32>
    %379 = tpu.matmul %378, %377, %cst_152 {dimension_numbers = #tpu.dot_dimension_numbers<[1], [0], [0], [1], [0, 0, 1, 1], [], []>} : vector<8x128xbf16>, vector<128x128xbf16>, vector<8x128xf32> -> vector<8x128xf32>
    %380 = arith.negf %379 : vector<8x128xf32>
    %381 = math.exp %380 : vector<8x128xf32>
    %cst_153 = arith.constant 1.000000e+00 : f32
    %382 = vector.broadcast %cst_153 : f32 to vector<8x128xf32>
    %383 = arith.addf %382, %381 : vector<8x128xf32>
    %384 = arith.divf %382, %383 : vector<8x128xf32>
    %385 = math.tanh %379 : vector<8x128xf32>
    %386 = arith.select %9, %385, %384 : vector<8x128xi1>, vector<8x128xf32>
    %c64_i32_154 = arith.constant 64 : i32
    %387 = tpu.dynamic_rotate %386 by %c64_i32_154 dim 1 : vector<8x128xf32>, i32 -> vector<8x128xf32>
    %388 = arith.mulf %386, %387 : vector<8x128xf32>
    %c32_i32_155 = arith.constant 32 : i32
    %389 = tpu.dynamic_rotate %388 by %c32_i32_155 dim 1 : vector<8x128xf32>, i32 -> vector<8x128xf32>
    %390 = arith.mulf %386, %349 : vector<8x128xf32>
    %391 = arith.addf %390, %389 : vector<8x128xf32>
    %392 = math.tanh %391 : vector<8x128xf32>
    %393 = arith.mulf %387, %392 : vector<8x128xf32>
    %c0_156 = arith.constant 0 : index
    %c0_157 = arith.constant 0 : index
    %394 = vector.load %arg4[%c0_156, %c0_157] : memref<48x128xf32, #tpu.memory_space<vmem>>, vector<8x128xf32>
    tpu.vector_store %arg4[%c0_156, %c0_157], %393 {strides = array<i32>} : memref<48x128xf32, #tpu.memory_space<vmem>>, vector<8x128xf32>,
    %c64_i32_158 = arith.constant 64 : i32
    %395 = tpu.dynamic_rotate %393 by %c64_i32_158 dim 1 : vector<8x128xf32>, i32 -> vector<8x128xf32>
    %396 = arith.select %7, %395, %14 : vector<8x128xi1>, vector<8x128xf32>
    %397 = arith.select %2, %372, %396 : vector<8x128xi1>, vector<8x128xf32>
    %c2_159 = arith.constant 2 : index
    %c0_160 = arith.constant 0 : index
    %c0_161 = arith.constant 0 : index
    %398 = vector.load %arg1[%c2_159, %c0_160, %c0_161] : memref<4x128x128xbf16, #tpu.memory_space<vmem>>, vector<1x128x128xbf16>
    %399 = vector.shape_cast %398 : vector<1x128x128xbf16> to vector<128x128xbf16>
    %400 = arith.truncf %397 : vector<8x128xf32> to vector<8x128xbf16>
    %cst_162 = arith.constant dense<0.000000e+00> : vector<8x128xf32>
    %401 = tpu.matmul %400, %399, %cst_162 {dimension_numbers = #tpu.dot_dimension_numbers<[1], [0], [0], [1], [0, 0, 1, 1], [], []>} : vector<8x128xbf16>, vector<128x128xbf16>, vector<8x128xf32> -> vector<8x128xf32>
    %402 = arith.negf %401 : vector<8x128xf32>
    %403 = math.exp %402 : vector<8x128xf32>
    %cst_163 = arith.constant 1.000000e+00 : f32
    %404 = vector.broadcast %cst_163 : f32 to vector<8x128xf32>
    %405 = arith.addf %404, %403 : vector<8x128xf32>
    %406 = arith.divf %404, %405 : vector<8x128xf32>
    %407 = math.tanh %401 : vector<8x128xf32>
    %408 = arith.select %9, %407, %406 : vector<8x128xi1>, vector<8x128xf32>
    %c64_i32_164 = arith.constant 64 : i32
    %409 = tpu.dynamic_rotate %408 by %c64_i32_164 dim 1 : vector<8x128xf32>, i32 -> vector<8x128xf32>
    %410 = arith.mulf %408, %409 : vector<8x128xf32>
    %c32_i32_165 = arith.constant 32 : i32
    %411 = tpu.dynamic_rotate %410 by %c32_i32_165 dim 1 : vector<8x128xf32>, i32 -> vector<8x128xf32>
    %412 = arith.mulf %408, %370 : vector<8x128xf32>
    %413 = arith.addf %412, %411 : vector<8x128xf32>
    %414 = math.tanh %413 : vector<8x128xf32>
    %415 = arith.mulf %409, %414 : vector<8x128xf32>
    %c64_i32_166 = arith.constant 64 : i32
    %416 = tpu.dynamic_rotate %415 by %c64_i32_166 dim 1 : vector<8x128xf32>, i32 -> vector<8x128xf32>
    %417 = arith.select %7, %416, %14 : vector<8x128xi1>, vector<8x128xf32>
    %418 = arith.select %2, %393, %417 : vector<8x128xi1>, vector<8x128xf32>
    %c3_167 = arith.constant 3 : index
    %c0_168 = arith.constant 0 : index
    %c0_169 = arith.constant 0 : index
    %419 = vector.load %arg1[%c3_167, %c0_168, %c0_169] : memref<4x128x128xbf16, #tpu.memory_space<vmem>>, vector<1x128x128xbf16>
    %420 = vector.shape_cast %419 : vector<1x128x128xbf16> to vector<128x128xbf16>
    %421 = arith.truncf %418 : vector<8x128xf32> to vector<8x128xbf16>
    %cst_170 = arith.constant dense<0.000000e+00> : vector<8x128xf32>
    %422 = tpu.matmul %421, %420, %cst_170 {dimension_numbers = #tpu.dot_dimension_numbers<[1], [0], [0], [1], [0, 0, 1, 1], [], []>} : vector<8x128xbf16>, vector<128x128xbf16>, vector<8x128xf32> -> vector<8x128xf32>
    %423 = arith.negf %422 : vector<8x128xf32>
    %424 = math.exp %423 : vector<8x128xf32>
    %cst_171 = arith.constant 1.000000e+00 : f32
    %425 = vector.broadcast %cst_171 : f32 to vector<8x128xf32>
    %426 = arith.addf %425, %424 : vector<8x128xf32>
    %427 = arith.divf %425, %426 : vector<8x128xf32>
    %428 = math.tanh %422 : vector<8x128xf32>
    %429 = arith.select %9, %428, %427 : vector<8x128xi1>, vector<8x128xf32>
    %c64_i32_172 = arith.constant 64 : i32
    %430 = tpu.dynamic_rotate %429 by %c64_i32_172 dim 1 : vector<8x128xf32>, i32 -> vector<8x128xf32>
    %431 = arith.mulf %429, %430 : vector<8x128xf32>
    %c32_i32_173 = arith.constant 32 : i32
    %432 = tpu.dynamic_rotate %431 by %c32_i32_173 dim 1 : vector<8x128xf32>, i32 -> vector<8x128xf32>
    %433 = arith.mulf %429, %391 : vector<8x128xf32>
    %434 = arith.addf %433, %432 : vector<8x128xf32>
    %435 = math.tanh %434 : vector<8x128xf32>
    %436 = arith.mulf %430, %435 : vector<8x128xf32>
    %c8 = arith.constant 8 : index
    %c0_174 = arith.constant 0 : index
    %437 = vector.load %arg4[%c8, %c0_174] : memref<48x128xf32, #tpu.memory_space<vmem>>, vector<8x128xf32>
    tpu.vector_store %arg4[%c8, %c0_174], %436 {strides = array<i32>} : memref<48x128xf32, #tpu.memory_space<vmem>>, vector<8x128xf32>,
    %c64_i32_175 = arith.constant 64 : i32
    %438 = tpu.dynamic_rotate %436 by %c64_i32_175 dim 1 : vector<8x128xf32>, i32 -> vector<8x128xf32>
    %439 = arith.select %7, %438, %14 : vector<8x128xi1>, vector<8x128xf32>
    %440 = arith.select %2, %415, %439 : vector<8x128xi1>, vector<8x128xf32>
    %c2_176 = arith.constant 2 : index
    %c0_177 = arith.constant 0 : index
    %c0_178 = arith.constant 0 : index
    %441 = vector.load %arg1[%c2_176, %c0_177, %c0_178] : memref<4x128x128xbf16, #tpu.memory_space<vmem>>, vector<1x128x128xbf16>
    %442 = vector.shape_cast %441 : vector<1x128x128xbf16> to vector<128x128xbf16>
    %443 = arith.truncf %440 : vector<8x128xf32> to vector<8x128xbf16>
    %cst_179 = arith.constant dense<0.000000e+00> : vector<8x128xf32>
    %444 = tpu.matmul %443, %442, %cst_179 {dimension_numbers = #tpu.dot_dimension_numbers<[1], [0], [0], [1], [0, 0, 1, 1], [], []>} : vector<8x128xbf16>, vector<128x128xbf16>, vector<8x128xf32> -> vector<8x128xf32>
    %445 = arith.negf %444 : vector<8x128xf32>
    %446 = math.exp %445 : vector<8x128xf32>
    %cst_180 = arith.constant 1.000000e+00 : f32
    %447 = vector.broadcast %cst_180 : f32 to vector<8x128xf32>
    %448 = arith.addf %447, %446 : vector<8x128xf32>
    %449 = arith.divf %447, %448 : vector<8x128xf32>
    %450 = math.tanh %444 : vector<8x128xf32>
    %451 = arith.select %9, %450, %449 : vector<8x128xi1>, vector<8x128xf32>
    %c64_i32_181 = arith.constant 64 : i32
    %452 = tpu.dynamic_rotate %451 by %c64_i32_181 dim 1 : vector<8x128xf32>, i32 -> vector<8x128xf32>
    %453 = arith.mulf %451, %452 : vector<8x128xf32>
    %c32_i32_182 = arith.constant 32 : i32
    %454 = tpu.dynamic_rotate %453 by %c32_i32_182 dim 1 : vector<8x128xf32>, i32 -> vector<8x128xf32>
    %455 = arith.mulf %451, %413 : vector<8x128xf32>
    %456 = arith.addf %455, %454 : vector<8x128xf32>
    %457 = math.tanh %456 : vector<8x128xf32>
    %458 = arith.mulf %452, %457 : vector<8x128xf32>
    %c64_i32_183 = arith.constant 64 : i32
    %459 = tpu.dynamic_rotate %458 by %c64_i32_183 dim 1 : vector<8x128xf32>, i32 -> vector<8x128xf32>
    %460 = arith.select %7, %459, %14 : vector<8x128xi1>, vector<8x128xf32>
    %461 = arith.select %2, %436, %460 : vector<8x128xi1>, vector<8x128xf32>
    %c3_184 = arith.constant 3 : index
    %c0_185 = arith.constant 0 : index
    %c0_186 = arith.constant 0 : index
    %462 = vector.load %arg1[%c3_184, %c0_185, %c0_186] : memref<4x128x128xbf16, #tpu.memory_space<vmem>>, vector<1x128x128xbf16>
    %463 = vector.shape_cast %462 : vector<1x128x128xbf16> to vector<128x128xbf16>
    %464 = arith.truncf %461 : vector<8x128xf32> to vector<8x128xbf16>
    %cst_187 = arith.constant dense<0.000000e+00> : vector<8x128xf32>
    %465 = tpu.matmul %464, %463, %cst_187 {dimension_numbers = #tpu.dot_dimension_numbers<[1], [0], [0], [1], [0, 0, 1, 1], [], []>} : vector<8x128xbf16>, vector<128x128xbf16>, vector<8x128xf32> -> vector<8x128xf32>
    %466 = arith.negf %465 : vector<8x128xf32>
    %467 = math.exp %466 : vector<8x128xf32>
    %cst_188 = arith.constant 1.000000e+00 : f32
    %468 = vector.broadcast %cst_188 : f32 to vector<8x128xf32>
    %469 = arith.addf %468, %467 : vector<8x128xf32>
    %470 = arith.divf %468, %469 : vector<8x128xf32>
    %471 = math.tanh %465 : vector<8x128xf32>
    %472 = arith.select %9, %471, %470 : vector<8x128xi1>, vector<8x128xf32>
    %c64_i32_189 = arith.constant 64 : i32
    %473 = tpu.dynamic_rotate %472 by %c64_i32_189 dim 1 : vector<8x128xf32>, i32 -> vector<8x128xf32>
    %474 = arith.mulf %472, %473 : vector<8x128xf32>
    %c32_i32_190 = arith.constant 32 : i32
    %475 = tpu.dynamic_rotate %474 by %c32_i32_190 dim 1 : vector<8x128xf32>, i32 -> vector<8x128xf32>
    %476 = arith.mulf %472, %434 : vector<8x128xf32>
    %477 = arith.addf %476, %475 : vector<8x128xf32>
    %478 = math.tanh %477 : vector<8x128xf32>
    %479 = arith.mulf %473, %478 : vector<8x128xf32>
    %c16 = arith.constant 16 : index
    %c0_191 = arith.constant 0 : index
    %480 = vector.load %arg4[%c16, %c0_191] : memref<48x128xf32, #tpu.memory_space<vmem>>, vector<8x128xf32>
    tpu.vector_store %arg4[%c16, %c0_191], %479 {strides = array<i32>} : memref<48x128xf32, #tpu.memory_space<vmem>>, vector<8x128xf32>,
    %c64_i32_192 = arith.constant 64 : i32
    %481 = tpu.dynamic_rotate %479 by %c64_i32_192 dim 1 : vector<8x128xf32>, i32 -> vector<8x128xf32>
    %482 = arith.select %7, %481, %14 : vector<8x128xi1>, vector<8x128xf32>
    %483 = arith.select %2, %458, %482 : vector<8x128xi1>, vector<8x128xf32>
    %c2_193 = arith.constant 2 : index
    %c0_194 = arith.constant 0 : index
    %c0_195 = arith.constant 0 : index
    %484 = vector.load %arg1[%c2_193, %c0_194, %c0_195] : memref<4x128x128xbf16, #tpu.memory_space<vmem>>, vector<1x128x128xbf16>
    %485 = vector.shape_cast %484 : vector<1x128x128xbf16> to vector<128x128xbf16>
    %486 = arith.truncf %483 : vector<8x128xf32> to vector<8x128xbf16>
    %cst_196 = arith.constant dense<0.000000e+00> : vector<8x128xf32>
    %487 = tpu.matmul %486, %485, %cst_196 {dimension_numbers = #tpu.dot_dimension_numbers<[1], [0], [0], [1], [0, 0, 1, 1], [], []>} : vector<8x128xbf16>, vector<128x128xbf16>, vector<8x128xf32> -> vector<8x128xf32>
    %488 = arith.negf %487 : vector<8x128xf32>
    %489 = math.exp %488 : vector<8x128xf32>
    %cst_197 = arith.constant 1.000000e+00 : f32
    %490 = vector.broadcast %cst_197 : f32 to vector<8x128xf32>
    %491 = arith.addf %490, %489 : vector<8x128xf32>
    %492 = arith.divf %490, %491 : vector<8x128xf32>
    %493 = math.tanh %487 : vector<8x128xf32>
    %494 = arith.select %9, %493, %492 : vector<8x128xi1>, vector<8x128xf32>
    %c64_i32_198 = arith.constant 64 : i32
    %495 = tpu.dynamic_rotate %494 by %c64_i32_198 dim 1 : vector<8x128xf32>, i32 -> vector<8x128xf32>
    %496 = arith.mulf %494, %495 : vector<8x128xf32>
    %c32_i32_199 = arith.constant 32 : i32
    %497 = tpu.dynamic_rotate %496 by %c32_i32_199 dim 1 : vector<8x128xf32>, i32 -> vector<8x128xf32>
    %498 = arith.mulf %494, %456 : vector<8x128xf32>
    %499 = arith.addf %498, %497 : vector<8x128xf32>
    %500 = math.tanh %499 : vector<8x128xf32>
    %501 = arith.mulf %495, %500 : vector<8x128xf32>
    %c64_i32_200 = arith.constant 64 : i32
    %502 = tpu.dynamic_rotate %501 by %c64_i32_200 dim 1 : vector<8x128xf32>, i32 -> vector<8x128xf32>
    %503 = arith.select %7, %502, %14 : vector<8x128xi1>, vector<8x128xf32>
    %504 = arith.select %2, %479, %503 : vector<8x128xi1>, vector<8x128xf32>
    %c3_201 = arith.constant 3 : index
    %c0_202 = arith.constant 0 : index
    %c0_203 = arith.constant 0 : index
    %505 = vector.load %arg1[%c3_201, %c0_202, %c0_203] : memref<4x128x128xbf16, #tpu.memory_space<vmem>>, vector<1x128x128xbf16>
    %506 = vector.shape_cast %505 : vector<1x128x128xbf16> to vector<128x128xbf16>
    %507 = arith.truncf %504 : vector<8x128xf32> to vector<8x128xbf16>
    %cst_204 = arith.constant dense<0.000000e+00> : vector<8x128xf32>
    %508 = tpu.matmul %507, %506, %cst_204 {dimension_numbers = #tpu.dot_dimension_numbers<[1], [0], [0], [1], [0, 0, 1, 1], [], []>} : vector<8x128xbf16>, vector<128x128xbf16>, vector<8x128xf32> -> vector<8x128xf32>
    %509 = arith.negf %508 : vector<8x128xf32>
    %510 = math.exp %509 : vector<8x128xf32>
    %cst_205 = arith.constant 1.000000e+00 : f32
    %511 = vector.broadcast %cst_205 : f32 to vector<8x128xf32>
    %512 = arith.addf %511, %510 : vector<8x128xf32>
    %513 = arith.divf %511, %512 : vector<8x128xf32>
    %514 = math.tanh %508 : vector<8x128xf32>
    %515 = arith.select %9, %514, %513 : vector<8x128xi1>, vector<8x128xf32>
    %c64_i32_206 = arith.constant 64 : i32
    %516 = tpu.dynamic_rotate %515 by %c64_i32_206 dim 1 : vector<8x128xf32>, i32 -> vector<8x128xf32>
    %517 = arith.mulf %515, %516 : vector<8x128xf32>
    %c32_i32_207 = arith.constant 32 : i32
    %518 = tpu.dynamic_rotate %517 by %c32_i32_207 dim 1 : vector<8x128xf32>, i32 -> vector<8x128xf32>
    %519 = arith.mulf %515, %477 : vector<8x128xf32>
    %520 = arith.addf %519, %518 : vector<8x128xf32>
    %521 = math.tanh %520 : vector<8x128xf32>
    %522 = arith.mulf %516, %521 : vector<8x128xf32>
    %c24 = arith.constant 24 : index
    %c0_208 = arith.constant 0 : index
    %523 = vector.load %arg4[%c24, %c0_208] : memref<48x128xf32, #tpu.memory_space<vmem>>, vector<8x128xf32>
    tpu.vector_store %arg4[%c24, %c0_208], %522 {strides = array<i32>} : memref<48x128xf32, #tpu.memory_space<vmem>>, vector<8x128xf32>,
    %c64_i32_209 = arith.constant 64 : i32
    %524 = tpu.dynamic_rotate %522 by %c64_i32_209 dim 1 : vector<8x128xf32>, i32 -> vector<8x128xf32>
    %525 = arith.select %7, %524, %14 : vector<8x128xi1>, vector<8x128xf32>
    %526 = arith.select %2, %501, %525 : vector<8x128xi1>, vector<8x128xf32>
    %c2_210 = arith.constant 2 : index
    %c0_211 = arith.constant 0 : index
    %c0_212 = arith.constant 0 : index
    %527 = vector.load %arg1[%c2_210, %c0_211, %c0_212] : memref<4x128x128xbf16, #tpu.memory_space<vmem>>, vector<1x128x128xbf16>
    %528 = vector.shape_cast %527 : vector<1x128x128xbf16> to vector<128x128xbf16>
    %529 = arith.truncf %526 : vector<8x128xf32> to vector<8x128xbf16>
    %cst_213 = arith.constant dense<0.000000e+00> : vector<8x128xf32>
    %530 = tpu.matmul %529, %528, %cst_213 {dimension_numbers = #tpu.dot_dimension_numbers<[1], [0], [0], [1], [0, 0, 1, 1], [], []>} : vector<8x128xbf16>, vector<128x128xbf16>, vector<8x128xf32> -> vector<8x128xf32>
    %531 = arith.negf %530 : vector<8x128xf32>
    %532 = math.exp %531 : vector<8x128xf32>
    %cst_214 = arith.constant 1.000000e+00 : f32
    %533 = vector.broadcast %cst_214 : f32 to vector<8x128xf32>
    %534 = arith.addf %533, %532 : vector<8x128xf32>
    %535 = arith.divf %533, %534 : vector<8x128xf32>
    %536 = math.tanh %530 : vector<8x128xf32>
    %537 = arith.select %9, %536, %535 : vector<8x128xi1>, vector<8x128xf32>
    %c64_i32_215 = arith.constant 64 : i32
    %538 = tpu.dynamic_rotate %537 by %c64_i32_215 dim 1 : vector<8x128xf32>, i32 -> vector<8x128xf32>
    %539 = arith.mulf %537, %538 : vector<8x128xf32>
    %c32_i32_216 = arith.constant 32 : i32
    %540 = tpu.dynamic_rotate %539 by %c32_i32_216 dim 1 : vector<8x128xf32>, i32 -> vector<8x128xf32>
    %541 = arith.mulf %537, %499 : vector<8x128xf32>
    %542 = arith.addf %541, %540 : vector<8x128xf32>
    %543 = math.tanh %542 : vector<8x128xf32>
    %544 = arith.mulf %538, %543 : vector<8x128xf32>
    %c64_i32_217 = arith.constant 64 : i32
    %545 = tpu.dynamic_rotate %544 by %c64_i32_217 dim 1 : vector<8x128xf32>, i32 -> vector<8x128xf32>
    %546 = arith.select %7, %545, %14 : vector<8x128xi1>, vector<8x128xf32>
    %547 = arith.select %2, %522, %546 : vector<8x128xi1>, vector<8x128xf32>
    %c3_218 = arith.constant 3 : index
    %c0_219 = arith.constant 0 : index
    %c0_220 = arith.constant 0 : index
    %548 = vector.load %arg1[%c3_218, %c0_219, %c0_220] : memref<4x128x128xbf16, #tpu.memory_space<vmem>>, vector<1x128x128xbf16>
    %549 = vector.shape_cast %548 : vector<1x128x128xbf16> to vector<128x128xbf16>
    %550 = arith.truncf %547 : vector<8x128xf32> to vector<8x128xbf16>
    %cst_221 = arith.constant dense<0.000000e+00> : vector<8x128xf32>
    %551 = tpu.matmul %550, %549, %cst_221 {dimension_numbers = #tpu.dot_dimension_numbers<[1], [0], [0], [1], [0, 0, 1, 1], [], []>} : vector<8x128xbf16>, vector<128x128xbf16>, vector<8x128xf32> -> vector<8x128xf32>
    %552 = arith.negf %551 : vector<8x128xf32>
    %553 = math.exp %552 : vector<8x128xf32>
    %cst_222 = arith.constant 1.000000e+00 : f32
    %554 = vector.broadcast %cst_222 : f32 to vector<8x128xf32>
    %555 = arith.addf %554, %553 : vector<8x128xf32>
    %556 = arith.divf %554, %555 : vector<8x128xf32>
    %557 = math.tanh %551 : vector<8x128xf32>
    %558 = arith.select %9, %557, %556 : vector<8x128xi1>, vector<8x128xf32>
    %c64_i32_223 = arith.constant 64 : i32
    %559 = tpu.dynamic_rotate %558 by %c64_i32_223 dim 1 : vector<8x128xf32>, i32 -> vector<8x128xf32>
    %560 = arith.mulf %558, %559 : vector<8x128xf32>
    %c32_i32_224 = arith.constant 32 : i32
    %561 = tpu.dynamic_rotate %560 by %c32_i32_224 dim 1 : vector<8x128xf32>, i32 -> vector<8x128xf32>
    %562 = arith.mulf %558, %520 : vector<8x128xf32>
    %563 = arith.addf %562, %561 : vector<8x128xf32>
    %564 = math.tanh %563 : vector<8x128xf32>
    %565 = arith.mulf %559, %564 : vector<8x128xf32>
    %c32 = arith.constant 32 : index
    %c0_225 = arith.constant 0 : index
    %566 = vector.load %arg4[%c32, %c0_225] : memref<48x128xf32, #tpu.memory_space<vmem>>, vector<8x128xf32>
    tpu.vector_store %arg4[%c32, %c0_225], %565 {strides = array<i32>} : memref<48x128xf32, #tpu.memory_space<vmem>>, vector<8x128xf32>,
    %c64_i32_226 = arith.constant 64 : i32
    %567 = tpu.dynamic_rotate %565 by %c64_i32_226 dim 1 : vector<8x128xf32>, i32 -> vector<8x128xf32>
    %568 = arith.select %7, %567, %14 : vector<8x128xi1>, vector<8x128xf32>
    %569 = arith.select %2, %544, %568 : vector<8x128xi1>, vector<8x128xf32>
    %c2_227 = arith.constant 2 : index
    %c0_228 = arith.constant 0 : index
    %c0_229 = arith.constant 0 : index
    %570 = vector.load %arg1[%c2_227, %c0_228, %c0_229] : memref<4x128x128xbf16, #tpu.memory_space<vmem>>, vector<1x128x128xbf16>
    %571 = vector.shape_cast %570 : vector<1x128x128xbf16> to vector<128x128xbf16>
    %572 = arith.truncf %569 : vector<8x128xf32> to vector<8x128xbf16>
    %cst_230 = arith.constant dense<0.000000e+00> : vector<8x128xf32>
    %573 = tpu.matmul %572, %571, %cst_230 {dimension_numbers = #tpu.dot_dimension_numbers<[1], [0], [0], [1], [0, 0, 1, 1], [], []>} : vector<8x128xbf16>, vector<128x128xbf16>, vector<8x128xf32> -> vector<8x128xf32>
    %574 = arith.negf %573 : vector<8x128xf32>
    %575 = math.exp %574 : vector<8x128xf32>
    %cst_231 = arith.constant 1.000000e+00 : f32
    %576 = vector.broadcast %cst_231 : f32 to vector<8x128xf32>
    %577 = arith.addf %576, %575 : vector<8x128xf32>
    %578 = arith.divf %576, %577 : vector<8x128xf32>
    %579 = math.tanh %573 : vector<8x128xf32>
    %580 = arith.select %9, %579, %578 : vector<8x128xi1>, vector<8x128xf32>
    %c64_i32_232 = arith.constant 64 : i32
    %581 = tpu.dynamic_rotate %580 by %c64_i32_232 dim 1 : vector<8x128xf32>, i32 -> vector<8x128xf32>
    %582 = arith.mulf %580, %581 : vector<8x128xf32>
    %c32_i32_233 = arith.constant 32 : i32
    %583 = tpu.dynamic_rotate %582 by %c32_i32_233 dim 1 : vector<8x128xf32>, i32 -> vector<8x128xf32>
    %584 = arith.mulf %580, %542 : vector<8x128xf32>
    %585 = arith.addf %584, %583 : vector<8x128xf32>
    %586 = math.tanh %585 : vector<8x128xf32>
    %587 = arith.mulf %581, %586 : vector<8x128xf32>
    %c64_i32_234 = arith.constant 64 : i32
    %588 = tpu.dynamic_rotate %587 by %c64_i32_234 dim 1 : vector<8x128xf32>, i32 -> vector<8x128xf32>
    %589 = arith.select %7, %588, %14 : vector<8x128xi1>, vector<8x128xf32>
    %590 = arith.select %2, %565, %589 : vector<8x128xi1>, vector<8x128xf32>
    %c3_235 = arith.constant 3 : index
    %c0_236 = arith.constant 0 : index
    %c0_237 = arith.constant 0 : index
    %591 = vector.load %arg1[%c3_235, %c0_236, %c0_237] : memref<4x128x128xbf16, #tpu.memory_space<vmem>>, vector<1x128x128xbf16>
    %592 = vector.shape_cast %591 : vector<1x128x128xbf16> to vector<128x128xbf16>
    %593 = arith.truncf %590 : vector<8x128xf32> to vector<8x128xbf16>
    %cst_238 = arith.constant dense<0.000000e+00> : vector<8x128xf32>
    %594 = tpu.matmul %593, %592, %cst_238 {dimension_numbers = #tpu.dot_dimension_numbers<[1], [0], [0], [1], [0, 0, 1, 1], [], []>} : vector<8x128xbf16>, vector<128x128xbf16>, vector<8x128xf32> -> vector<8x128xf32>
    %595 = arith.negf %594 : vector<8x128xf32>
    %596 = math.exp %595 : vector<8x128xf32>
    %cst_239 = arith.constant 1.000000e+00 : f32
    %597 = vector.broadcast %cst_239 : f32 to vector<8x128xf32>
    %598 = arith.addf %597, %596 : vector<8x128xf32>
    %599 = arith.divf %597, %598 : vector<8x128xf32>
    %600 = math.tanh %594 : vector<8x128xf32>
    %601 = arith.select %9, %600, %599 : vector<8x128xi1>, vector<8x128xf32>
    %c64_i32_240 = arith.constant 64 : i32
    %602 = tpu.dynamic_rotate %601 by %c64_i32_240 dim 1 : vector<8x128xf32>, i32 -> vector<8x128xf32>
    %603 = arith.mulf %601, %602 : vector<8x128xf32>
    %c32_i32_241 = arith.constant 32 : i32
    %604 = tpu.dynamic_rotate %603 by %c32_i32_241 dim 1 : vector<8x128xf32>, i32 -> vector<8x128xf32>
    %605 = arith.mulf %601, %563 : vector<8x128xf32>
    %606 = arith.addf %605, %604 : vector<8x128xf32>
    %607 = math.tanh %606 : vector<8x128xf32>
    %608 = arith.mulf %602, %607 : vector<8x128xf32>
    %c40 = arith.constant 40 : index
    %c0_242 = arith.constant 0 : index
    %609 = vector.load %arg4[%c40, %c0_242] : memref<48x128xf32, #tpu.memory_space<vmem>>, vector<8x128xf32>
    tpu.vector_store %arg4[%c40, %c0_242], %608 {strides = array<i32>} : memref<48x128xf32, #tpu.memory_space<vmem>>, vector<8x128xf32>,
    %c0_243 = arith.constant 0 : index
    %c0_244 = arith.constant 0 : index
    %610 = vector.load %arg4[%c0_243, %c0_244] : memref<48x128xf32, #tpu.memory_space<vmem>>, vector<48x128xf32>
    %611 = arith.truncf %610 : vector<48x128xf32> to vector<48x128xbf16>
    %c0_245 = arith.constant 0 : index
    %c0_246 = arith.constant 0 : index
    %612 = vector.load %arg2[%c0_245, %c0_246] : memref<128x128xbf16, #tpu.memory_space<vmem>>, vector<128x128xbf16>
    %cst_247 = arith.constant dense<0.000000e+00> : vector<48x128xf32>
    %613 = tpu.matmul %611, %612, %cst_247 {dimension_numbers = #tpu.dot_dimension_numbers<[1], [0], [0], [1], [0, 0, 1, 1], [], []>} : vector<48x128xbf16>, vector<128x128xbf16>, vector<48x128xf32> -> vector<48x128xf32>
    %c0_248 = arith.constant 0 : index
    %c0_249 = arith.constant 0 : index
    %614 = vector.load %arg3[%c0_248, %c0_249] : memref<1x128xf32, #tpu.memory_space<vmem>>, vector<1x128xf32>
    %615 = vector.broadcast %614 : vector<1x128xf32> to vector<48x128xf32>
    %616 = arith.addf %613, %615 : vector<48x128xf32>
    %c0_250 = arith.constant 0 : index
    %c0_251 = arith.constant 0 : index
    %617 = vector.load %arg4[%c0_250, %c0_251] : memref<48x128xf32, #tpu.memory_space<vmem>>, vector<48x128xf32>
    tpu.vector_store %arg4[%c0_250, %c0_251], %616 {strides = array<i32>} : memref<48x128xf32, #tpu.memory_space<vmem>>, vector<48x128xf32>,
    return
  }
}

</mosaic_0001>

<llo_original>
// kernel: tpu_custom_call.1
$region0: #{tpu_custom_call.1}
  #allocation0 [shape = 'u32[]', space=smem, size = 0x4, offset = 0x4, fixed_abs, tag = 'smem constant byte address 0x4 - core index']
  #allocation1 [shape = 'u32[72,128]{1,0:T(1,128)}', space=vmem, size = 0x9000, scoped, tag = 'internal scratch']
  %s0 = inlined_call_operand.hbm [shape: f32[8,8,128], index: 0, kind: input, shape index: {}]
  %s1 = inlined_call_operand.hbm [shape: bf16[4,128,128], index: 1, kind: input, shape index: {}]
  %s2 = inlined_call_operand.hbm [shape: bf16[128,128], index: 2, kind: input, shape index: {}]
  %s3 = inlined_call_operand.vmem [shape: f32[1,128], index: 3, kind: input, shape index: {}]
  %s4 = inlined_call_operand.hbm [shape: f32[48,128], index: 4, kind: output, shape index: {}]
  %s5 = sld [smem:[#allocation0]]
  $region38: #{tpu_custom_call.1} parent=0
    _
  %s7 = ssub.s32 1, %s5
  %s8 = scalar_select 0, %s7, %s5
  $region1: #{tpu_custom_call.1} parent=0
    #allocation2 [shape = 'u8[32768]{0}', space=vmem, size = 0x8000, scoped, tag = 'input window, operand 0, single buffered']
    #allocation3 [shape = 's32[1]{0}', space=sflag, size = 0x4, scoped, tag = 'scoped memory for tpu_custom_call.1']
    #allocation4 [shape = 's32[1]{0}', space=sflag, size = 0x4, scoped, tag = 'scoped memory for tpu_custom_call.1']
    #allocation5 [shape = 'u8[131072]{0}', space=vmem, size = 0x20000, scoped, tag = 'input window, operand 1, single buffered']
    #allocation6 [shape = 's32[1]{0}', space=sflag, size = 0x4, scoped, tag = 'scoped memory for tpu_custom_call.1']
    #allocation7 [shape = 'u8[32768]{0}', space=vmem, size = 0x8000, scoped, tag = 'input window, operand 2, single buffered']
    #allocation8 [shape = 'u8[24576]{0}', space=vmem, size = 0x6000, scoped, tag = 'output window, operand 0, single buffered']
    %9 = vsyncpa [#allocation3], 0
    %10 = vsyncpa [#allocation6], 0
    %11 = vsyncpa [#allocation4], 0
    // Predicated region
    $region2: #{tpu_custom_call.1} parent=1 // pred_check
      _
    $region3: #{tpu_custom_call.1} parent=1 // pred_check_branch
      %13 = sbr.rel (0) target = $region5
    $region4: #{tpu_custom_call.1} parent=1 // pred_region
      %15 = vsyncadd [#allocation3], 0
      %s16 = sshll.u32 %s0, 4
      %s17 = int_to_ptr.hbm [resolvable:$true] %s16
      %s18 = sshll.u32 [#allocation2], 4
      %s19 = int_to_ptr.vmem [resolvable:$true] %s18
      %24 = dma.hbm_to_vmem [thread:$0]  %s17, 1024, %s19, [#allocation3], 128, 128, 8
    $region5: #{tpu_custom_call.1} parent=1 // pred_fallthru
      _
    // Predicated region
    $region6: #{tpu_custom_call.1} parent=1 // pred_check
      _
    $region7: #{tpu_custom_call.1} parent=1 // pred_check_branch
      %26 = sbr.rel (0) target = $region9
    $region8: #{tpu_custom_call.1} parent=1 // pred_region
      %28 = vsyncadd [#allocation6], 0
      %s29 = sshll.u32 %s1, 4
      %s30 = int_to_ptr.hbm [resolvable:$true] %s29
      %s31 = sshll.u32 [#allocation5], 4
      %s32 = int_to_ptr.vmem [resolvable:$true] %s31
      %37 = dma.hbm_to_vmem [thread:$0]  %s30, 4096, %s32, [#allocation6], 64, 64, 4
    $region9: #{tpu_custom_call.1} parent=1 // pred_fallthru
      _
    // Predicated region
    $region10: #{tpu_custom_call.1} parent=1 // pred_check
      _
    $region11: #{tpu_custom_call.1} parent=1 // pred_check_branch
      %39 = sbr.rel (0) target = $region13
    $region12: #{tpu_custom_call.1} parent=1 // pred_region
      %41 = vsyncadd [#allocation6], 0
      %s42 = sshll.u32 %s2, 4
      %s43 = int_to_ptr.hbm [resolvable:$true] %s42
      %s44 = sshll.u32 [#allocation7], 4
      %s45 = int_to_ptr.vmem [resolvable:$true] %s44
      %50 = dma.hbm_to_vmem [thread:$0]  %s43, 1024, %s45, [#allocation6], 64, 64, 4
    $region13: #{tpu_custom_call.1} parent=1 // pred_fallthru
      _
    // Predicated region
    $region14: #{tpu_custom_call.1} parent=1 // pred_check
      _
    $region15: #{tpu_custom_call.1} parent=1 // pred_check_branch
      %52 = sbr.rel (0) target = $region17
    $region16: #{tpu_custom_call.1} parent=1 // pred_region
      _
    $region17: #{tpu_custom_call.1} parent=1 // pred_fallthru
      _
    // Predicated region
    $region18: #{tpu_custom_call.1} parent=1 // pred_check
      _
    $region19: #{tpu_custom_call.1} parent=1 // pred_check_branch
      %54 = sbr.rel (0) target = $region21
    $region20: #{tpu_custom_call.1} parent=1 // pred_region
      %56 = dma.done [#allocation3], 1024
    $region21: #{tpu_custom_call.1} parent=1 // pred_fallthru
      _
    // Predicated region
    $region22: #{tpu_custom_call.1} parent=1 // pred_check
      _
    $region23: #{tpu_custom_call.1} parent=1 // pred_check_branch
      %58 = sbr.rel (0) target = $region25
    $region24: #{tpu_custom_call.1} parent=1 // pred_region
      %60 = dma.done [#allocation6], 4096
    $region25: #{tpu_custom_call.1} parent=1 // pred_fallthru
      _
    // Predicated region
    $region26: #{tpu_custom_call.1} parent=1 // pred_check
      _
    $region27: #{tpu_custom_call.1} parent=1 // pred_check_branch
      %62 = sbr.rel (0) target = $region29
    $region28: #{tpu_custom_call.1} parent=1 // pred_region
      %64 = dma.done [#allocation6], 1024
    $region29: #{tpu_custom_call.1} parent=1 // pred_fallthru
      _
    %v65 = vlaneseq
    %v66 = vand.u32 %v65, 127
    %vm67 = vcmp.lt.s32.totalorder %v66, 32
    %vm68 = vcmp.ge.s32.totalorder %v66, 64
    %vm69 = vcmp.lt.s32.totalorder %v66, 96
    %vm70 = vmand %vm68, %vm69
    %vm71 = vcmp.ge.s32.totalorder %v66, 96
    %vm72 = vcmp.eq.s32.totalorder %v66, 32
    %v73 = vsel %vm72, 1.0, 0.0
    %v74 = vld [vmem:[#allocation2] sm:$0xff]
    %v75 = vsel %vm67, 0.0, %v74
    %v76 = vld [vmem:[#allocation5] sm:$0xf]
    %v77 = vld [vmem:[#allocation5 + $0x4] sm:$0xf]
    %v78 = vld [vmem:[#allocation5 + $0x8] sm:$0xf]
    %v79 = vld [vmem:[#allocation5 + $0xc] sm:$0xf]
    %v80 = vld [vmem:[#allocation5 + $0x10] sm:$0xf]
    %v81 = vld [vmem:[#allocation5 + $0x14] sm:$0xf]
    %v82 = vld [vmem:[#allocation5 + $0x18] sm:$0xf]
    %v83 = vld [vmem:[#allocation5 + $0x1c] sm:$0xf]
    %v84 = vld [vmem:[#allocation5 + $0x20] sm:$0xf]
    %v85 = vld [vmem:[#allocation5 + $0x24] sm:$0xf]
    %v86 = vld [vmem:[#allocation5 + $0x28] sm:$0xf]
    %v87 = vld [vmem:[#allocation5 + $0x2c] sm:$0xf]
    %v88 = vld [vmem:[#allocation5 + $0x30] sm:$0xf]
    %v89 = vld [vmem:[#allocation5 + $0x34] sm:$0xf]
    %v90 = vld [vmem:[#allocation5 + $0x38] sm:$0xf]
    %v91 = vld [vmem:[#allocation5 + $0x3c] sm:$0xf]
    %v92 = vpack.c.bf16 %v75, %v75
    %v109 = vunpack.c.l.b16 %v76
    %v110 = vunpack.c.l.b16 %v77
    %v111 = vunpack.c.l.b16 %v78
    %v112 = vunpack.c.l.b16 %v79
    %v113 = vunpack.c.l.b16 %v80
    %v114 = vunpack.c.l.b16 %v81
    %v115 = vunpack.c.l.b16 %v82
    %v116 = vunpack.c.l.b16 %v83
    %v117 = vunpack.c.l.b16 %v84
    %v118 = vunpack.c.l.b16 %v85
    %v119 = vunpack.c.l.b16 %v86
    %v120 = vunpack.c.l.b16 %v87
    %v121 = vunpack.c.l.b16 %v88
    %v122 = vunpack.c.l.b16 %v89
    %v123 = vunpack.c.l.b16 %v90
    %v124 = vunpack.c.l.b16 %v91
    %v125 = vpack.c.b16 %v110, %v109
    %v126 = vpack.c.b16 %v112, %v111
    %v127 = vpack.c.b16 %v114, %v113
    %v128 = vpack.c.b16 %v116, %v115
    %v129 = vpack.c.b16 %v118, %v117
    %v130 = vpack.c.b16 %v120, %v119
    %v131 = vpack.c.b16 %v122, %v121
    %v132 = vpack.c.b16 %v124, %v123
    %141 = vmatpush.bf16.msra.mxu0 %v132
    %142 = vmatpush.bf16.msra.mxu0 %v131
    %143 = vmatpush.bf16.msra.mxu0 %v130
    %144 = vmatpush.bf16.msra.mxu0 %v129
    %145 = vmatpush.bf16.msra.mxu0 %v128
    %146 = vmatpush.bf16.msra.mxu0 %v127
    %147 = vmatpush.bf16.msra.mxu0 %v126
    %148 = vmatpush.bf16.msra.mxu0 %v125
    %149 = vmatmul.bf16.gmra.mxu0 %v92
    %v150 = vpop.f32.mrf.mxu0
    %v151 = vadd.f32 0.0, %v150
    %v152 = vpop.f32.mrf.mxu0
    %153 = vdwg.mxu0
    %v154 = vxor.u32 %v151, 2147483648
    %v155 = vmul.f32 %v154, 1.442695
    %v156 = vpow.pop %v155
    %v157 = vadd.f32 %v156, 1.0
    %v158 = vrcp.pop %v157
    %v159 = vmul.f32 %v157, %v158
    %v160 = vsub.f32 1.0, %v159
    %v161 = vmul.f32 %v158, %v160
    %v162 = vadd.f32 %v158, %v161
    %vm163 = vweird.f32 %v157
    %vm164 = vweird.f32 %v158
    %vm165 = vmor %vm163, %vm164
    %v166 = vsel %vm165, %v158, %v162
    %v167 = vand.u32 2147483647, %v157
    %vm168 = vcmp.eq.f32.partialorder %v167, 8.507059e+37
    %v169 = vand.u32 %v157, 2147483648
    %v170 = vor.u32 1.1754944e-38, %v169
    %v171 = vsel %vm168, %v170, %v166
    %v172 = vmul.f32 1.0, %v171
    %v173 = vtanh.pop %v151
    %v174 = vsel %vm71, %v173, %v172
    %175 = vrot.lane.b32.xlu0 %v174, 64
    %v176 = vpop.permute.xlu0 %175
    %v177 = vmul.f32 %v174, %v176
    %178 = vrot.lane.b32.xlu0 %v177, 32
    %v179 = vpop.permute.xlu0 %178
    %v180 = vmul.f32 %v174, 0.0
    %v181 = vadd.f32 %v180, %v179
    %v182 = vtanh.pop %v181
    %v183 = vmul.f32 %v176, %v182
    %184 = vrot.lane.b32.xlu0 %v183, 64
    %v185 = vpop.permute.xlu0 %184
    %v186 = vsel %vm70, %v185, %v73
    %v187 = vsel %vm67, 0.0, %v186
    %s188 = scalar_lea.vmem [#allocation5], 64
    %v189 = vld [vmem:[%s188] sm:$0xf]
    %v190 = vld [vmem:[%s188 + $0x4] sm:$0xf]
    %v191 = vld [vmem:[%s188 + $0x8] sm:$0xf]
    %v192 = vld [vmem:[%s188 + $0xc] sm:$0xf]
    %v193 = vld [vmem:[%s188 + $0x10] sm:$0xf]
    %v194 = vld [vmem:[%s188 + $0x14] sm:$0xf]
    %v195 = vld [vmem:[%s188 + $0x18] sm:$0xf]
    %v196 = vld [vmem:[%s188 + $0x1c] sm:$0xf]
    %v197 = vld [vmem:[%s188 + $0x20] sm:$0xf]
    %v198 = vld [vmem:[%s188 + $0x24] sm:$0xf]
    %v199 = vld [vmem:[%s188 + $0x28] sm:$0xf]
    %v200 = vld [vmem:[%s188 + $0x2c] sm:$0xf]
    %v201 = vld [vmem:[%s188 + $0x30] sm:$0xf]
    %v202 = vld [vmem:[%s188 + $0x34] sm:$0xf]
    %v203 = vld [vmem:[%s188 + $0x38] sm:$0xf]
    %v204 = vld [vmem:[%s188 + $0x3c] sm:$0xf]
    %v205 = vpack.c.bf16 %v187, %v187
    %v222 = vunpack.c.l.b16 %v189
    %v223 = vunpack.c.l.b16 %v190
    %v224 = vunpack.c.l.b16 %v191
    %v225 = vunpack.c.l.b16 %v192
    %v226 = vunpack.c.l.b16 %v193
    %v227 = vunpack.c.l.b16 %v194
    %v228 = vunpack.c.l.b16 %v195
    %v229 = vunpack.c.l.b16 %v196
    %v230 = vunpack.c.l.b16 %v197
    %v231 = vunpack.c.l.b16 %v198
    %v232 = vunpack.c.l.b16 %v199
    %v233 = vunpack.c.l.b16 %v200
    %v234 = vunpack.c.l.b16 %v201
    %v235 = vunpack.c.l.b16 %v202
    %v236 = vunpack.c.l.b16 %v203
    %v237 = vunpack.c.l.b16 %v204
    %v238 = vpack.c.b16 %v223, %v222
    %v239 = vpack.c.b16 %v225, %v224
    %v240 = vpack.c.b16 %v227, %v226
    %v241 = vpack.c.b16 %v229, %v228
    %v242 = vpack.c.b16 %v231, %v230
    %v243 = vpack.c.b16 %v233, %v232
    %v244 = vpack.c.b16 %v235, %v234
    %v245 = vpack.c.b16 %v237, %v236
    %254 = vmatpush.bf16.msra.mxu0 %v245
    %255 = vmatpush.bf16.msra.mxu0 %v244
    %256 = vmatpush.bf16.msra.mxu0 %v243
    %257 = vmatpush.bf16.msra.mxu0 %v242
    %258 = vmatpush.bf16.msra.mxu0 %v241
    %259 = vmatpush.bf16.msra.mxu0 %v240
    %260 = vmatpush.bf16.msra.mxu0 %v239
    %261 = vmatpush.bf16.msra.mxu0 %v238
    %262 = vmatmul.bf16.gmra.mxu0 %v205
    %v263 = vpop.f32.mrf.mxu0
    %v264 = vadd.f32 0.0, %v263
    %v265 = vpop.f32.mrf.mxu0
    %266 = vdwg.mxu0
    %v267 = vxor.u32 %v264, 2147483648
    %v268 = vmul.f32 %v267, 1.442695
    %v269 = vpow.pop %v268
    %v270 = vadd.f32 %v269, 1.0
    %v271 = vrcp.pop %v270
    %v272 = vmul.f32 %v270, %v271
    %v273 = vsub.f32 1.0, %v272
    %v274 = vmul.f32 %v271, %v273
    %v275 = vadd.f32 %v271, %v274
    %vm276 = vweird.f32 %v270
    %vm277 = vweird.f32 %v271
    %vm278 = vmor %vm276, %vm277
    %v279 = vsel %vm278, %v271, %v275
    %v280 = vand.u32 2147483647, %v270
    %vm281 = vcmp.eq.f32.partialorder %v280, 8.507059e+37
    %v282 = vand.u32 %v270, 2147483648
    %v283 = vor.u32 1.1754944e-38, %v282
    %v284 = vsel %vm281, %v283, %v279
    %v285 = vmul.f32 1.0, %v284
    %v286 = vtanh.pop %v264
    %v287 = vsel %vm71, %v286, %v285
    %288 = vrot.lane.b32.xlu0 %v287, 64
    %v289 = vpop.permute.xlu0 %288
    %v290 = vmul.f32 %v287, %v289
    %291 = vrot.lane.b32.xlu0 %v290, 32
    %v292 = vpop.permute.xlu0 %291
    %v293 = vmul.f32 %v287, 0.0
    %v294 = vadd.f32 %v293, %v292
    %v295 = vtanh.pop %v294
    %v296 = vmul.f32 %v289, %v295
    %s297 = scalar_lea.vmem [#allocation2], 8
    %v298 = vld [vmem:[%s297] sm:$0xff]
    %v299 = vsel %vm67, %v183, %v298
    %v300 = vpack.c.bf16 %v299, %v299
    %301 = vmatpush.bf16.msra.mxu0 %v132
    %302 = vmatpush.bf16.msra.mxu0 %v131
    %303 = vmatpush.bf16.msra.mxu0 %v130
    %304 = vmatpush.bf16.msra.mxu0 %v129
    %305 = vmatpush.bf16.msra.mxu0 %v128
    %306 = vmatpush.bf16.msra.mxu0 %v127
    %307 = vmatpush.bf16.msra.mxu0 %v126
    %308 = vmatpush.bf16.msra.mxu0 %v125
    %309 = vmatmul.bf16.gmra.mxu0 %v300
    %v310 = vpop.f32.mrf.mxu0
    %v311 = vadd.f32 0.0, %v310
    %v312 = vpop.f32.mrf.mxu0
    %313 = vdwg.mxu0
    %v314 = vxor.u32 %v311, 2147483648
    %v315 = vmul.f32 %v314, 1.442695
    %v316 = vpow.pop %v315
    %v317 = vadd.f32 %v316, 1.0
    %v318 = vrcp.pop %v317
    %v319 = vmul.f32 %v317, %v318
    %v320 = vsub.f32 1.0, %v319
    %v321 = vmul.f32 %v318, %v320
    %v322 = vadd.f32 %v318, %v321
    %vm323 = vweird.f32 %v317
    %vm324 = vweird.f32 %v318
    %vm325 = vmor %vm323, %vm324
    %v326 = vsel %vm325, %v318, %v322
    %v327 = vand.u32 2147483647, %v317
    %vm328 = vcmp.eq.f32.partialorder %v327, 8.507059e+37
    %v329 = vand.u32 %v317, 2147483648
    %v330 = vor.u32 1.1754944e-38, %v329
    %v331 = vsel %vm328, %v330, %v326
    %v332 = vmul.f32 1.0, %v331
    %v333 = vtanh.pop %v311
    %v334 = vsel %vm71, %v333, %v332
    %335 = vrot.lane.b32.xlu0 %v334, 64
    %v336 = vpop.permute.xlu0 %335
    %v337 = vmul.f32 %v334, %v336
    %338 = vrot.lane.b32.xlu0 %v337, 32
    %v339 = vpop.permute.xlu0 %338
    %v340 = vmul.f32 %v334, %v181
    %v341 = vadd.f32 %v340, %v339
    %v342 = vtanh.pop %v341
    %v343 = vmul.f32 %v336, %v342
    %344 = vrot.lane.b32.xlu0 %v343, 64
    %v345 = vpop.permute.xlu0 %344
    %v346 = vsel %vm70, %v345, %v73
    %v347 = vsel %vm67, %v296, %v346
    %v348 = vpack.c.bf16 %v347, %v347
    %349 = vmatpush.bf16.msra.mxu0 %v245
    %350 = vmatpush.bf16.msra.mxu0 %v244
    %351 = vmatpush.bf16.msra.mxu0 %v243
    %352 = vmatpush.bf16.msra.mxu0 %v242
    %353 = vmatpush.bf16.msra.mxu0 %v241
    %354 = vmatpush.bf16.msra.mxu0 %v240
    %355 = vmatpush.bf16.msra.mxu0 %v239
    %356 = vmatpush.bf16.msra.mxu0 %v238
    %357 = vmatmul.bf16.gmra.mxu0 %v348
    %v358 = vpop.f32.mrf.mxu0
    %v359 = vadd.f32 0.0, %v358
    %v360 = vpop.f32.mrf.mxu0
    %361 = vdwg.mxu0
    %v362 = vxor.u32 %v359, 2147483648
    %v363 = vmul.f32 %v362, 1.442695
    %v364 = vpow.pop %v363
    %v365 = vadd.f32 %v364, 1.0
    %v366 = vrcp.pop %v365
    %v367 = vmul.f32 %v365, %v366
    %v368 = vsub.f32 1.0, %v367
    %v369 = vmul.f32 %v366, %v368
    %v370 = vadd.f32 %v366, %v369
    %vm371 = vweird.f32 %v365
    %vm372 = vweird.f32 %v366
    %vm373 = vmor %vm371, %vm372
    %v374 = vsel %vm373, %v366, %v370
    %v375 = vand.u32 2147483647, %v365
    %vm376 = vcmp.eq.f32.partialorder %v375, 8.507059e+37
    %v377 = vand.u32 %v365, 2147483648
    %v378 = vor.u32 1.1754944e-38, %v377
    %v379 = vsel %vm376, %v378, %v374
    %v380 = vmul.f32 1.0, %v379
    %v381 = vtanh.pop %v359
    %v382 = vsel %vm71, %v381, %v380
    %383 = vrot.lane.b32.xlu0 %v382, 64
    %v384 = vpop.permute.xlu0 %383
    %v385 = vmul.f32 %v382, %v384
    %386 = vrot.lane.b32.xlu0 %v385, 32
    %v387 = vpop.permute.xlu0 %386
    %v388 = vmul.f32 %v382, %v294
    %v389 = vadd.f32 %v388, %v387
    %v390 = vtanh.pop %v389
    %v391 = vmul.f32 %v384, %v390
    %s392 = scalar_lea.vmem [#allocation2], 16
    %v393 = vld [vmem:[%s392] sm:$0xff]
    %v394 = vsel %vm67, %v343, %v393
    %v395 = vpack.c.bf16 %v394, %v394
    %396 = vmatpush.bf16.msra.mxu0 %v132
    %397 = vmatpush.bf16.msra.mxu0 %v131
    %398 = vmatpush.bf16.msra.mxu0 %v130
    %399 = vmatpush.bf16.msra.mxu0 %v129
    %400 = vmatpush.bf16.msra.mxu0 %v128
    %401 = vmatpush.bf16.msra.mxu0 %v127
    %402 = vmatpush.bf16.msra.mxu0 %v126
    %403 = vmatpush.bf16.msra.mxu0 %v125
    %404 = vmatmul.bf16.gmra.mxu0 %v395
    %v405 = vpop.f32.mrf.mxu0
    %v406 = vadd.f32 0.0, %v405
    %v407 = vpop.f32.mrf.mxu0
    %408 = vdwg.mxu0
    %v409 = vxor.u32 %v406, 2147483648
    %v410 = vmul.f32 %v409, 1.442695
    %v411 = vpow.pop %v410
    %v412 = vadd.f32 %v411, 1.0
    %v413 = vrcp.pop %v412
    %v414 = vmul.f32 %v412, %v413
    %v415 = vsub.f32 1.0, %v414
    %v416 = vmul.f32 %v413, %v415
    %v417 = vadd.f32 %v413, %v416
    %vm418 = vweird.f32 %v412
    %vm419 = vweird.f32 %v413
    %vm420 = vmor %vm418, %vm419
    %v421 = vsel %vm420, %v413, %v417
    %v422 = vand.u32 2147483647, %v412
    %vm423 = vcmp.eq.f32.partialorder %v422, 8.507059e+37
    %v424 = vand.u32 %v412, 2147483648
    %v425 = vor.u32 1.1754944e-38, %v424
    %v426 = vsel %vm423, %v425, %v421
    %v427 = vmul.f32 1.0, %v426
    %v428 = vtanh.pop %v406
    %v429 = vsel %vm71, %v428, %v427
    %430 = vrot.lane.b32.xlu0 %v429, 64
    %v431 = vpop.permute.xlu0 %430
    %v432 = vmul.f32 %v429, %v431
    %433 = vrot.lane.b32.xlu0 %v432, 32
    %v434 = vpop.permute.xlu0 %433
    %v435 = vmul.f32 %v429, %v341
    %v436 = vadd.f32 %v435, %v434
    %v437 = vtanh.pop %v436
    %v438 = vmul.f32 %v431, %v437
    %439 = vrot.lane.b32.xlu0 %v438, 64
    %v440 = vpop.permute.xlu0 %439
    %v441 = vsel %vm70, %v440, %v73
    %v442 = vsel %vm67, %v391, %v441
    %v443 = vpack.c.bf16 %v442, %v442
    %444 = vmatpush.bf16.msra.mxu0 %v245
    %445 = vmatpush.bf16.msra.mxu0 %v244
    %446 = vmatpush.bf16.msra.mxu0 %v243
    %447 = vmatpush.bf16.msra.mxu0 %v242
    %448 = vmatpush.bf16.msra.mxu0 %v241
    %449 = vmatpush.bf16.msra.mxu0 %v240
    %450 = vmatpush.bf16.msra.mxu0 %v239
    %451 = vmatpush.bf16.msra.mxu0 %v238
    %452 = vmatmul.bf16.gmra.mxu0 %v443
    %v453 = vpop.f32.mrf.mxu0
    %v454 = vadd.f32 0.0, %v453
    %v455 = vpop.f32.mrf.mxu0
    %456 = vdwg.mxu0
    %v457 = vxor.u32 %v454, 2147483648
    %v458 = vmul.f32 %v457, 1.442695
    %v459 = vpow.pop %v458
    %v460 = vadd.f32 %v459, 1.0
    %v461 = vrcp.pop %v460
    %v462 = vmul.f32 %v460, %v461
    %v463 = vsub.f32 1.0, %v462
    %v464 = vmul.f32 %v461, %v463
    %v465 = vadd.f32 %v461, %v464
    %vm466 = vweird.f32 %v460
    %vm467 = vweird.f32 %v461
    %vm468 = vmor %vm466, %vm467
    %v469 = vsel %vm468, %v461, %v465
    %v470 = vand.u32 2147483647, %v460
    %vm471 = vcmp.eq.f32.partialorder %v470, 8.507059e+37
    %v472 = vand.u32 %v460, 2147483648
    %v473 = vor.u32 1.1754944e-38, %v472
    %v474 = vsel %vm471, %v473, %v469
    %v475 = vmul.f32 1.0, %v474
    %v476 = vtanh.pop %v454
    %v477 = vsel %vm71, %v476, %v475
    %478 = vrot.lane.b32.xlu0 %v477, 64
    %v479 = vpop.permute.xlu0 %478
    %v480 = vmul.f32 %v477, %v479
    %481 = vrot.lane.b32.xlu0 %v480, 32
    %v482 = vpop.permute.xlu0 %481
    %v483 = vmul.f32 %v477, %v389
    %v484 = vadd.f32 %v483, %v482
    %v485 = vtanh.pop %v484
    %v486 = vmul.f32 %v479, %v485
    %s487 = scalar_lea.vmem [#allocation2], 24
    %v488 = vld [vmem:[%s487] sm:$0xff]
    %v489 = vsel %vm67, %v438, %v488
    %v490 = vpack.c.bf16 %v489, %v489
    %491 = vmatpush.bf16.msra.mxu0 %v132
    %492 = vmatpush.bf16.msra.mxu0 %v131
    %493 = vmatpush.bf16.msra.mxu0 %v130
    %494 = vmatpush.bf16.msra.mxu0 %v129
    %495 = vmatpush.bf16.msra.mxu0 %v128
    %496 = vmatpush.bf16.msra.mxu0 %v127
    %497 = vmatpush.bf16.msra.mxu0 %v126
    %498 = vmatpush.bf16.msra.mxu0 %v125
    %499 = vmatmul.bf16.gmra.mxu0 %v490
    %v500 = vpop.f32.mrf.mxu0
    %v501 = vadd.f32 0.0, %v500
    %v502 = vpop.f32.mrf.mxu0
    %503 = vdwg.mxu0
    %v504 = vxor.u32 %v501, 2147483648
    %v505 = vmul.f32 %v504, 1.442695
    %v506 = vpow.pop %v505
    %v507 = vadd.f32 %v506, 1.0
    %v508 = vrcp.pop %v507
    %v509 = vmul.f32 %v507, %v508
    %v510 = vsub.f32 1.0, %v509
    %v511 = vmul.f32 %v508, %v510
    %v512 = vadd.f32 %v508, %v511
    %vm513 = vweird.f32 %v507
    %vm514 = vweird.f32 %v508
    %vm515 = vmor %vm513, %vm514
    %v516 = vsel %vm515, %v508, %v512
    %v517 = vand.u32 2147483647, %v507
    %vm518 = vcmp.eq.f32.partialorder %v517, 8.507059e+37
    %v519 = vand.u32 %v507, 2147483648
    %v520 = vor.u32 1.1754944e-38, %v519
    %v521 = vsel %vm518, %v520, %v516
    %v522 = vmul.f32 1.0, %v521
    %v523 = vtanh.pop %v501
    %v524 = vsel %vm71, %v523, %v522
    %525 = vrot.lane.b32.xlu0 %v524, 64
    %v526 = vpop.permute.xlu0 %525
    %v527 = vmul.f32 %v524, %v526
    %528 = vrot.lane.b32.xlu0 %v527, 32
    %v529 = vpop.permute.xlu0 %528
    %v530 = vmul.f32 %v524, %v436
    %v531 = vadd.f32 %v530, %v529
    %v532 = vtanh.pop %v531
    %v533 = vmul.f32 %v526, %v532
    %534 = vrot.lane.b32.xlu0 %v533, 64
    %v535 = vpop.permute.xlu0 %534
    %v536 = vsel %vm70, %v535, %v73
    %v537 = vsel %vm67, %v486, %v536
    %v538 = vpack.c.bf16 %v537, %v537
    %539 = vmatpush.bf16.msra.mxu0 %v245
    %540 = vmatpush.bf16.msra.mxu0 %v244
    %541 = vmatpush.bf16.msra.mxu0 %v243
    %542 = vmatpush.bf16.msra.mxu0 %v242
    %543 = vmatpush.bf16.msra.mxu0 %v241
    %544 = vmatpush.bf16.msra.mxu0 %v240
    %545 = vmatpush.bf16.msra.mxu0 %v239
    %546 = vmatpush.bf16.msra.mxu0 %v238
    %547 = vmatmul.bf16.gmra.mxu0 %v538
    %v548 = vpop.f32.mrf.mxu0
    %v549 = vadd.f32 0.0, %v548
    %v550 = vpop.f32.mrf.mxu0
    %551 = vdwg.mxu0
    %v552 = vxor.u32 %v549, 2147483648
    %v553 = vmul.f32 %v552, 1.442695
    %v554 = vpow.pop %v553
    %v555 = vadd.f32 %v554, 1.0
    %v556 = vrcp.pop %v555
    %v557 = vmul.f32 %v555, %v556
    %v558 = vsub.f32 1.0, %v557
    %v559 = vmul.f32 %v556, %v558
    %v560 = vadd.f32 %v556, %v559
    %vm561 = vweird.f32 %v555
    %vm562 = vweird.f32 %v556
    %vm563 = vmor %vm561, %vm562
    %v564 = vsel %vm563, %v556, %v560
    %v565 = vand.u32 2147483647, %v555
    %vm566 = vcmp.eq.f32.partialorder %v565, 8.507059e+37
    %v567 = vand.u32 %v555, 2147483648
    %v568 = vor.u32 1.1754944e-38, %v567
    %v569 = vsel %vm566, %v568, %v564
    %v570 = vmul.f32 1.0, %v569
    %v571 = vtanh.pop %v549
    %v572 = vsel %vm71, %v571, %v570
    %573 = vrot.lane.b32.xlu0 %v572, 64
    %v574 = vpop.permute.xlu0 %573
    %v575 = vmul.f32 %v572, %v574
    %576 = vrot.lane.b32.xlu0 %v575, 32
    %v577 = vpop.permute.xlu0 %576
    %v578 = vmul.f32 %v572, %v484
    %v579 = vadd.f32 %v578, %v577
    %v580 = vtanh.pop %v579
    %v581 = vmul.f32 %v574, %v580
    %s582 = scalar_lea.vmem [#allocation2], 32
    %v583 = vld [vmem:[%s582] sm:$0xff]
    %v584 = vsel %vm67, %v533, %v583
    %v585 = vpack.c.bf16 %v584, %v584
    %586 = vmatpush.bf16.msra.mxu0 %v132
    %587 = vmatpush.bf16.msra.mxu0 %v131
    %588 = vmatpush.bf16.msra.mxu0 %v130
    %589 = vmatpush.bf16.msra.mxu0 %v129
    %590 = vmatpush.bf16.msra.mxu0 %v128
    %591 = vmatpush.bf16.msra.mxu0 %v127
    %592 = vmatpush.bf16.msra.mxu0 %v126
    %593 = vmatpush.bf16.msra.mxu0 %v125
    %594 = vmatmul.bf16.gmra.mxu0 %v585
    %v595 = vpop.f32.mrf.mxu0
    %v596 = vadd.f32 0.0, %v595
    %v597 = vpop.f32.mrf.mxu0
    %598 = vdwg.mxu0
    %v599 = vxor.u32 %v596, 2147483648
    %v600 = vmul.f32 %v599, 1.442695
    %v601 = vpow.pop %v600
    %v602 = vadd.f32 %v601, 1.0
    %v603 = vrcp.pop %v602
    %v604 = vmul.f32 %v602, %v603
    %v605 = vsub.f32 1.0, %v604
    %v606 = vmul.f32 %v603, %v605
    %v607 = vadd.f32 %v603, %v606
    %vm608 = vweird.f32 %v602
    %vm609 = vweird.f32 %v603
    %vm610 = vmor %vm608, %vm609
    %v611 = vsel %vm610, %v603, %v607
    %v612 = vand.u32 2147483647, %v602
    %vm613 = vcmp.eq.f32.partialorder %v612, 8.507059e+37
    %v614 = vand.u32 %v602, 2147483648
    %v615 = vor.u32 1.1754944e-38, %v614
    %v616 = vsel %vm613, %v615, %v611
    %v617 = vmul.f32 1.0, %v616
    %v618 = vtanh.pop %v596
    %v619 = vsel %vm71, %v618, %v617
    %620 = vrot.lane.b32.xlu0 %v619, 64
    %v621 = vpop.permute.xlu0 %620
    %v622 = vmul.f32 %v619, %v621
    %623 = vrot.lane.b32.xlu0 %v622, 32
    %v624 = vpop.permute.xlu0 %623
    %v625 = vmul.f32 %v619, %v531
    %v626 = vadd.f32 %v625, %v624
    %v627 = vtanh.pop %v626
    %v628 = vmul.f32 %v621, %v627
    %629 = vrot.lane.b32.xlu0 %v628, 64
    %v630 = vpop.permute.xlu0 %629
    %v631 = vsel %vm70, %v630, %v73
    %v632 = vsel %vm67, %v581, %v631
    %v633 = vpack.c.bf16 %v632, %v632
    %634 = vmatpush.bf16.msra.mxu0 %v245
    %635 = vmatpush.bf16.msra.mxu0 %v244
    %636 = vmatpush.bf16.msra.mxu0 %v243
    %637 = vmatpush.bf16.msra.mxu0 %v242
    %638 = vmatpush.bf16.msra.mxu0 %v241
    %639 = vmatpush.bf16.msra.mxu0 %v240
    %640 = vmatpush.bf16.msra.mxu0 %v239
    %641 = vmatpush.bf16.msra.mxu0 %v238
    %642 = vmatmul.bf16.gmra.mxu0 %v633
    %v643 = vpop.f32.mrf.mxu0
    %v644 = vadd.f32 0.0, %v643
    %v645 = vpop.f32.mrf.mxu0
    %646 = vdwg.mxu0
    %v647 = vxor.u32 %v644, 2147483648
    %v648 = vmul.f32 %v647, 1.442695
    %v649 = vpow.pop %v648
    %v650 = vadd.f32 %v649, 1.0
    %v651 = vrcp.pop %v650
    %v652 = vmul.f32 %v650, %v651
    %v653 = vsub.f32 1.0, %v652
    %v654 = vmul.f32 %v651, %v653
    %v655 = vadd.f32 %v651, %v654
    %vm656 = vweird.f32 %v650
    %vm657 = vweird.f32 %v651
    %vm658 = vmor %vm656, %vm657
    %v659 = vsel %vm658, %v651, %v655
    %v660 = vand.u32 2147483647, %v650
    %vm661 = vcmp.eq.f32.partialorder %v660, 8.507059e+37
    %v662 = vand.u32 %v650, 2147483648
    %v663 = vor.u32 1.1754944e-38, %v662
    %v664 = vsel %vm661, %v663, %v659
    %v665 = vmul.f32 1.0, %v664
    %v666 = vtanh.pop %v644
    %v667 = vsel %vm71, %v666, %v665
    %668 = vrot.lane.b32.xlu0 %v667, 64
    %v669 = vpop.permute.xlu0 %668
    %v670 = vmul.f32 %v667, %v669
    %671 = vrot.lane.b32.xlu0 %v670, 32
    %v672 = vpop.permute.xlu0 %671
    %v673 = vmul.f32 %v667, %v579
    %v674 = vadd.f32 %v673, %v672
    %v675 = vtanh.pop %v674
    %v676 = vmul.f32 %v669, %v675
    %s677 = scalar_lea.vmem [#allocation2], 40
    %v678 = vld [vmem:[%s677] sm:$0xff]
    %v679 = vsel %vm67, %v628, %v678
    %v680 = vpack.c.bf16 %v679, %v679
    %681 = vmatpush.bf16.msra.mxu0 %v132
    %682 = vmatpush.bf16.msra.mxu0 %v131
    %683 = vmatpush.bf16.msra.mxu0 %v130
    %684 = vmatpush.bf16.msra.mxu0 %v129
    %685 = vmatpush.bf16.msra.mxu0 %v128
    %686 = vmatpush.bf16.msra.mxu0 %v127
    %687 = vmatpush.bf16.msra.mxu0 %v126
    %688 = vmatpush.bf16.msra.mxu0 %v125
    %689 = vmatmul.bf16.gmra.mxu0 %v680
    %v690 = vpop.f32.mrf.mxu0
    %v691 = vadd.f32 0.0, %v690
    %v692 = vpop.f32.mrf.mxu0
    %693 = vdwg.mxu0
    %v694 = vxor.u32 %v691, 2147483648
    %v695 = vmul.f32 %v694, 1.442695
    %v696 = vpow.pop %v695
    %v697 = vadd.f32 %v696, 1.0
    %v698 = vrcp.pop %v697
    %v699 = vmul.f32 %v697, %v698
    %v700 = vsub.f32 1.0, %v699
    %v701 = vmul.f32 %v698, %v700
    %v702 = vadd.f32 %v698, %v701
    %vm703 = vweird.f32 %v697
    %vm704 = vweird.f32 %v698
    %vm705 = vmor %vm703, %vm704
    %v706 = vsel %vm705, %v698, %v702
    %v707 = vand.u32 2147483647, %v697
    %vm708 = vcmp.eq.f32.partialorder %v707, 8.507059e+37
    %v709 = vand.u32 %v697, 2147483648
    %v710 = vor.u32 1.1754944e-38, %v709
    %v711 = vsel %vm708, %v710, %v706
    %v712 = vmul.f32 1.0, %v711
    %v713 = vtanh.pop %v691
    %v714 = vsel %vm71, %v713, %v712
    %715 = vrot.lane.b32.xlu0 %v714, 64
    %v716 = vpop.permute.xlu0 %715
    %v717 = vmul.f32 %v714, %v716
    %718 = vrot.lane.b32.xlu0 %v717, 32
    %v719 = vpop.permute.xlu0 %718
    %v720 = vmul.f32 %v714, %v626
    %v721 = vadd.f32 %v720, %v719
    %v722 = vtanh.pop %v721
    %v723 = vmul.f32 %v716, %v722
    %724 = vrot.lane.b32.xlu0 %v723, 64
    %v725 = vpop.permute.xlu0 %724
    %v726 = vsel %vm70, %v725, %v73
    %v727 = vsel %vm67, %v676, %v726
    %v728 = vpack.c.bf16 %v727, %v727
    %729 = vmatpush.bf16.msra.mxu0 %v245
    %730 = vmatpush.bf16.msra.mxu0 %v244
    %731 = vmatpush.bf16.msra.mxu0 %v243
    %732 = vmatpush.bf16.msra.mxu0 %v242
    %733 = vmatpush.bf16.msra.mxu0 %v241
    %734 = vmatpush.bf16.msra.mxu0 %v240
    %735 = vmatpush.bf16.msra.mxu0 %v239
    %736 = vmatpush.bf16.msra.mxu0 %v238
    %737 = vmatmul.bf16.gmra.mxu0 %v728
    %v738 = vpop.f32.mrf.mxu0
    %v739 = vadd.f32 0.0, %v738
    %v740 = vpop.f32.mrf.mxu0
    %741 = vdwg.mxu0
    %v742 = vxor.u32 %v739, 2147483648
    %v743 = vmul.f32 %v742, 1.442695
    %v744 = vpow.pop %v743
    %v745 = vadd.f32 %v744, 1.0
    %v746 = vrcp.pop %v745
    %v747 = vmul.f32 %v745, %v746
    %v748 = vsub.f32 1.0, %v747
    %v749 = vmul.f32 %v746, %v748
    %v750 = vadd.f32 %v746, %v749
    %vm751 = vweird.f32 %v745
    %vm752 = vweird.f32 %v746
    %vm753 = vmor %vm751, %vm752
    %v754 = vsel %vm753, %v746, %v750
    %v755 = vand.u32 2147483647, %v745
    %vm756 = vcmp.eq.f32.partialorder %v755, 8.507059e+37
    %v757 = vand.u32 %v745, 2147483648
    %v758 = vor.u32 1.1754944e-38, %v757
    %v759 = vsel %vm756, %v758, %v754
    %v760 = vmul.f32 1.0, %v759
    %v761 = vtanh.pop %v739
    %v762 = vsel %vm71, %v761, %v760
    %763 = vrot.lane.b32.xlu0 %v762, 64
    %v764 = vpop.permute.xlu0 %763
    %v765 = vmul.f32 %v762, %v764
    %766 = vrot.lane.b32.xlu0 %v765, 32
    %v767 = vpop.permute.xlu0 %766
    %v768 = vmul.f32 %v762, %v674
    %v769 = vadd.f32 %v768, %v767
    %v770 = vtanh.pop %v769
    %v771 = vmul.f32 %v764, %v770
    %s772 = scalar_lea.vmem [#allocation2], 48
    %v773 = vld [vmem:[%s772] sm:$0xff]
    %v774 = vsel %vm67, %v723, %v773
    %v775 = vpack.c.bf16 %v774, %v774
    %776 = vmatpush.bf16.msra.mxu0 %v132
    %777 = vmatpush.bf16.msra.mxu0 %v131
    %778 = vmatpush.bf16.msra.mxu0 %v130
    %779 = vmatpush.bf16.msra.mxu0 %v129
    %780 = vmatpush.bf16.msra.mxu0 %v128
    %781 = vmatpush.bf16.msra.mxu0 %v127
    %782 = vmatpush.bf16.msra.mxu0 %v126
    %783 = vmatpush.bf16.msra.mxu0 %v125
    %784 = vmatmul.bf16.gmra.mxu0 %v775
    %v785 = vpop.f32.mrf.mxu0
    %v786 = vadd.f32 0.0, %v785
    %v787 = vpop.f32.mrf.mxu0
    %788 = vdwg.mxu0
    %v789 = vxor.u32 %v786, 2147483648
    %v790 = vmul.f32 %v789, 1.442695
    %v791 = vpow.pop %v790
    %v792 = vadd.f32 %v791, 1.0
    %v793 = vrcp.pop %v792
    %v794 = vmul.f32 %v792, %v793
    %v795 = vsub.f32 1.0, %v794
    %v796 = vmul.f32 %v793, %v795
    %v797 = vadd.f32 %v793, %v796
    %vm798 = vweird.f32 %v792
    %vm799 = vweird.f32 %v793
    %vm800 = vmor %vm798, %vm799
    %v801 = vsel %vm800, %v793, %v797
    %v802 = vand.u32 2147483647, %v792
    %vm803 = vcmp.eq.f32.partialorder %v802, 8.507059e+37
    %v804 = vand.u32 %v792, 2147483648
    %v805 = vor.u32 1.1754944e-38, %v804
    %v806 = vsel %vm803, %v805, %v801
    %v807 = vmul.f32 1.0, %v806
    %v808 = vtanh.pop %v786
    %v809 = vsel %vm71, %v808, %v807
    %810 = vrot.lane.b32.xlu0 %v809, 64
    %v811 = vpop.permute.xlu0 %810
    %v812 = vmul.f32 %v809, %v811
    %813 = vrot.lane.b32.xlu0 %v812, 32
    %v814 = vpop.permute.xlu0 %813
    %v815 = vmul.f32 %v809, %v721
    %v816 = vadd.f32 %v815, %v814
    %v817 = vtanh.pop %v816
    %v818 = vmul.f32 %v811, %v817
    %819 = vrot.lane.b32.xlu0 %v818, 64
    %v820 = vpop.permute.xlu0 %819
    %v821 = vsel %vm70, %v820, %v73
    %v822 = vsel %vm67, %v771, %v821
    %v823 = vpack.c.bf16 %v822, %v822
    %824 = vmatpush.bf16.msra.mxu0 %v245
    %825 = vmatpush.bf16.msra.mxu0 %v244
    %826 = vmatpush.bf16.msra.mxu0 %v243
    %827 = vmatpush.bf16.msra.mxu0 %v242
    %828 = vmatpush.bf16.msra.mxu0 %v241
    %829 = vmatpush.bf16.msra.mxu0 %v240
    %830 = vmatpush.bf16.msra.mxu0 %v239
    %831 = vmatpush.bf16.msra.mxu0 %v238
    %832 = vmatmul.bf16.gmra.mxu0 %v823
    %v833 = vpop.f32.mrf.mxu0
    %v834 = vadd.f32 0.0, %v833
    %v835 = vpop.f32.mrf.mxu0
    %836 = vdwg.mxu0
    %v837 = vxor.u32 %v834, 2147483648
    %v838 = vmul.f32 %v837, 1.442695
    %v839 = vpow.pop %v838
    %v840 = vadd.f32 %v839, 1.0
    %v841 = vrcp.pop %v840
    %v842 = vmul.f32 %v840, %v841
    %v843 = vsub.f32 1.0, %v842
    %v844 = vmul.f32 %v841, %v843
    %v845 = vadd.f32 %v841, %v844
    %vm846 = vweird.f32 %v840
    %vm847 = vweird.f32 %v841
    %vm848 = vmor %vm846, %vm847
    %v849 = vsel %vm848, %v841, %v845
    %v850 = vand.u32 2147483647, %v840
    %vm851 = vcmp.eq.f32.partialorder %v850, 8.507059e+37
    %v852 = vand.u32 %v840, 2147483648
    %v853 = vor.u32 1.1754944e-38, %v852
    %v854 = vsel %vm851, %v853, %v849
    %v855 = vmul.f32 1.0, %v854
    %v856 = vtanh.pop %v834
    %v857 = vsel %vm71, %v856, %v855
    %858 = vrot.lane.b32.xlu0 %v857, 64
    %v859 = vpop.permute.xlu0 %858
    %v860 = vmul.f32 %v857, %v859
    %861 = vrot.lane.b32.xlu0 %v860, 32
    %v862 = vpop.permute.xlu0 %861
    %v863 = vmul.f32 %v857, %v769
    %v864 = vadd.f32 %v863, %v862
    %v865 = vtanh.pop %v864
    %v866 = vmul.f32 %v859, %v865
    %s867 = scalar_lea.vmem [#allocation2], 56
    %v868 = vld [vmem:[%s867] sm:$0xff]
    %v869 = vsel %vm67, %v818, %v868
    %v870 = vpack.c.bf16 %v869, %v869
    %871 = vmatpush.bf16.msra.mxu0 %v132
    %872 = vmatpush.bf16.msra.mxu0 %v131
    %873 = vmatpush.bf16.msra.mxu0 %v130
    %874 = vmatpush.bf16.msra.mxu0 %v129
    %875 = vmatpush.bf16.msra.mxu0 %v128
    %876 = vmatpush.bf16.msra.mxu0 %v127
    %877 = vmatpush.bf16.msra.mxu0 %v126
    %878 = vmatpush.bf16.msra.mxu0 %v125
    %879 = vmatmul.bf16.gmra.mxu0 %v870
    %v880 = vpop.f32.mrf.mxu0
    %v881 = vadd.f32 0.0, %v880
    %v882 = vpop.f32.mrf.mxu0
    %883 = vdwg.mxu0
    %v884 = vxor.u32 %v881, 2147483648
    %v885 = vmul.f32 %v884, 1.442695
    %v886 = vpow.pop %v885
    %v887 = vadd.f32 %v886, 1.0
    %v888 = vrcp.pop %v887
    %v889 = vmul.f32 %v887, %v888
    %v890 = vsub.f32 1.0, %v889
    %v891 = vmul.f32 %v888, %v890
    %v892 = vadd.f32 %v888, %v891
    %vm893 = vweird.f32 %v887
    %vm894 = vweird.f32 %v888
    %vm895 = vmor %vm893, %vm894
    %v896 = vsel %vm895, %v888, %v892
    %v897 = vand.u32 2147483647, %v887
    %vm898 = vcmp.eq.f32.partialorder %v897, 8.507059e+37
    %v899 = vand.u32 %v887, 2147483648
    %v900 = vor.u32 1.1754944e-38, %v899
    %v901 = vsel %vm898, %v900, %v896
    %v902 = vmul.f32 1.0, %v901
    %v903 = vtanh.pop %v881
    %v904 = vsel %vm71, %v903, %v902
    %905 = vrot.lane.b32.xlu0 %v904, 64
    %v906 = vpop.permute.xlu0 %905
    %v907 = vmul.f32 %v904, %v906
    %908 = vrot.lane.b32.xlu0 %v907, 32
    %v909 = vpop.permute.xlu0 %908
    %v910 = vmul.f32 %v904, %v816
    %v911 = vadd.f32 %v910, %v909
    %v912 = vtanh.pop %v911
    %v913 = vmul.f32 %v906, %v912
    %914 = vrot.lane.b32.xlu0 %v913, 64
    %v915 = vpop.permute.xlu0 %914
    %v916 = vsel %vm70, %v915, %v73
    %v917 = vsel %vm67, %v866, %v916
    %v918 = vpack.c.bf16 %v917, %v917
    %919 = vmatpush.bf16.msra.mxu0 %v245
    %920 = vmatpush.bf16.msra.mxu0 %v244
    %921 = vmatpush.bf16.msra.mxu0 %v243
    %922 = vmatpush.bf16.msra.mxu0 %v242
    %923 = vmatpush.bf16.msra.mxu0 %v241
    %924 = vmatpush.bf16.msra.mxu0 %v240
    %925 = vmatpush.bf16.msra.mxu0 %v239
    %926 = vmatpush.bf16.msra.mxu0 %v238
    %927 = vmatmul.bf16.gmra.mxu0 %v918
    %v928 = vpop.f32.mrf.mxu0
    %v929 = vadd.f32 0.0, %v928
    %v930 = vpop.f32.mrf.mxu0
    %931 = vdwg.mxu0
    %v932 = vxor.u32 %v929, 2147483648
    %v933 = vmul.f32 %v932, 1.442695
    %v934 = vpow.pop %v933
    %v935 = vadd.f32 %v934, 1.0
    %v936 = vrcp.pop %v935
    %v937 = vmul.f32 %v935, %v936
    %v938 = vsub.f32 1.0, %v937
    %v939 = vmul.f32 %v936, %v938
    %v940 = vadd.f32 %v936, %v939
    %vm941 = vweird.f32 %v935
    %vm942 = vweird.f32 %v936
    %vm943 = vmor %vm941, %vm942
    %v944 = vsel %vm943, %v936, %v940
    %v945 = vand.u32 2147483647, %v935
    %vm946 = vcmp.eq.f32.partialorder %v945, 8.507059e+37
    %v947 = vand.u32 %v935, 2147483648
    %v948 = vor.u32 1.1754944e-38, %v947
    %v949 = vsel %vm946, %v948, %v944
    %v950 = vmul.f32 1.0, %v949
    %v951 = vtanh.pop %v929
    %v952 = vsel %vm71, %v951, %v950
    %953 = vrot.lane.b32.xlu0 %v952, 64
    %v954 = vpop.permute.xlu0 %953
    %v955 = vmul.f32 %v952, %v954
    %956 = vrot.lane.b32.xlu0 %v955, 32
    %v957 = vpop.permute.xlu0 %956
    %v958 = vmul.f32 %v952, %v864
    %v959 = vadd.f32 %v958, %v957
    %v960 = vtanh.pop %v959
    %v961 = vmul.f32 %v954, %v960
    %962 = vrot.lane.b32.xlu0 %v961, 64
    %v963 = vpop.permute.xlu0 %962
    %v964 = vsel %vm70, %v963, %v73
    %v965 = vsel %vm67, %v913, %v964
    %s966 = scalar_lea.vmem [#allocation5], 128
    %v967 = vld [vmem:[%s966] sm:$0xf]
    %v968 = vld [vmem:[%s966 + $0x4] sm:$0xf]
    %v969 = vld [vmem:[%s966 + $0x8] sm:$0xf]
    %v970 = vld [vmem:[%s966 + $0xc] sm:$0xf]
    %v971 = vld [vmem:[%s966 + $0x10] sm:$0xf]
    %v972 = vld [vmem:[%s966 + $0x14] sm:$0xf]
    %v973 = vld [vmem:[%s966 + $0x18] sm:$0xf]
    %v974 = vld [vmem:[%s966 + $0x1c] sm:$0xf]
    %v975 = vld [vmem:[%s966 + $0x20] sm:$0xf]
    %v976 = vld [vmem:[%s966 + $0x24] sm:$0xf]
    %v977 = vld [vmem:[%s966 + $0x28] sm:$0xf]
    %v978 = vld [vmem:[%s966 + $0x2c] sm:$0xf]
    %v979 = vld [vmem:[%s966 + $0x30] sm:$0xf]
    %v980 = vld [vmem:[%s966 + $0x34] sm:$0xf]
    %v981 = vld [vmem:[%s966 + $0x38] sm:$0xf]
    %v982 = vld [vmem:[%s966 + $0x3c] sm:$0xf]
    %v983 = vpack.c.bf16 %v965, %v965
    %v1000 = vunpack.c.l.b16 %v967
    %v1001 = vunpack.c.l.b16 %v968
    %v1002 = vunpack.c.l.b16 %v969
    %v1003 = vunpack.c.l.b16 %v970
    %v1004 = vunpack.c.l.b16 %v971
    %v1005 = vunpack.c.l.b16 %v972
    %v1006 = vunpack.c.l.b16 %v973
    %v1007 = vunpack.c.l.b16 %v974
    %v1008 = vunpack.c.l.b16 %v975
    %v1009 = vunpack.c.l.b16 %v976
    %v1010 = vunpack.c.l.b16 %v977
    %v1011 = vunpack.c.l.b16 %v978
    %v1012 = vunpack.c.l.b16 %v979
    %v1013 = vunpack.c.l.b16 %v980
    %v1014 = vunpack.c.l.b16 %v981
    %v1015 = vunpack.c.l.b16 %v982
    %v1016 = vpack.c.b16 %v1001, %v1000
    %v1017 = vpack.c.b16 %v1003, %v1002
    %v1018 = vpack.c.b16 %v1005, %v1004
    %v1019 = vpack.c.b16 %v1007, %v1006
    %v1020 = vpack.c.b16 %v1009, %v1008
    %v1021 = vpack.c.b16 %v1011, %v1010
    %v1022 = vpack.c.b16 %v1013, %v1012
    %v1023 = vpack.c.b16 %v1015, %v1014
    %1032 = vmatpush.bf16.msra.mxu0 %v1023
    %1033 = vmatpush.bf16.msra.mxu0 %v1022
    %1034 = vmatpush.bf16.msra.mxu0 %v1021
    %1035 = vmatpush.bf16.msra.mxu0 %v1020
    %1036 = vmatpush.bf16.msra.mxu0 %v1019
    %1037 = vmatpush.bf16.msra.mxu0 %v1018
    %1038 = vmatpush.bf16.msra.mxu0 %v1017
    %1039 = vmatpush.bf16.msra.mxu0 %v1016
    %1040 = vmatmul.bf16.gmra.mxu0 %v983
    %v1041 = vpop.f32.mrf.mxu0
    %v1042 = vadd.f32 0.0, %v1041
    %v1043 = vpop.f32.mrf.mxu0
    %1044 = vdwg.mxu0
    %v1045 = vxor.u32 %v1042, 2147483648
    %v1046 = vmul.f32 %v1045, 1.442695
    %v1047 = vpow.pop %v1046
    %v1048 = vadd.f32 %v1047, 1.0
    %v1049 = vrcp.pop %v1048
    %v1050 = vmul.f32 %v1048, %v1049
    %v1051 = vsub.f32 1.0, %v1050
    %v1052 = vmul.f32 %v1049, %v1051
    %v1053 = vadd.f32 %v1049, %v1052
    %vm1054 = vweird.f32 %v1048
    %vm1055 = vweird.f32 %v1049
    %vm1056 = vmor %vm1054, %vm1055
    %v1057 = vsel %vm1056, %v1049, %v1053
    %v1058 = vand.u32 2147483647, %v1048
    %vm1059 = vcmp.eq.f32.partialorder %v1058, 8.507059e+37
    %v1060 = vand.u32 %v1048, 2147483648
    %v1061 = vor.u32 1.1754944e-38, %v1060
    %v1062 = vsel %vm1059, %v1061, %v1057
    %v1063 = vmul.f32 1.0, %v1062
    %v1064 = vtanh.pop %v1042
    %v1065 = vsel %vm71, %v1064, %v1063
    %1066 = vrot.lane.b32.xlu0 %v1065, 64
    %v1067 = vpop.permute.xlu0 %1066
    %v1068 = vmul.f32 %v1065, %v1067
    %1069 = vrot.lane.b32.xlu0 %v1068, 32
    %v1070 = vpop.permute.xlu0 %1069
    %v1071 = vmul.f32 %v1065, %v911
    %v1072 = vadd.f32 %v1071, %v1070
    %v1073 = vtanh.pop %v1072
    %v1074 = vmul.f32 %v1067, %v1073
    %1075 = vrot.lane.b32.xlu0 %v1074, 64
    %v1076 = vpop.permute.xlu0 %1075
    %v1077 = vsel %vm70, %v1076, %v73
    %v1078 = vsel %vm67, %v961, %v1077
    %s1079 = scalar_lea.vmem [#allocation5], 192
    %v1080 = vld [vmem:[%s1079] sm:$0xf]
    %v1081 = vld [vmem:[%s1079 + $0x4] sm:$0xf]
    %v1082 = vld [vmem:[%s1079 + $0x8] sm:$0xf]
    %v1083 = vld [vmem:[%s1079 + $0xc] sm:$0xf]
    %v1084 = vld [vmem:[%s1079 + $0x10] sm:$0xf]
    %v1085 = vld [vmem:[%s1079 + $0x14] sm:$0xf]
    %v1086 = vld [vmem:[%s1079 + $0x18] sm:$0xf]
    %v1087 = vld [vmem:[%s1079 + $0x1c] sm:$0xf]
    %v1088 = vld [vmem:[%s1079 + $0x20] sm:$0xf]
    %v1089 = vld [vmem:[%s1079 + $0x24] sm:$0xf]
    %v1090 = vld [vmem:[%s1079 + $0x28] sm:$0xf]
    %v1091 = vld [vmem:[%s1079 + $0x2c] sm:$0xf]
    %v1092 = vld [vmem:[%s1079 + $0x30] sm:$0xf]
    %v1093 = vld [vmem:[%s1079 + $0x34] sm:$0xf]
    %v1094 = vld [vmem:[%s1079 + $0x38] sm:$0xf]
    %v1095 = vld [vmem:[%s1079 + $0x3c] sm:$0xf]
    %v1096 = vpack.c.bf16 %v1078, %v1078
    %v1113 = vunpack.c.l.b16 %v1080
    %v1114 = vunpack.c.l.b16 %v1081
    %v1115 = vunpack.c.l.b16 %v1082
    %v1116 = vunpack.c.l.b16 %v1083
    %v1117 = vunpack.c.l.b16 %v1084
    %v1118 = vunpack.c.l.b16 %v1085
    %v1119 = vunpack.c.l.b16 %v1086
    %v1120 = vunpack.c.l.b16 %v1087
    %v1121 = vunpack.c.l.b16 %v1088
    %v1122 = vunpack.c.l.b16 %v1089
    %v1123 = vunpack.c.l.b16 %v1090
    %v1124 = vunpack.c.l.b16 %v1091
    %v1125 = vunpack.c.l.b16 %v1092
    %v1126 = vunpack.c.l.b16 %v1093
    %v1127 = vunpack.c.l.b16 %v1094
    %v1128 = vunpack.c.l.b16 %v1095
    %v1129 = vpack.c.b16 %v1114, %v1113
    %v1130 = vpack.c.b16 %v1116, %v1115
    %v1131 = vpack.c.b16 %v1118, %v1117
    %v1132 = vpack.c.b16 %v1120, %v1119
    %v1133 = vpack.c.b16 %v1122, %v1121
    %v1134 = vpack.c.b16 %v1124, %v1123
    %v1135 = vpack.c.b16 %v1126, %v1125
    %v1136 = vpack.c.b16 %v1128, %v1127
    %1145 = vmatpush.bf16.msra.mxu0 %v1136
    %1146 = vmatpush.bf16.msra.mxu0 %v1135
    %1147 = vmatpush.bf16.msra.mxu0 %v1134
    %1148 = vmatpush.bf16.msra.mxu0 %v1133
    %1149 = vmatpush.bf16.msra.mxu0 %v1132
    %1150 = vmatpush.bf16.msra.mxu0 %v1131
    %1151 = vmatpush.bf16.msra.mxu0 %v1130
    %1152 = vmatpush.bf16.msra.mxu0 %v1129
    %1153 = vmatmul.bf16.gmra.mxu0 %v1096
    %v1154 = vpop.f32.mrf.mxu0
    %v1155 = vadd.f32 0.0, %v1154
    %v1156 = vpop.f32.mrf.mxu0
    %1157 = vdwg.mxu0
    %v1158 = vxor.u32 %v1155, 2147483648
    %v1159 = vmul.f32 %v1158, 1.442695
    %v1160 = vpow.pop %v1159
    %v1161 = vadd.f32 %v1160, 1.0
    %v1162 = vrcp.pop %v1161
    %v1163 = vmul.f32 %v1161, %v1162
    %v1164 = vsub.f32 1.0, %v1163
    %v1165 = vmul.f32 %v1162, %v1164
    %v1166 = vadd.f32 %v1162, %v1165
    %vm1167 = vweird.f32 %v1161
    %vm1168 = vweird.f32 %v1162
    %vm1169 = vmor %vm1167, %vm1168
    %v1170 = vsel %vm1169, %v1162, %v1166
    %v1171 = vand.u32 2147483647, %v1161
    %vm1172 = vcmp.eq.f32.partialorder %v1171, 8.507059e+37
    %v1173 = vand.u32 %v1161, 2147483648
    %v1174 = vor.u32 1.1754944e-38, %v1173
    %v1175 = vsel %vm1172, %v1174, %v1170
    %v1176 = vmul.f32 1.0, %v1175
    %v1177 = vtanh.pop %v1155
    %v1178 = vsel %vm71, %v1177, %v1176
    %1179 = vrot.lane.b32.xlu0 %v1178, 64
    %v1180 = vpop.permute.xlu0 %1179
    %v1181 = vmul.f32 %v1178, %v1180
    %1182 = vrot.lane.b32.xlu0 %v1181, 32
    %v1183 = vpop.permute.xlu0 %1182
    %v1184 = vmul.f32 %v1178, %v959
    %v1185 = vadd.f32 %v1184, %v1183
    %v1186 = vtanh.pop %v1185
    %v1187 = vmul.f32 %v1180, %v1186
    %1188 = vst [vmem:[#allocation8] sm:$0xff] %v1187
    %1189 = vrot.lane.b32.xlu0 %v1187, 64
    %v1190 = vpop.permute.xlu0 %1189
    %v1191 = vsel %vm70, %v1190, %v73
    %v1192 = vsel %vm67, %v1074, %v1191
    %v1193 = vld [vmem:[%s966] sm:$0xf]
    %v1194 = vld [vmem:[%s966 + $0x4] sm:$0xf]
    %v1195 = vld [vmem:[%s966 + $0x8] sm:$0xf]
    %v1196 = vld [vmem:[%s966 + $0xc] sm:$0xf]
    %v1197 = vld [vmem:[%s966 + $0x10] sm:$0xf]
    %v1198 = vld [vmem:[%s966 + $0x14] sm:$0xf]
    %v1199 = vld [vmem:[%s966 + $0x18] sm:$0xf]
    %v1200 = vld [vmem:[%s966 + $0x1c] sm:$0xf]
    %v1201 = vld [vmem:[%s966 + $0x20] sm:$0xf]
    %v1202 = vld [vmem:[%s966 + $0x24] sm:$0xf]
    %v1203 = vld [vmem:[%s966 + $0x28] sm:$0xf]
    %v1204 = vld [vmem:[%s966 + $0x2c] sm:$0xf]
    %v1205 = vld [vmem:[%s966 + $0x30] sm:$0xf]
    %v1206 = vld [vmem:[%s966 + $0x34] sm:$0xf]
    %v1207 = vld [vmem:[%s966 + $0x38] sm:$0xf]
    %v1208 = vld [vmem:[%s966 + $0x3c] sm:$0xf]
    %v1209 = vpack.c.bf16 %v1192, %v1192
    %v1226 = vunpack.c.l.b16 %v1193
    %v1227 = vunpack.c.l.b16 %v1194
    %v1228 = vunpack.c.l.b16 %v1195
    %v1229 = vunpack.c.l.b16 %v1196
    %v1230 = vunpack.c.l.b16 %v1197
    %v1231 = vunpack.c.l.b16 %v1198
    %v1232 = vunpack.c.l.b16 %v1199
    %v1233 = vunpack.c.l.b16 %v1200
    %v1234 = vunpack.c.l.b16 %v1201
    %v1235 = vunpack.c.l.b16 %v1202
    %v1236 = vunpack.c.l.b16 %v1203
    %v1237 = vunpack.c.l.b16 %v1204
    %v1238 = vunpack.c.l.b16 %v1205
    %v1239 = vunpack.c.l.b16 %v1206
    %v1240 = vunpack.c.l.b16 %v1207
    %v1241 = vunpack.c.l.b16 %v1208
    %v1242 = vpack.c.b16 %v1227, %v1226
    %v1243 = vpack.c.b16 %v1229, %v1228
    %v1244 = vpack.c.b16 %v1231, %v1230
    %v1245 = vpack.c.b16 %v1233, %v1232
    %v1246 = vpack.c.b16 %v1235, %v1234
    %v1247 = vpack.c.b16 %v1237, %v1236
    %v1248 = vpack.c.b16 %v1239, %v1238
    %v1249 = vpack.c.b16 %v1241, %v1240
    %1258 = vmatpush.bf16.msra.mxu0 %v1249
    %1259 = vmatpush.bf16.msra.mxu0 %v1248
    %1260 = vmatpush.bf16.msra.mxu0 %v1247
    %1261 = vmatpush.bf16.msra.mxu0 %v1246
    %1262 = vmatpush.bf16.msra.mxu0 %v1245
    %1263 = vmatpush.bf16.msra.mxu0 %v1244
    %1264 = vmatpush.bf16.msra.mxu0 %v1243
    %1265 = vmatpush.bf16.msra.mxu0 %v1242
    %1266 = vmatmul.bf16.gmra.mxu0 %v1209
    %v1267 = vpop.f32.mrf.mxu0
    %v1268 = vadd.f32 0.0, %v1267
    %v1269 = vpop.f32.mrf.mxu0
    %1270 = vdwg.mxu0
    %v1271 = vxor.u32 %v1268, 2147483648
    %v1272 = vmul.f32 %v1271, 1.442695
    %v1273 = vpow.pop %v1272
    %v1274 = vadd.f32 %v1273, 1.0
    %v1275 = vrcp.pop %v1274
    %v1276 = vmul.f32 %v1274, %v1275
    %v1277 = vsub.f32 1.0, %v1276
    %v1278 = vmul.f32 %v1275, %v1277
    %v1279 = vadd.f32 %v1275, %v1278
    %vm1280 = vweird.f32 %v1274
    %vm1281 = vweird.f32 %v1275
    %vm1282 = vmor %vm1280, %vm1281
    %v1283 = vsel %vm1282, %v1275, %v1279
    %v1284 = vand.u32 2147483647, %v1274
    %vm1285 = vcmp.eq.f32.partialorder %v1284, 8.507059e+37
    %v1286 = vand.u32 %v1274, 2147483648
    %v1287 = vor.u32 1.1754944e-38, %v1286
    %v1288 = vsel %vm1285, %v1287, %v1283
    %v1289 = vmul.f32 1.0, %v1288
    %v1290 = vtanh.pop %v1268
    %v1291 = vsel %vm71, %v1290, %v1289
    %1292 = vrot.lane.b32.xlu0 %v1291, 64
    %v1293 = vpop.permute.xlu0 %1292
    %v1294 = vmul.f32 %v1291, %v1293
    %1295 = vrot.lane.b32.xlu0 %v1294, 32
    %v1296 = vpop.permute.xlu0 %1295
    %v1297 = vmul.f32 %v1291, %v1072
    %v1298 = vadd.f32 %v1297, %v1296
    %v1299 = vtanh.pop %v1298
    %v1300 = vmul.f32 %v1293, %v1299
    %1301 = vrot.lane.b32.xlu0 %v1300, 64
    %v1302 = vpop.permute.xlu0 %1301
    %v1303 = vsel %vm70, %v1302, %v73
    %v1304 = vsel %vm67, %v1187, %v1303
    %v1305 = vld [vmem:[%s1079] sm:$0xf]
    %v1306 = vld [vmem:[%s1079 + $0x4] sm:$0xf]
    %v1307 = vld [vmem:[%s1079 + $0x8] sm:$0xf]
    %v1308 = vld [vmem:[%s1079 + $0xc] sm:$0xf]
    %v1309 = vld [vmem:[%s1079 + $0x10] sm:$0xf]
    %v1310 = vld [vmem:[%s1079 + $0x14] sm:$0xf]
    %v1311 = vld [vmem:[%s1079 + $0x18] sm:$0xf]
    %v1312 = vld [vmem:[%s1079 + $0x1c] sm:$0xf]
    %v1313 = vld [vmem:[%s1079 + $0x20] sm:$0xf]
    %v1314 = vld [vmem:[%s1079 + $0x24] sm:$0xf]
    %v1315 = vld [vmem:[%s1079 + $0x28] sm:$0xf]
    %v1316 = vld [vmem:[%s1079 + $0x2c] sm:$0xf]
    %v1317 = vld [vmem:[%s1079 + $0x30] sm:$0xf]
    %v1318 = vld [vmem:[%s1079 + $0x34] sm:$0xf]
    %v1319 = vld [vmem:[%s1079 + $0x38] sm:$0xf]
    %v1320 = vld [vmem:[%s1079 + $0x3c] sm:$0xf]
    %v1321 = vpack.c.bf16 %v1304, %v1304
    %v1338 = vunpack.c.l.b16 %v1305
    %v1339 = vunpack.c.l.b16 %v1306
    %v1340 = vunpack.c.l.b16 %v1307
    %v1341 = vunpack.c.l.b16 %v1308
    %v1342 = vunpack.c.l.b16 %v1309
    %v1343 = vunpack.c.l.b16 %v1310
    %v1344 = vunpack.c.l.b16 %v1311
    %v1345 = vunpack.c.l.b16 %v1312
    %v1346 = vunpack.c.l.b16 %v1313
    %v1347 = vunpack.c.l.b16 %v1314
    %v1348 = vunpack.c.l.b16 %v1315
    %v1349 = vunpack.c.l.b16 %v1316
    %v1350 = vunpack.c.l.b16 %v1317
    %v1351 = vunpack.c.l.b16 %v1318
    %v1352 = vunpack.c.l.b16 %v1319
    %v1353 = vunpack.c.l.b16 %v1320
    %v1354 = vpack.c.b16 %v1339, %v1338
    %v1355 = vpack.c.b16 %v1341, %v1340
    %v1356 = vpack.c.b16 %v1343, %v1342
    %v1357 = vpack.c.b16 %v1345, %v1344
    %v1358 = vpack.c.b16 %v1347, %v1346
    %v1359 = vpack.c.b16 %v1349, %v1348
    %v1360 = vpack.c.b16 %v1351, %v1350
    %v1361 = vpack.c.b16 %v1353, %v1352
    %1370 = vmatpush.bf16.msra.mxu0 %v1361
    %1371 = vmatpush.bf16.msra.mxu0 %v1360
    %1372 = vmatpush.bf16.msra.mxu0 %v1359
    %1373 = vmatpush.bf16.msra.mxu0 %v1358
    %1374 = vmatpush.bf16.msra.mxu0 %v1357
    %1375 = vmatpush.bf16.msra.mxu0 %v1356
    %1376 = vmatpush.bf16.msra.mxu0 %v1355
    %1377 = vmatpush.bf16.msra.mxu0 %v1354
    %1378 = vmatmul.bf16.gmra.mxu0 %v1321
    %v1379 = vpop.f32.mrf.mxu0
    %v1380 = vadd.f32 0.0, %v1379
    %v1381 = vpop.f32.mrf.mxu0
    %1382 = vdwg.mxu0
    %v1383 = vxor.u32 %v1380, 2147483648
    %v1384 = vmul.f32 %v1383, 1.442695
    %v1385 = vpow.pop %v1384
    %v1386 = vadd.f32 %v1385, 1.0
    %v1387 = vrcp.pop %v1386
    %v1388 = vmul.f32 %v1386, %v1387
    %v1389 = vsub.f32 1.0, %v1388
    %v1390 = vmul.f32 %v1387, %v1389
    %v1391 = vadd.f32 %v1387, %v1390
    %vm1392 = vweird.f32 %v1386
    %vm1393 = vweird.f32 %v1387
    %vm1394 = vmor %vm1392, %vm1393
    %v1395 = vsel %vm1394, %v1387, %v1391
    %v1396 = vand.u32 2147483647, %v1386
    %vm1397 = vcmp.eq.f32.partialorder %v1396, 8.507059e+37
    %v1398 = vand.u32 %v1386, 2147483648
    %v1399 = vor.u32 1.1754944e-38, %v1398
    %v1400 = vsel %vm1397, %v1399, %v1395
    %v1401 = vmul.f32 1.0, %v1400
    %v1402 = vtanh.pop %v1380
    %v1403 = vsel %vm71, %v1402, %v1401
    %1404 = vrot.lane.b32.xlu0 %v1403, 64
    %v1405 = vpop.permute.xlu0 %1404
    %v1406 = vmul.f32 %v1403, %v1405
    %1407 = vrot.lane.b32.xlu0 %v1406, 32
    %v1408 = vpop.permute.xlu0 %1407
    %v1409 = vmul.f32 %v1403, %v1185
    %v1410 = vadd.f32 %v1409, %v1408
    %v1411 = vtanh.pop %v1410
    %v1412 = vmul.f32 %v1405, %v1411
    %1413 = vst [vmem:[#allocation8 + $0x8] sm:$0xff] %v1412
    %1414 = vrot.lane.b32.xlu0 %v1412, 64
    %v1415 = vpop.permute.xlu0 %1414
    %v1416 = vsel %vm70, %v1415, %v73
    %v1417 = vsel %vm67, %v1300, %v1416
    %v1418 = vld [vmem:[%s966] sm:$0xf]
    %v1419 = vld [vmem:[%s966 + $0x4] sm:$0xf]
    %v1420 = vld [vmem:[%s966 + $0x8] sm:$0xf]
    %v1421 = vld [vmem:[%s966 + $0xc] sm:$0xf]
    %v1422 = vld [vmem:[%s966 + $0x10] sm:$0xf]
    %v1423 = vld [vmem:[%s966 + $0x14] sm:$0xf]
    %v1424 = vld [vmem:[%s966 + $0x18] sm:$0xf]
    %v1425 = vld [vmem:[%s966 + $0x1c] sm:$0xf]
    %v1426 = vld [vmem:[%s966 + $0x20] sm:$0xf]
    %v1427 = vld [vmem:[%s966 + $0x24] sm:$0xf]
    %v1428 = vld [vmem:[%s966 + $0x28] sm:$0xf]
    %v1429 = vld [vmem:[%s966 + $0x2c] sm:$0xf]
    %v1430 = vld [vmem:[%s966 + $0x30] sm:$0xf]
    %v1431 = vld [vmem:[%s966 + $0x34] sm:$0xf]
    %v1432 = vld [vmem:[%s966 + $0x38] sm:$0xf]
    %v1433 = vld [vmem:[%s966 + $0x3c] sm:$0xf]
    %v1434 = vpack.c.bf16 %v1417, %v1417
    %v1451 = vunpack.c.l.b16 %v1418
    %v1452 = vunpack.c.l.b16 %v1419
    %v1453 = vunpack.c.l.b16 %v1420
    %v1454 = vunpack.c.l.b16 %v1421
    %v1455 = vunpack.c.l.b16 %v1422
    %v1456 = vunpack.c.l.b16 %v1423
    %v1457 = vunpack.c.l.b16 %v1424
    %v1458 = vunpack.c.l.b16 %v1425
    %v1459 = vunpack.c.l.b16 %v1426
    %v1460 = vunpack.c.l.b16 %v1427
    %v1461 = vunpack.c.l.b16 %v1428
    %v1462 = vunpack.c.l.b16 %v1429
    %v1463 = vunpack.c.l.b16 %v1430
    %v1464 = vunpack.c.l.b16 %v1431
    %v1465 = vunpack.c.l.b16 %v1432
    %v1466 = vunpack.c.l.b16 %v1433
    %v1467 = vpack.c.b16 %v1452, %v1451
    %v1468 = vpack.c.b16 %v1454, %v1453
    %v1469 = vpack.c.b16 %v1456, %v1455
    %v1470 = vpack.c.b16 %v1458, %v1457
    %v1471 = vpack.c.b16 %v1460, %v1459
    %v1472 = vpack.c.b16 %v1462, %v1461
    %v1473 = vpack.c.b16 %v1464, %v1463
    %v1474 = vpack.c.b16 %v1466, %v1465
    %1483 = vmatpush.bf16.msra.mxu0 %v1474
    %1484 = vmatpush.bf16.msra.mxu0 %v1473
    %1485 = vmatpush.bf16.msra.mxu0 %v1472
    %1486 = vmatpush.bf16.msra.mxu0 %v1471
    %1487 = vmatpush.bf16.msra.mxu0 %v1470
    %1488 = vmatpush.bf16.msra.mxu0 %v1469
    %1489 = vmatpush.bf16.msra.mxu0 %v1468
    %1490 = vmatpush.bf16.msra.mxu0 %v1467
    %1491 = vmatmul.bf16.gmra.mxu0 %v1434
    %v1492 = vpop.f32.mrf.mxu0
    %v1493 = vadd.f32 0.0, %v1492
    %v1494 = vpop.f32.mrf.mxu0
    %1495 = vdwg.mxu0
    %v1496 = vxor.u32 %v1493, 2147483648
    %v1497 = vmul.f32 %v1496, 1.442695
    %v1498 = vpow.pop %v1497
    %v1499 = vadd.f32 %v1498, 1.0
    %v1500 = vrcp.pop %v1499
    %v1501 = vmul.f32 %v1499, %v1500
    %v1502 = vsub.f32 1.0, %v1501
    %v1503 = vmul.f32 %v1500, %v1502
    %v1504 = vadd.f32 %v1500, %v1503
    %vm1505 = vweird.f32 %v1499
    %vm1506 = vweird.f32 %v1500
    %vm1507 = vmor %vm1505, %vm1506
    %v1508 = vsel %vm1507, %v1500, %v1504
    %v1509 = vand.u32 2147483647, %v1499
    %vm1510 = vcmp.eq.f32.partialorder %v1509, 8.507059e+37
    %v1511 = vand.u32 %v1499, 2147483648
    %v1512 = vor.u32 1.1754944e-38, %v1511
    %v1513 = vsel %vm1510, %v1512, %v1508
    %v1514 = vmul.f32 1.0, %v1513
    %v1515 = vtanh.pop %v1493
    %v1516 = vsel %vm71, %v1515, %v1514
    %1517 = vrot.lane.b32.xlu0 %v1516, 64
    %v1518 = vpop.permute.xlu0 %1517
    %v1519 = vmul.f32 %v1516, %v1518
    %1520 = vrot.lane.b32.xlu0 %v1519, 32
    %v1521 = vpop.permute.xlu0 %1520
    %v1522 = vmul.f32 %v1516, %v1298
    %v1523 = vadd.f32 %v1522, %v1521
    %v1524 = vtanh.pop %v1523
    %v1525 = vmul.f32 %v1518, %v1524
    %1526 = vrot.lane.b32.xlu0 %v1525, 64
    %v1527 = vpop.permute.xlu0 %1526
    %v1528 = vsel %vm70, %v1527, %v73
    %v1529 = vsel %vm67, %v1412, %v1528
    %v1530 = vld [vmem:[%s1079] sm:$0xf]
    %v1531 = vld [vmem:[%s1079 + $0x4] sm:$0xf]
    %v1532 = vld [vmem:[%s1079 + $0x8] sm:$0xf]
    %v1533 = vld [vmem:[%s1079 + $0xc] sm:$0xf]
    %v1534 = vld [vmem:[%s1079 + $0x10] sm:$0xf]
    %v1535 = vld [vmem:[%s1079 + $0x14] sm:$0xf]
    %v1536 = vld [vmem:[%s1079 + $0x18] sm:$0xf]
    %v1537 = vld [vmem:[%s1079 + $0x1c] sm:$0xf]
    %v1538 = vld [vmem:[%s1079 + $0x20] sm:$0xf]
    %v1539 = vld [vmem:[%s1079 + $0x24] sm:$0xf]
    %v1540 = vld [vmem:[%s1079 + $0x28] sm:$0xf]
    %v1541 = vld [vmem:[%s1079 + $0x2c] sm:$0xf]
    %v1542 = vld [vmem:[%s1079 + $0x30] sm:$0xf]
    %v1543 = vld [vmem:[%s1079 + $0x34] sm:$0xf]
    %v1544 = vld [vmem:[%s1079 + $0x38] sm:$0xf]
    %v1545 = vld [vmem:[%s1079 + $0x3c] sm:$0xf]
    %v1546 = vpack.c.bf16 %v1529, %v1529
    %v1563 = vunpack.c.l.b16 %v1530
    %v1564 = vunpack.c.l.b16 %v1531
    %v1565 = vunpack.c.l.b16 %v1532
    %v1566 = vunpack.c.l.b16 %v1533
    %v1567 = vunpack.c.l.b16 %v1534
    %v1568 = vunpack.c.l.b16 %v1535
    %v1569 = vunpack.c.l.b16 %v1536
    %v1570 = vunpack.c.l.b16 %v1537
    %v1571 = vunpack.c.l.b16 %v1538
    %v1572 = vunpack.c.l.b16 %v1539
    %v1573 = vunpack.c.l.b16 %v1540
    %v1574 = vunpack.c.l.b16 %v1541
    %v1575 = vunpack.c.l.b16 %v1542
    %v1576 = vunpack.c.l.b16 %v1543
    %v1577 = vunpack.c.l.b16 %v1544
    %v1578 = vunpack.c.l.b16 %v1545
    %v1579 = vpack.c.b16 %v1564, %v1563
    %v1580 = vpack.c.b16 %v1566, %v1565
    %v1581 = vpack.c.b16 %v1568, %v1567
    %v1582 = vpack.c.b16 %v1570, %v1569
    %v1583 = vpack.c.b16 %v1572, %v1571
    %v1584 = vpack.c.b16 %v1574, %v1573
    %v1585 = vpack.c.b16 %v1576, %v1575
    %v1586 = vpack.c.b16 %v1578, %v1577
    %1595 = vmatpush.bf16.msra.mxu0 %v1586
    %1596 = vmatpush.bf16.msra.mxu0 %v1585
    %1597 = vmatpush.bf16.msra.mxu0 %v1584
    %1598 = vmatpush.bf16.msra.mxu0 %v1583
    %1599 = vmatpush.bf16.msra.mxu0 %v1582
    %1600 = vmatpush.bf16.msra.mxu0 %v1581
    %1601 = vmatpush.bf16.msra.mxu0 %v1580
    %1602 = vmatpush.bf16.msra.mxu0 %v1579
    %1603 = vmatmul.bf16.gmra.mxu0 %v1546
    %v1604 = vpop.f32.mrf.mxu0
    %v1605 = vadd.f32 0.0, %v1604
    %v1606 = vpop.f32.mrf.mxu0
    %1607 = vdwg.mxu0
    %v1608 = vxor.u32 %v1605, 2147483648
    %v1609 = vmul.f32 %v1608, 1.442695
    %v1610 = vpow.pop %v1609
    %v1611 = vadd.f32 %v1610, 1.0
    %v1612 = vrcp.pop %v1611
    %v1613 = vmul.f32 %v1611, %v1612
    %v1614 = vsub.f32 1.0, %v1613
    %v1615 = vmul.f32 %v1612, %v1614
    %v1616 = vadd.f32 %v1612, %v1615
    %vm1617 = vweird.f32 %v1611
    %vm1618 = vweird.f32 %v1612
    %vm1619 = vmor %vm1617, %vm1618
    %v1620 = vsel %vm1619, %v1612, %v1616
    %v1621 = vand.u32 2147483647, %v1611
    %vm1622 = vcmp.eq.f32.partialorder %v1621, 8.507059e+37
    %v1623 = vand.u32 %v1611, 2147483648
    %v1624 = vor.u32 1.1754944e-38, %v1623
    %v1625 = vsel %vm1622, %v1624, %v1620
    %v1626 = vmul.f32 1.0, %v1625
    %v1627 = vtanh.pop %v1605
    %v1628 = vsel %vm71, %v1627, %v1626
    %1629 = vrot.lane.b32.xlu0 %v1628, 64
    %v1630 = vpop.permute.xlu0 %1629
    %v1631 = vmul.f32 %v1628, %v1630
    %1632 = vrot.lane.b32.xlu0 %v1631, 32
    %v1633 = vpop.permute.xlu0 %1632
    %v1634 = vmul.f32 %v1628, %v1410
    %v1635 = vadd.f32 %v1634, %v1633
    %v1636 = vtanh.pop %v1635
    %v1637 = vmul.f32 %v1630, %v1636
    %1638 = vst [vmem:[#allocation8 + $0x10] sm:$0xff] %v1637
    %1639 = vrot.lane.b32.xlu0 %v1637, 64
    %v1640 = vpop.permute.xlu0 %1639
    %v1641 = vsel %vm70, %v1640, %v73
    %v1642 = vsel %vm67, %v1525, %v1641
    %v1643 = vld [vmem:[%s966] sm:$0xf]
    %v1644 = vld [vmem:[%s966 + $0x4] sm:$0xf]
    %v1645 = vld [vmem:[%s966 + $0x8] sm:$0xf]
    %v1646 = vld [vmem:[%s966 + $0xc] sm:$0xf]
    %v1647 = vld [vmem:[%s966 + $0x10] sm:$0xf]
    %v1648 = vld [vmem:[%s966 + $0x14] sm:$0xf]
    %v1649 = vld [vmem:[%s966 + $0x18] sm:$0xf]
    %v1650 = vld [vmem:[%s966 + $0x1c] sm:$0xf]
    %v1651 = vld [vmem:[%s966 + $0x20] sm:$0xf]
    %v1652 = vld [vmem:[%s966 + $0x24] sm:$0xf]
    %v1653 = vld [vmem:[%s966 + $0x28] sm:$0xf]
    %v1654 = vld [vmem:[%s966 + $0x2c] sm:$0xf]
    %v1655 = vld [vmem:[%s966 + $0x30] sm:$0xf]
    %v1656 = vld [vmem:[%s966 + $0x34] sm:$0xf]
    %v1657 = vld [vmem:[%s966 + $0x38] sm:$0xf]
    %v1658 = vld [vmem:[%s966 + $0x3c] sm:$0xf]
    %v1659 = vpack.c.bf16 %v1642, %v1642
    %v1676 = vunpack.c.l.b16 %v1643
    %v1677 = vunpack.c.l.b16 %v1644
    %v1678 = vunpack.c.l.b16 %v1645
    %v1679 = vunpack.c.l.b16 %v1646
    %v1680 = vunpack.c.l.b16 %v1647
    %v1681 = vunpack.c.l.b16 %v1648
    %v1682 = vunpack.c.l.b16 %v1649
    %v1683 = vunpack.c.l.b16 %v1650
    %v1684 = vunpack.c.l.b16 %v1651
    %v1685 = vunpack.c.l.b16 %v1652
    %v1686 = vunpack.c.l.b16 %v1653
    %v1687 = vunpack.c.l.b16 %v1654
    %v1688 = vunpack.c.l.b16 %v1655
    %v1689 = vunpack.c.l.b16 %v1656
    %v1690 = vunpack.c.l.b16 %v1657
    %v1691 = vunpack.c.l.b16 %v1658
    %v1692 = vpack.c.b16 %v1677, %v1676
    %v1693 = vpack.c.b16 %v1679, %v1678
    %v1694 = vpack.c.b16 %v1681, %v1680
    %v1695 = vpack.c.b16 %v1683, %v1682
    %v1696 = vpack.c.b16 %v1685, %v1684
    %v1697 = vpack.c.b16 %v1687, %v1686
    %v1698 = vpack.c.b16 %v1689, %v1688
    %v1699 = vpack.c.b16 %v1691, %v1690
    %1708 = vmatpush.bf16.msra.mxu0 %v1699
    %1709 = vmatpush.bf16.msra.mxu0 %v1698
    %1710 = vmatpush.bf16.msra.mxu0 %v1697
    %1711 = vmatpush.bf16.msra.mxu0 %v1696
    %1712 = vmatpush.bf16.msra.mxu0 %v1695
    %1713 = vmatpush.bf16.msra.mxu0 %v1694
    %1714 = vmatpush.bf16.msra.mxu0 %v1693
    %1715 = vmatpush.bf16.msra.mxu0 %v1692
    %1716 = vmatmul.bf16.gmra.mxu0 %v1659
    %v1717 = vpop.f32.mrf.mxu0
    %v1718 = vadd.f32 0.0, %v1717
    %v1719 = vpop.f32.mrf.mxu0
    %1720 = vdwg.mxu0
    %v1721 = vxor.u32 %v1718, 2147483648
    %v1722 = vmul.f32 %v1721, 1.442695
    %v1723 = vpow.pop %v1722
    %v1724 = vadd.f32 %v1723, 1.0
    %v1725 = vrcp.pop %v1724
    %v1726 = vmul.f32 %v1724, %v1725
    %v1727 = vsub.f32 1.0, %v1726
    %v1728 = vmul.f32 %v1725, %v1727
    %v1729 = vadd.f32 %v1725, %v1728
    %vm1730 = vweird.f32 %v1724
    %vm1731 = vweird.f32 %v1725
    %vm1732 = vmor %vm1730, %vm1731
    %v1733 = vsel %vm1732, %v1725, %v1729
    %v1734 = vand.u32 2147483647, %v1724
    %vm1735 = vcmp.eq.f32.partialorder %v1734, 8.507059e+37
    %v1736 = vand.u32 %v1724, 2147483648
    %v1737 = vor.u32 1.1754944e-38, %v1736
    %v1738 = vsel %vm1735, %v1737, %v1733
    %v1739 = vmul.f32 1.0, %v1738
    %v1740 = vtanh.pop %v1718
    %v1741 = vsel %vm71, %v1740, %v1739
    %1742 = vrot.lane.b32.xlu0 %v1741, 64
    %v1743 = vpop.permute.xlu0 %1742
    %v1744 = vmul.f32 %v1741, %v1743
    %1745 = vrot.lane.b32.xlu0 %v1744, 32
    %v1746 = vpop.permute.xlu0 %1745
    %v1747 = vmul.f32 %v1741, %v1523
    %v1748 = vadd.f32 %v1747, %v1746
    %v1749 = vtanh.pop %v1748
    %v1750 = vmul.f32 %v1743, %v1749
    %1751 = vrot.lane.b32.xlu0 %v1750, 64
    %v1752 = vpop.permute.xlu0 %1751
    %v1753 = vsel %vm70, %v1752, %v73
    %v1754 = vsel %vm67, %v1637, %v1753
    %v1755 = vld [vmem:[%s1079] sm:$0xf]
    %v1756 = vld [vmem:[%s1079 + $0x4] sm:$0xf]
    %v1757 = vld [vmem:[%s1079 + $0x8] sm:$0xf]
    %v1758 = vld [vmem:[%s1079 + $0xc] sm:$0xf]
    %v1759 = vld [vmem:[%s1079 + $0x10] sm:$0xf]
    %v1760 = vld [vmem:[%s1079 + $0x14] sm:$0xf]
    %v1761 = vld [vmem:[%s1079 + $0x18] sm:$0xf]
    %v1762 = vld [vmem:[%s1079 + $0x1c] sm:$0xf]
    %v1763 = vld [vmem:[%s1079 + $0x20] sm:$0xf]
    %v1764 = vld [vmem:[%s1079 + $0x24] sm:$0xf]
    %v1765 = vld [vmem:[%s1079 + $0x28] sm:$0xf]
    %v1766 = vld [vmem:[%s1079 + $0x2c] sm:$0xf]
    %v1767 = vld [vmem:[%s1079 + $0x30] sm:$0xf]
    %v1768 = vld [vmem:[%s1079 + $0x34] sm:$0xf]
    %v1769 = vld [vmem:[%s1079 + $0x38] sm:$0xf]
    %v1770 = vld [vmem:[%s1079 + $0x3c] sm:$0xf]
    %v1771 = vpack.c.bf16 %v1754, %v1754
    %v1788 = vunpack.c.l.b16 %v1755
    %v1789 = vunpack.c.l.b16 %v1756
    %v1790 = vunpack.c.l.b16 %v1757
    %v1791 = vunpack.c.l.b16 %v1758
    %v1792 = vunpack.c.l.b16 %v1759
    %v1793 = vunpack.c.l.b16 %v1760
    %v1794 = vunpack.c.l.b16 %v1761
    %v1795 = vunpack.c.l.b16 %v1762
    %v1796 = vunpack.c.l.b16 %v1763
    %v1797 = vunpack.c.l.b16 %v1764
    %v1798 = vunpack.c.l.b16 %v1765
    %v1799 = vunpack.c.l.b16 %v1766
    %v1800 = vunpack.c.l.b16 %v1767
    %v1801 = vunpack.c.l.b16 %v1768
    %v1802 = vunpack.c.l.b16 %v1769
    %v1803 = vunpack.c.l.b16 %v1770
    %v1804 = vpack.c.b16 %v1789, %v1788
    %v1805 = vpack.c.b16 %v1791, %v1790
    %v1806 = vpack.c.b16 %v1793, %v1792
    %v1807 = vpack.c.b16 %v1795, %v1794
    %v1808 = vpack.c.b16 %v1797, %v1796
    %v1809 = vpack.c.b16 %v1799, %v1798
    %v1810 = vpack.c.b16 %v1801, %v1800
    %v1811 = vpack.c.b16 %v1803, %v1802
    %1820 = vmatpush.bf16.msra.mxu0 %v1811
    %1821 = vmatpush.bf16.msra.mxu0 %v1810
    %1822 = vmatpush.bf16.msra.mxu0 %v1809
    %1823 = vmatpush.bf16.msra.mxu0 %v1808
    %1824 = vmatpush.bf16.msra.mxu0 %v1807
    %1825 = vmatpush.bf16.msra.mxu0 %v1806
    %1826 = vmatpush.bf16.msra.mxu0 %v1805
    %1827 = vmatpush.bf16.msra.mxu0 %v1804
    %1828 = vmatmul.bf16.gmra.mxu0 %v1771
    %v1829 = vpop.f32.mrf.mxu0
    %v1830 = vadd.f32 0.0, %v1829
    %v1831 = vpop.f32.mrf.mxu0
    %1832 = vdwg.mxu0
    %v1833 = vxor.u32 %v1830, 2147483648
    %v1834 = vmul.f32 %v1833, 1.442695
    %v1835 = vpow.pop %v1834
    %v1836 = vadd.f32 %v1835, 1.0
    %v1837 = vrcp.pop %v1836
    %v1838 = vmul.f32 %v1836, %v1837
    %v1839 = vsub.f32 1.0, %v1838
    %v1840 = vmul.f32 %v1837, %v1839
    %v1841 = vadd.f32 %v1837, %v1840
    %vm1842 = vweird.f32 %v1836
    %vm1843 = vweird.f32 %v1837
    %vm1844 = vmor %vm1842, %vm1843
    %v1845 = vsel %vm1844, %v1837, %v1841
    %v1846 = vand.u32 2147483647, %v1836
    %vm1847 = vcmp.eq.f32.partialorder %v1846, 8.507059e+37
    %v1848 = vand.u32 %v1836, 2147483648
    %v1849 = vor.u32 1.1754944e-38, %v1848
    %v1850 = vsel %vm1847, %v1849, %v1845
    %v1851 = vmul.f32 1.0, %v1850
    %v1852 = vtanh.pop %v1830
    %v1853 = vsel %vm71, %v1852, %v1851
    %1854 = vrot.lane.b32.xlu0 %v1853, 64
    %v1855 = vpop.permute.xlu0 %1854
    %v1856 = vmul.f32 %v1853, %v1855
    %1857 = vrot.lane.b32.xlu0 %v1856, 32
    %v1858 = vpop.permute.xlu0 %1857
    %v1859 = vmul.f32 %v1853, %v1635
    %v1860 = vadd.f32 %v1859, %v1858
    %v1861 = vtanh.pop %v1860
    %v1862 = vmul.f32 %v1855, %v1861
    %1863 = vst [vmem:[#allocation8 + $0x18] sm:$0xff] %v1862
    %1864 = vrot.lane.b32.xlu0 %v1862, 64
    %v1865 = vpop.permute.xlu0 %1864
    %v1866 = vsel %vm70, %v1865, %v73
    %v1867 = vsel %vm67, %v1750, %v1866
    %v1868 = vld [vmem:[%s966] sm:$0xf]
    %v1869 = vld [vmem:[%s966 + $0x4] sm:$0xf]
    %v1870 = vld [vmem:[%s966 + $0x8] sm:$0xf]
    %v1871 = vld [vmem:[%s966 + $0xc] sm:$0xf]
    %v1872 = vld [vmem:[%s966 + $0x10] sm:$0xf]
    %v1873 = vld [vmem:[%s966 + $0x14] sm:$0xf]
    %v1874 = vld [vmem:[%s966 + $0x18] sm:$0xf]
    %v1875 = vld [vmem:[%s966 + $0x1c] sm:$0xf]
    %v1876 = vld [vmem:[%s966 + $0x20] sm:$0xf]
    %v1877 = vld [vmem:[%s966 + $0x24] sm:$0xf]
    %v1878 = vld [vmem:[%s966 + $0x28] sm:$0xf]
    %v1879 = vld [vmem:[%s966 + $0x2c] sm:$0xf]
    %v1880 = vld [vmem:[%s966 + $0x30] sm:$0xf]
    %v1881 = vld [vmem:[%s966 + $0x34] sm:$0xf]
    %v1882 = vld [vmem:[%s966 + $0x38] sm:$0xf]
    %v1883 = vld [vmem:[%s966 + $0x3c] sm:$0xf]
    %v1884 = vpack.c.bf16 %v1867, %v1867
    %v1901 = vunpack.c.l.b16 %v1868
    %v1902 = vunpack.c.l.b16 %v1869
    %v1903 = vunpack.c.l.b16 %v1870
    %v1904 = vunpack.c.l.b16 %v1871
    %v1905 = vunpack.c.l.b16 %v1872
    %v1906 = vunpack.c.l.b16 %v1873
    %v1907 = vunpack.c.l.b16 %v1874
    %v1908 = vunpack.c.l.b16 %v1875
    %v1909 = vunpack.c.l.b16 %v1876
    %v1910 = vunpack.c.l.b16 %v1877
    %v1911 = vunpack.c.l.b16 %v1878
    %v1912 = vunpack.c.l.b16 %v1879
    %v1913 = vunpack.c.l.b16 %v1880
    %v1914 = vunpack.c.l.b16 %v1881
    %v1915 = vunpack.c.l.b16 %v1882
    %v1916 = vunpack.c.l.b16 %v1883
    %v1917 = vpack.c.b16 %v1902, %v1901
    %v1918 = vpack.c.b16 %v1904, %v1903
    %v1919 = vpack.c.b16 %v1906, %v1905
    %v1920 = vpack.c.b16 %v1908, %v1907
    %v1921 = vpack.c.b16 %v1910, %v1909
    %v1922 = vpack.c.b16 %v1912, %v1911
    %v1923 = vpack.c.b16 %v1914, %v1913
    %v1924 = vpack.c.b16 %v1916, %v1915
    %1933 = vmatpush.bf16.msra.mxu0 %v1924
    %1934 = vmatpush.bf16.msra.mxu0 %v1923
    %1935 = vmatpush.bf16.msra.mxu0 %v1922
    %1936 = vmatpush.bf16.msra.mxu0 %v1921
    %1937 = vmatpush.bf16.msra.mxu0 %v1920
    %1938 = vmatpush.bf16.msra.mxu0 %v1919
    %1939 = vmatpush.bf16.msra.mxu0 %v1918
    %1940 = vmatpush.bf16.msra.mxu0 %v1917
    %1941 = vmatmul.bf16.gmra.mxu0 %v1884
    %v1942 = vpop.f32.mrf.mxu0
    %v1943 = vadd.f32 0.0, %v1942
    %v1944 = vpop.f32.mrf.mxu0
    %1945 = vdwg.mxu0
    %v1946 = vxor.u32 %v1943, 2147483648
    %v1947 = vmul.f32 %v1946, 1.442695
    %v1948 = vpow.pop %v1947
    %v1949 = vadd.f32 %v1948, 1.0
    %v1950 = vrcp.pop %v1949
    %v1951 = vmul.f32 %v1949, %v1950
    %v1952 = vsub.f32 1.0, %v1951
    %v1953 = vmul.f32 %v1950, %v1952
    %v1954 = vadd.f32 %v1950, %v1953
    %vm1955 = vweird.f32 %v1949
    %vm1956 = vweird.f32 %v1950
    %vm1957 = vmor %vm1955, %vm1956
    %v1958 = vsel %vm1957, %v1950, %v1954
    %v1959 = vand.u32 2147483647, %v1949
    %vm1960 = vcmp.eq.f32.partialorder %v1959, 8.507059e+37
    %v1961 = vand.u32 %v1949, 2147483648
    %v1962 = vor.u32 1.1754944e-38, %v1961
    %v1963 = vsel %vm1960, %v1962, %v1958
    %v1964 = vmul.f32 1.0, %v1963
    %v1965 = vtanh.pop %v1943
    %v1966 = vsel %vm71, %v1965, %v1964
    %1967 = vrot.lane.b32.xlu0 %v1966, 64
    %v1968 = vpop.permute.xlu0 %1967
    %v1969 = vmul.f32 %v1966, %v1968
    %1970 = vrot.lane.b32.xlu0 %v1969, 32
    %v1971 = vpop.permute.xlu0 %1970
    %v1972 = vmul.f32 %v1966, %v1748
    %v1973 = vadd.f32 %v1972, %v1971
    %v1974 = vtanh.pop %v1973
    %v1975 = vmul.f32 %v1968, %v1974
    %1976 = vrot.lane.b32.xlu0 %v1975, 64
    %v1977 = vpop.permute.xlu0 %1976
    %v1978 = vsel %vm70, %v1977, %v73
    %v1979 = vsel %vm67, %v1862, %v1978
    %v1980 = vld [vmem:[%s1079] sm:$0xf]
    %v1981 = vld [vmem:[%s1079 + $0x4] sm:$0xf]
    %v1982 = vld [vmem:[%s1079 + $0x8] sm:$0xf]
    %v1983 = vld [vmem:[%s1079 + $0xc] sm:$0xf]
    %v1984 = vld [vmem:[%s1079 + $0x10] sm:$0xf]
    %v1985 = vld [vmem:[%s1079 + $0x14] sm:$0xf]
    %v1986 = vld [vmem:[%s1079 + $0x18] sm:$0xf]
    %v1987 = vld [vmem:[%s1079 + $0x1c] sm:$0xf]
    %v1988 = vld [vmem:[%s1079 + $0x20] sm:$0xf]
    %v1989 = vld [vmem:[%s1079 + $0x24] sm:$0xf]
    %v1990 = vld [vmem:[%s1079 + $0x28] sm:$0xf]
    %v1991 = vld [vmem:[%s1079 + $0x2c] sm:$0xf]
    %v1992 = vld [vmem:[%s1079 + $0x30] sm:$0xf]
    %v1993 = vld [vmem:[%s1079 + $0x34] sm:$0xf]
    %v1994 = vld [vmem:[%s1079 + $0x38] sm:$0xf]
    %v1995 = vld [vmem:[%s1079 + $0x3c] sm:$0xf]
    %v1996 = vpack.c.bf16 %v1979, %v1979
    %v2013 = vunpack.c.l.b16 %v1980
    %v2014 = vunpack.c.l.b16 %v1981
    %v2015 = vunpack.c.l.b16 %v1982
    %v2016 = vunpack.c.l.b16 %v1983
    %v2017 = vunpack.c.l.b16 %v1984
    %v2018 = vunpack.c.l.b16 %v1985
    %v2019 = vunpack.c.l.b16 %v1986
    %v2020 = vunpack.c.l.b16 %v1987
    %v2021 = vunpack.c.l.b16 %v1988
    %v2022 = vunpack.c.l.b16 %v1989
    %v2023 = vunpack.c.l.b16 %v1990
    %v2024 = vunpack.c.l.b16 %v1991
    %v2025 = vunpack.c.l.b16 %v1992
    %v2026 = vunpack.c.l.b16 %v1993
    %v2027 = vunpack.c.l.b16 %v1994
    %v2028 = vunpack.c.l.b16 %v1995
    %v2029 = vpack.c.b16 %v2014, %v2013
    %v2030 = vpack.c.b16 %v2016, %v2015
    %v2031 = vpack.c.b16 %v2018, %v2017
    %v2032 = vpack.c.b16 %v2020, %v2019
    %v2033 = vpack.c.b16 %v2022, %v2021
    %v2034 = vpack.c.b16 %v2024, %v2023
    %v2035 = vpack.c.b16 %v2026, %v2025
    %v2036 = vpack.c.b16 %v2028, %v2027
    %2045 = vmatpush.bf16.msra.mxu0 %v2036
    %2046 = vmatpush.bf16.msra.mxu0 %v2035
    %2047 = vmatpush.bf16.msra.mxu0 %v2034
    %2048 = vmatpush.bf16.msra.mxu0 %v2033
    %2049 = vmatpush.bf16.msra.mxu0 %v2032
    %2050 = vmatpush.bf16.msra.mxu0 %v2031
    %2051 = vmatpush.bf16.msra.mxu0 %v2030
    %2052 = vmatpush.bf16.msra.mxu0 %v2029
    %2053 = vmatmul.bf16.gmra.mxu0 %v1996
    %v2054 = vpop.f32.mrf.mxu0
    %v2055 = vadd.f32 0.0, %v2054
    %v2056 = vpop.f32.mrf.mxu0
    %2057 = vdwg.mxu0
    %v2058 = vxor.u32 %v2055, 2147483648
    %v2059 = vmul.f32 %v2058, 1.442695
    %v2060 = vpow.pop %v2059
    %v2061 = vadd.f32 %v2060, 1.0
    %v2062 = vrcp.pop %v2061
    %v2063 = vmul.f32 %v2061, %v2062
    %v2064 = vsub.f32 1.0, %v2063
    %v2065 = vmul.f32 %v2062, %v2064
    %v2066 = vadd.f32 %v2062, %v2065
    %vm2067 = vweird.f32 %v2061
    %vm2068 = vweird.f32 %v2062
    %vm2069 = vmor %vm2067, %vm2068
    %v2070 = vsel %vm2069, %v2062, %v2066
    %v2071 = vand.u32 2147483647, %v2061
    %vm2072 = vcmp.eq.f32.partialorder %v2071, 8.507059e+37
    %v2073 = vand.u32 %v2061, 2147483648
    %v2074 = vor.u32 1.1754944e-38, %v2073
    %v2075 = vsel %vm2072, %v2074, %v2070
    %v2076 = vmul.f32 1.0, %v2075
    %v2077 = vtanh.pop %v2055
    %v2078 = vsel %vm71, %v2077, %v2076
    %2079 = vrot.lane.b32.xlu0 %v2078, 64
    %v2080 = vpop.permute.xlu0 %2079
    %v2081 = vmul.f32 %v2078, %v2080
    %2082 = vrot.lane.b32.xlu0 %v2081, 32
    %v2083 = vpop.permute.xlu0 %2082
    %v2084 = vmul.f32 %v2078, %v1860
    %v2085 = vadd.f32 %v2084, %v2083
    %v2086 = vtanh.pop %v2085
    %v2087 = vmul.f32 %v2080, %v2086
    %2088 = vst [vmem:[#allocation8 + $0x20] sm:$0xff] %v2087
    %2089 = vrot.lane.b32.xlu0 %v2087, 64
    %v2090 = vpop.permute.xlu0 %2089
    %v2091 = vsel %vm70, %v2090, %v73
    %v2092 = vsel %vm67, %v1975, %v2091
    %v2093 = vld [vmem:[%s966] sm:$0xf]
    %v2094 = vld [vmem:[%s966 + $0x4] sm:$0xf]
    %v2095 = vld [vmem:[%s966 + $0x8] sm:$0xf]
    %v2096 = vld [vmem:[%s966 + $0xc] sm:$0xf]
    %v2097 = vld [vmem:[%s966 + $0x10] sm:$0xf]
    %v2098 = vld [vmem:[%s966 + $0x14] sm:$0xf]
    %v2099 = vld [vmem:[%s966 + $0x18] sm:$0xf]
    %v2100 = vld [vmem:[%s966 + $0x1c] sm:$0xf]
    %v2101 = vld [vmem:[%s966 + $0x20] sm:$0xf]
    %v2102 = vld [vmem:[%s966 + $0x24] sm:$0xf]
    %v2103 = vld [vmem:[%s966 + $0x28] sm:$0xf]
    %v2104 = vld [vmem:[%s966 + $0x2c] sm:$0xf]
    %v2105 = vld [vmem:[%s966 + $0x30] sm:$0xf]
    %v2106 = vld [vmem:[%s966 + $0x34] sm:$0xf]
    %v2107 = vld [vmem:[%s966 + $0x38] sm:$0xf]
    %v2108 = vld [vmem:[%s966 + $0x3c] sm:$0xf]
    %v2109 = vpack.c.bf16 %v2092, %v2092
    %v2126 = vunpack.c.l.b16 %v2093
    %v2127 = vunpack.c.l.b16 %v2094
    %v2128 = vunpack.c.l.b16 %v2095
    %v2129 = vunpack.c.l.b16 %v2096
    %v2130 = vunpack.c.l.b16 %v2097
    %v2131 = vunpack.c.l.b16 %v2098
    %v2132 = vunpack.c.l.b16 %v2099
    %v2133 = vunpack.c.l.b16 %v2100
    %v2134 = vunpack.c.l.b16 %v2101
    %v2135 = vunpack.c.l.b16 %v2102
    %v2136 = vunpack.c.l.b16 %v2103
    %v2137 = vunpack.c.l.b16 %v2104
    %v2138 = vunpack.c.l.b16 %v2105
    %v2139 = vunpack.c.l.b16 %v2106
    %v2140 = vunpack.c.l.b16 %v2107
    %v2141 = vunpack.c.l.b16 %v2108
    %v2142 = vpack.c.b16 %v2127, %v2126
    %v2143 = vpack.c.b16 %v2129, %v2128
    %v2144 = vpack.c.b16 %v2131, %v2130
    %v2145 = vpack.c.b16 %v2133, %v2132
    %v2146 = vpack.c.b16 %v2135, %v2134
    %v2147 = vpack.c.b16 %v2137, %v2136
    %v2148 = vpack.c.b16 %v2139, %v2138
    %v2149 = vpack.c.b16 %v2141, %v2140
    %2158 = vmatpush.bf16.msra.mxu0 %v2149
    %2159 = vmatpush.bf16.msra.mxu0 %v2148
    %2160 = vmatpush.bf16.msra.mxu0 %v2147
    %2161 = vmatpush.bf16.msra.mxu0 %v2146
    %2162 = vmatpush.bf16.msra.mxu0 %v2145
    %2163 = vmatpush.bf16.msra.mxu0 %v2144
    %2164 = vmatpush.bf16.msra.mxu0 %v2143
    %2165 = vmatpush.bf16.msra.mxu0 %v2142
    %2166 = vmatmul.bf16.gmra.mxu0 %v2109
    %v2167 = vpop.f32.mrf.mxu0
    %v2168 = vadd.f32 0.0, %v2167
    %v2169 = vpop.f32.mrf.mxu0
    %2170 = vdwg.mxu0
    %v2171 = vxor.u32 %v2168, 2147483648
    %v2172 = vmul.f32 %v2171, 1.442695
    %v2173 = vpow.pop %v2172
    %v2174 = vadd.f32 %v2173, 1.0
    %v2175 = vrcp.pop %v2174
    %v2176 = vmul.f32 %v2174, %v2175
    %v2177 = vsub.f32 1.0, %v2176
    %v2178 = vmul.f32 %v2175, %v2177
    %v2179 = vadd.f32 %v2175, %v2178
    %vm2180 = vweird.f32 %v2174
    %vm2181 = vweird.f32 %v2175
    %vm2182 = vmor %vm2180, %vm2181
    %v2183 = vsel %vm2182, %v2175, %v2179
    %v2184 = vand.u32 2147483647, %v2174
    %vm2185 = vcmp.eq.f32.partialorder %v2184, 8.507059e+37
    %v2186 = vand.u32 %v2174, 2147483648
    %v2187 = vor.u32 1.1754944e-38, %v2186
    %v2188 = vsel %vm2185, %v2187, %v2183
    %v2189 = vmul.f32 1.0, %v2188
    %v2190 = vtanh.pop %v2168
    %v2191 = vsel %vm71, %v2190, %v2189
    %2192 = vrot.lane.b32.xlu0 %v2191, 64
    %v2193 = vpop.permute.xlu0 %2192
    %v2194 = vmul.f32 %v2191, %v2193
    %2195 = vrot.lane.b32.xlu0 %v2194, 32
    %v2196 = vpop.permute.xlu0 %2195
    %v2197 = vmul.f32 %v2191, %v1973
    %v2198 = vadd.f32 %v2197, %v2196
    %v2199 = vtanh.pop %v2198
    %v2200 = vmul.f32 %v2193, %v2199
    %2201 = vrot.lane.b32.xlu0 %v2200, 64
    %v2202 = vpop.permute.xlu0 %2201
    %v2203 = vsel %vm70, %v2202, %v73
    %v2204 = vsel %vm67, %v2087, %v2203
    %v2205 = vld [vmem:[%s1079] sm:$0xf]
    %v2206 = vld [vmem:[%s1079 + $0x4] sm:$0xf]
    %v2207 = vld [vmem:[%s1079 + $0x8] sm:$0xf]
    %v2208 = vld [vmem:[%s1079 + $0xc] sm:$0xf]
    %v2209 = vld [vmem:[%s1079 + $0x10] sm:$0xf]
    %v2210 = vld [vmem:[%s1079 + $0x14] sm:$0xf]
    %v2211 = vld [vmem:[%s1079 + $0x18] sm:$0xf]
    %v2212 = vld [vmem:[%s1079 + $0x1c] sm:$0xf]
    %v2213 = vld [vmem:[%s1079 + $0x20] sm:$0xf]
    %v2214 = vld [vmem:[%s1079 + $0x24] sm:$0xf]
    %v2215 = vld [vmem:[%s1079 + $0x28] sm:$0xf]
    %v2216 = vld [vmem:[%s1079 + $0x2c] sm:$0xf]
    %v2217 = vld [vmem:[%s1079 + $0x30] sm:$0xf]
    %v2218 = vld [vmem:[%s1079 + $0x34] sm:$0xf]
    %v2219 = vld [vmem:[%s1079 + $0x38] sm:$0xf]
    %v2220 = vld [vmem:[%s1079 + $0x3c] sm:$0xf]
    %v2221 = vpack.c.bf16 %v2204, %v2204
    %v2238 = vunpack.c.l.b16 %v2205
    %v2239 = vunpack.c.l.b16 %v2206
    %v2240 = vunpack.c.l.b16 %v2207
    %v2241 = vunpack.c.l.b16 %v2208
    %v2242 = vunpack.c.l.b16 %v2209
    %v2243 = vunpack.c.l.b16 %v2210
    %v2244 = vunpack.c.l.b16 %v2211
    %v2245 = vunpack.c.l.b16 %v2212
    %v2246 = vunpack.c.l.b16 %v2213
    %v2247 = vunpack.c.l.b16 %v2214
    %v2248 = vunpack.c.l.b16 %v2215
    %v2249 = vunpack.c.l.b16 %v2216
    %v2250 = vunpack.c.l.b16 %v2217
    %v2251 = vunpack.c.l.b16 %v2218
    %v2252 = vunpack.c.l.b16 %v2219
    %v2253 = vunpack.c.l.b16 %v2220
    %v2254 = vpack.c.b16 %v2239, %v2238
    %v2255 = vpack.c.b16 %v2241, %v2240
    %v2256 = vpack.c.b16 %v2243, %v2242
    %v2257 = vpack.c.b16 %v2245, %v2244
    %v2258 = vpack.c.b16 %v2247, %v2246
    %v2259 = vpack.c.b16 %v2249, %v2248
    %v2260 = vpack.c.b16 %v2251, %v2250
    %v2261 = vpack.c.b16 %v2253, %v2252
    %2270 = vmatpush.bf16.msra.mxu0 %v2261
    %2271 = vmatpush.bf16.msra.mxu0 %v2260
    %2272 = vmatpush.bf16.msra.mxu0 %v2259
    %2273 = vmatpush.bf16.msra.mxu0 %v2258
    %2274 = vmatpush.bf16.msra.mxu0 %v2257
    %2275 = vmatpush.bf16.msra.mxu0 %v2256
    %2276 = vmatpush.bf16.msra.mxu0 %v2255
    %2277 = vmatpush.bf16.msra.mxu0 %v2254
    %2278 = vmatmul.bf16.gmra.mxu0 %v2221
    %v2279 = vpop.f32.mrf.mxu0
    %v2280 = vadd.f32 0.0, %v2279
    %v2281 = vpop.f32.mrf.mxu0
    %2282 = vdwg.mxu0
    %v2283 = vxor.u32 %v2280, 2147483648
    %v2284 = vmul.f32 %v2283, 1.442695
    %v2285 = vpow.pop %v2284
    %v2286 = vadd.f32 %v2285, 1.0
    %v2287 = vrcp.pop %v2286
    %v2288 = vmul.f32 %v2286, %v2287
    %v2289 = vsub.f32 1.0, %v2288
    %v2290 = vmul.f32 %v2287, %v2289
    %v2291 = vadd.f32 %v2287, %v2290
    %vm2292 = vweird.f32 %v2286
    %vm2293 = vweird.f32 %v2287
    %vm2294 = vmor %vm2292, %vm2293
    %v2295 = vsel %vm2294, %v2287, %v2291
    %v2296 = vand.u32 2147483647, %v2286
    %vm2297 = vcmp.eq.f32.partialorder %v2296, 8.507059e+37
    %v2298 = vand.u32 %v2286, 2147483648
    %v2299 = vor.u32 1.1754944e-38, %v2298
    %v2300 = vsel %vm2297, %v2299, %v2295
    %v2301 = vmul.f32 1.0, %v2300
    %v2302 = vtanh.pop %v2280
    %v2303 = vsel %vm71, %v2302, %v2301
    %2304 = vrot.lane.b32.xlu0 %v2303, 64
    %v2305 = vpop.permute.xlu0 %2304
    %v2306 = vmul.f32 %v2303, %v2305
    %2307 = vrot.lane.b32.xlu0 %v2306, 32
    %v2308 = vpop.permute.xlu0 %2307
    %v2309 = vmul.f32 %v2303, %v2085
    %v2310 = vadd.f32 %v2309, %v2308
    %v2311 = vtanh.pop %v2310
    %v2312 = vmul.f32 %v2305, %v2311
    %2313 = vst [vmem:[#allocation8 + $0x28] sm:$0xff] %v2312
    %v2314 = vld [vmem:[#allocation8] sm:$0xff]
    %v2315 = vld [vmem:[#allocation8 + $0x8] sm:$0xff]
    %v2316 = vld [vmem:[#allocation8 + $0x10] sm:$0xff]
    %v2317 = vld [vmem:[#allocation8 + $0x18] sm:$0xff]
    %v2318 = vld [vmem:[#allocation8 + $0x20] sm:$0xff]
    %v2319 = vld [vmem:[#allocation8 + $0x28] sm:$0xff]
    %v2320 = vpack.c.bf16 %v2315, %v2314
    %v2321 = vpack.c.bf16 %v2317, %v2316
    %v2322 = vpack.c.bf16 %v2319, %v2318
    %v2323 = vld [vmem:[#allocation7] sm:$0xf]
    %v2324 = vld [vmem:[#allocation7 + $0x4] sm:$0xf]
    %v2325 = vld [vmem:[#allocation7 + $0x8] sm:$0xf]
    %v2326 = vld [vmem:[#allocation7 + $0xc] sm:$0xf]
    %v2327 = vld [vmem:[#allocation7 + $0x10] sm:$0xf]
    %v2328 = vld [vmem:[#allocation7 + $0x14] sm:$0xf]
    %v2329 = vld [vmem:[#allocation7 + $0x18] sm:$0xf]
    %v2330 = vld [vmem:[#allocation7 + $0x1c] sm:$0xf]
    %v2331 = vld [vmem:[#allocation7 + $0x20] sm:$0xf]
    %v2332 = vld [vmem:[#allocation7 + $0x24] sm:$0xf]
    %v2333 = vld [vmem:[#allocation7 + $0x28] sm:$0xf]
    %v2334 = vld [vmem:[#allocation7 + $0x2c] sm:$0xf]
    %v2335 = vld [vmem:[#allocation7 + $0x30] sm:$0xf]
    %v2336 = vld [vmem:[#allocation7 + $0x34] sm:$0xf]
    %v2337 = vld [vmem:[#allocation7 + $0x38] sm:$0xf]
    %v2338 = vld [vmem:[#allocation7 + $0x3c] sm:$0xf]
    %v2339 = vld [vmem:[%s3] sm:$0x1]
    %v2341 = vperm.slane %v2339, 0
    %v2359 = vunpack.c.l.b16 %v2323
    %v2360 = vunpack.c.l.b16 %v2324
    %v2361 = vunpack.c.l.b16 %v2325
    %v2362 = vunpack.c.l.b16 %v2326
    %v2363 = vunpack.c.l.b16 %v2327
    %v2364 = vunpack.c.l.b16 %v2328
    %v2365 = vunpack.c.l.b16 %v2329
    %v2366 = vunpack.c.l.b16 %v2330
    %v2367 = vunpack.c.l.b16 %v2331
    %v2368 = vunpack.c.l.b16 %v2332
    %v2369 = vunpack.c.l.b16 %v2333
    %v2370 = vunpack.c.l.b16 %v2334
    %v2371 = vunpack.c.l.b16 %v2335
    %v2372 = vunpack.c.l.b16 %v2336
    %v2373 = vunpack.c.l.b16 %v2337
    %v2374 = vunpack.c.l.b16 %v2338
    %v2375 = vpack.c.b16 %v2360, %v2359
    %v2376 = vpack.c.b16 %v2362, %v2361
    %v2377 = vpack.c.b16 %v2364, %v2363
    %v2378 = vpack.c.b16 %v2366, %v2365
    %v2379 = vpack.c.b16 %v2368, %v2367
    %v2380 = vpack.c.b16 %v2370, %v2369
    %v2381 = vpack.c.b16 %v2372, %v2371
    %v2382 = vpack.c.b16 %v2374, %v2373
    %2391 = vmatpush.bf16.msra.mxu0 %v2382
    %2392 = vmatpush.bf16.msra.mxu0 %v2381
    %2393 = vmatpush.bf16.msra.mxu0 %v2380
    %2394 = vmatpush.bf16.msra.mxu0 %v2379
    %2395 = vmatpush.bf16.msra.mxu0 %v2378
    %2396 = vmatpush.bf16.msra.mxu0 %v2377
    %2397 = vmatpush.bf16.msra.mxu0 %v2376
    %2398 = vmatpush.bf16.msra.mxu0 %v2375
    %2399 = vmatmul.bf16.gmra.mxu0 %v2320
    %v2400 = vpop.f32.mrf.mxu0
    %v2401 = vadd.f32 %v2341, %v2400
    %v2402 = vpop.f32.mrf.mxu0
    %v2403 = vadd.f32 %v2341, %v2402
    %2404 = vmatmul.bf16.gmra.mxu0 %v2321
    %v2405 = vpop.f32.mrf.mxu0
    %v2406 = vadd.f32 %v2341, %v2405
    %v2407 = vpop.f32.mrf.mxu0
    %v2408 = vadd.f32 %v2341, %v2407
    %2409 = vmatmul.bf16.gmra.mxu0 %v2322
    %v2410 = vpop.f32.mrf.mxu0
    %v2411 = vadd.f32 %v2341, %v2410
    %v2412 = vpop.f32.mrf.mxu0
    %v2413 = vadd.f32 %v2341, %v2412
    %2414 = vdwg.mxu0
    %2415 = vst [vmem:[#allocation8] sm:$0xff] %v2401
    %2416 = vst [vmem:[#allocation8 + $0x8] sm:$0xff] %v2403
    %2417 = vst [vmem:[#allocation8 + $0x10] sm:$0xff] %v2406
    %2418 = vst [vmem:[#allocation8 + $0x18] sm:$0xff] %v2408
    %2419 = vst [vmem:[#allocation8 + $0x20] sm:$0xff] %v2411
    %2420 = vst [vmem:[#allocation8 + $0x28] sm:$0xff] %v2413
    // Predicated region
    $region30: #{tpu_custom_call.1} parent=1 // pred_check
      _
    $region31: #{tpu_custom_call.1} parent=1 // pred_check_branch
      %2422 = sbr.rel (0) target = $region33
    $region32: #{tpu_custom_call.1} parent=1 // pred_region
      %2424 = vsyncadd [#allocation4], 0
      %s2425 = sshll.u32 [#allocation8], 4
      %s2426 = int_to_ptr.vmem [resolvable:$true] %s2425
      %s2427 = sshll.u32 %s4, 4
      %s2428 = int_to_ptr.hbm [resolvable:$true] %s2427
      %2433 = dma.vmem_to_hbm [thread:$0]  %s2426, 768, %s2428, [#allocation4], 128, 128, 8
    $region33: #{tpu_custom_call.1} parent=1 // pred_fallthru
      _
    // Predicated region
    $region34: #{tpu_custom_call.1} parent=1 // pred_check
      _
    $region35: #{tpu_custom_call.1} parent=1 // pred_check_branch
      %2435 = sbr.rel (0) target = $region37
    $region36: #{tpu_custom_call.1} parent=1 // pred_region
      %2437 = dma.done [#allocation4], 768
    $region37: #{tpu_custom_call.1} parent=1 // pred_fallthru
      _
    %2438 = vsyncpa [#allocation3], 1
    %2439 = vsyncpa [#allocation6], 1
    %2440 = vsyncpa [#allocation4], 1

</llo_original>
